<compile_context>
chip_gen: v6e
topology: v6e:2x2x1
jax: 0.10.0
libtpu: 0.0.40
codegen_flags: <defaults>
</compile_context>

<pallas_src>
import functools

import jax
import jax.numpy as jnp
from jax.experimental import pallas as pl
from jax.experimental.pallas import tpu as pltpu

_MiB = 1024 * 1024


# --------------------------------------------------------------------------
# Kernels
# --------------------------------------------------------------------------
def _gn_fused_kernel(w_ref, b_ref, x_ref, o_ref, *, eps, m, gpb, cg, rpc):
    """Fast path: `gpb` whole groups per step, each a lane-dense (R, 128) slab.

    w_ref / b_ref : SMEM f32 (C,) per-channel affine
    x_ref / o_ref : VMEM (gpb, R, 128)
    """
    gb = pl.program_id(0)
    inv_m = 1.0 / m
    inv_m1 = 1.0 / (m - 1.0)              # torch.Tensor.var: unbiased (ddof=1)
    for g in range(gpb):
        xg = x_ref[g].astype(jnp.float32)                    # (R, 128)
        # Sublane/R axis first (VALU vreg adds), then ONE cross-lane (XLU)
        # reduce per group: keeps the XLU from becoming co-binding.
        col_s = jnp.sum(xg, axis=0, keepdims=True)           # (1, 128)
        col_q = jnp.sum(xg * xg, axis=0, keepdims=True)      # (1, 128)
        s = jnp.sum(col_s, axis=1, keepdims=True)            # (1, 1)
        q = jnp.sum(col_q, axis=1, keepdims=True)            # (1, 1)
        mean = s * inv_m
        # Fused-sweep variance (E[x^2] - mean*E[x]); fine for activation-scale
        # data.  TODO(synk): switch to a shifted form if activations ever
        # carry very large means relative to their spread.
        var = jnp.maximum(q - s * mean, 0.0) * inv_m1
        inv = jax.lax.rsqrt(var + eps)                        # EUP
        ch0 = (gb * gpb + g) * cg
        for c in range(cg):
            w = w_ref[ch0 + c]
            b = b_ref[ch0 + c]
            scale = w * inv                                   # (1, 1)
            shift = b - mean * scale                          # (1, 1)
            rows = slice(c * rpc, (c + 1) * rpc)
            o_ref[g, rows, :] = (
                x_ref[g, rows, :].astype(jnp.float32) * scale + shift
            ).astype(o_ref.dtype)


def _gn_stats_kernel(x_ref, s_ref, q_ref):
    """Chunked path, pass 1: per-lane partial sum / sum-of-squares.

    x_ref        : (Rc, 128) chunk of one (n, g) group slab
    s_ref, q_ref : (1, 128) f32 accumulators, resident across the R-chunk axis
    """
    @pl.when(pl.program_id(2) == 0)
    def _():
        s_ref[...] = jnp.zeros_like(s_ref)
        q_ref[...] = jnp.zeros_like(q_ref)

    xv = x_ref[...].astype(jnp.float32)
    s_ref[...] += jnp.sum(xv, axis=0, keepdims=True)     # sublane-first: VALU
    q_ref[...] += jnp.sum(xv * xv, axis=0, keepdims=True)


def _gn_norm_kernel(scale_ref, shift_ref, x_ref, o_ref, *, num_channels):
    """Chunked path, pass 2: out = x * scale[n, c] + shift[n, c] (one FMA)."""
    idx = pl.program_id(0) * num_channels + pl.program_id(1)
    sc = scale_ref[idx]
    sh = shift_ref[idx]
    o_ref[...] = (x_ref[...].astype(jnp.float32) * sc + sh).astype(o_ref.dtype)


# --------------------------------------------------------------------------
# Helpers
# --------------------------------------------------------------------------
def _device_vmem_bytes():
    """Physical per-core VMEM (generation-aware), with a safe fallback."""
    try:
        info = pltpu.get_tpu_info()
        for attr in ("vmem_capacity_bytes", "vmem_size_bytes", "vmem_bytes"):
            v = getattr(info, attr, None)
            if v:
                return int(v)
    except Exception:
        pass
    return 128 * _MiB


def _vmem_limit_bytes(block_bytes_needed, vmem_cap):
    """Double-buffered block footprint + margin, capped at 75% of physical
    VMEM so we never request the full 64 MiB on v7x."""
    want = int(block_bytes_needed) + 8 * _MiB
    return int(min(max(want, 32 * _MiB), int(vmem_cap * 0.75)))


def _pick_row_chunk(total_rows, budget_rows):
    """Largest multiple-of-8 divisor of total_rows that fits budget_rows
    (falls back to the smallest such divisor, else total_rows)."""
    divs = [d for d in range(8, total_rows + 1, 8) if total_rows % d == 0]
    if not divs:
        return total_rows
    fitting = [d for d in divs if d <= budget_rows]
    return max(fitting) if fitting else min(divs)


def _reference(x, weight, bias, num_groups=16, eps=1e-5):
    """Pure-JAX reference (mirrors the PyTorch module, unbiased variance)."""
    N, C, H, W, D = x.shape
    G = num_groups
    xg = x.reshape(N, G, -1).astype(jnp.float32)
    mean = jnp.mean(xg, axis=-1, keepdims=True)
    var = jnp.var(xg, axis=-1, keepdims=True, ddof=1)   # torch.Tensor.var
    xg = (xg - mean) / jnp.sqrt(var + eps)
    x_n = xg.reshape(N, C, H, W, D)
    w = jnp.asarray(weight, jnp.float32).reshape(1, C, 1, 1, 1)
    b = jnp.asarray(bias, jnp.float32).reshape(1, C, 1, 1, 1)
    return x_n * w + b


# --------------------------------------------------------------------------
# Wrapper
# --------------------------------------------------------------------------
def group_norm_3d(x, weight, bias, num_groups=16, eps=1e-5,
                  block_budget_bytes=None):
    N, C, H, W, D = x.shape
    G = num_groups
    assert C % G == 0
    Cg = C // G
    S = H * W * D

    if S % 128 != 0:
        # TODO(synk): padded/masked Pallas path for spatial sizes that are not
        # a multiple of the 128-lane width; fall back to plain XLA (correct).
        return _reference(x, weight, bias, num_groups=G, eps=eps).astype(x.dtype)

    vmem_cap = _device_vmem_bytes()
    if block_budget_bytes is None:
        # ~4 MiB blocks on 64 MiB-VMEM parts (v7x), ~8 MiB on 128 MiB parts.
        block_budget_bytes = 4 * _MiB if vmem_cap <= 64 * _MiB else 8 * _MiB

    itemsize = x.dtype.itemsize
    rpc = S // 128                 # (·, 128) rows per channel
    R = Cg * rpc                   # rows per group
    m = float(Cg * S)              # elements per group
    numel = N * C * S
    x_bytes = numel * itemsize
    eps = float(eps)

    w_flat = jnp.asarray(weight, jnp.float32).reshape(-1)   # (C,)
    b_flat = jnp.asarray(bias, jnp.float32).reshape(-1)     # (C,)

    per_group_bytes = R * 128 * itemsize

    # ---------------------------------------------------------------- fast --
    if per_group_bytes <= block_budget_bytes:
        x_r = x.reshape(N, G, R, 128)
        max_gpb = max(1, block_budget_bytes // per_group_bytes)
        gpb = 1
        for cand in range(1, G + 1):
            if G % cand == 0 and cand <= max_gpb:
                gpb = cand
        # v7x has 2 TensorCores: guarantee a parallel axis of extent >= 2.
        if N == 1 and gpb == G and G > 1 and G % 2 == 0:
            gpb = G // 2
        n_gblocks = G // gpb

        block_bytes = gpb * R * 128 * itemsize
        params = pltpu.CompilerParams(
            dimension_semantics=("parallel", "parallel"),
            vmem_limit_bytes=_vmem_limit_bytes(4 * block_bytes, vmem_cap))
        cost = pl.CostEstimate(flops=int(5 * numel),
                               transcendentals=int(N * G),
                               bytes_accessed=int(2 * x_bytes + 8 * C))
        kernel = functools.partial(_gn_fused_kernel, eps=eps, m=m, gpb=gpb,
                                   cg=Cg, rpc=rpc)
        out = pl.pallas_call(
            kernel,
            out_shape=jax.ShapeDtypeStruct((N, G, R, 128), x.dtype),
            grid=(n_gblocks, N),
            in_specs=[
                pl.BlockSpec(memory_space=pltpu.MemorySpace.SMEM),
                pl.BlockSpec(memory_space=pltpu.MemorySpace.SMEM),
                pl.BlockSpec((None, gpb, R, 128), lambda gb, n: (n, gb, 0, 0)),
            ],
            out_specs=pl.BlockSpec((None, gpb, R, 128),
                                   lambda gb, n: (n, gb, 0, 0)),
            compiler_params=params,
            cost_estimate=cost,
        )(w_flat, b_flat, x_r)
        return out.reshape(N, C, H, W, D)

    # ----------------------------------------------- chunked (large slabs) --
    budget_rows = max(8, block_budget_bytes // (128 * itemsize))

    # Pass 1: per-(n, g) partial sums over R-chunks (reduction axis last).
    x_rg = x.reshape(N, G, R, 128)
    Rc = _pick_row_chunk(R, budget_rows)
    stats_params = pltpu.CompilerParams(
        dimension_semantics=("parallel", "parallel", "arbitrary"),
        vmem_limit_bytes=_vmem_limit_bytes(2 * Rc * 128 * itemsize, vmem_cap))
    stats_cost = pl.CostEstimate(
        flops=int(3 * numel), transcendentals=0,
        bytes_accessed=int(x_bytes + 2 * N * G * 128 * 4))
    sums4, sumsq4 = pl.pallas_call(
        _gn_stats_kernel,
        out_shape=(jax.ShapeDtypeStruct((N, G, 1, 128), jnp.float32),
                   jax.ShapeDtypeStruct((N, G, 1, 128), jnp.float32)),
        grid=(N, G, R // Rc),
        in_specs=[pl.BlockSpec((None, None, Rc, 128),
                               lambda n, g, r: (n, g, r, 0))],
        out_specs=(pl.BlockSpec((None, None, 1, 128),
                                lambda n, g, r: (n, g, 0, 0)),
                   pl.BlockSpec((None, None, 1, 128),
                                lambda n, g, r: (n, g, 0, 0))),
        compiler_params=stats_params,
        cost_estimate=stats_cost,
    )(x_rg)

    # Finish the tiny reduction, fold mean/inv-std + affine into per-(n, c)
    # scale/shift (all O(N*C) work, done in plain XLA).
    sums = jnp.sum(sums4[:, :, 0, :], axis=-1)            # (N, G)
    sumsq = jnp.sum(sumsq4[:, :, 0, :], axis=-1)          # (N, G)
    mean = sums / m
    var = jnp.maximum(sumsq - sums * mean, 0.0) / (m - 1.0)   # unbiased
    inv = jax.lax.rsqrt(var + eps)                        # (N, G)
    w_gc = w_flat.reshape(G, Cg)
    b_gc = b_flat.reshape(G, Cg)
    scale = (w_gc[None, :, :] * inv[:, :, None]).reshape(N * C)
    shift = (b_gc[None, :, :]
             - mean[:, :, None] * w_gc[None, :, :] * inv[:, :, None]
             ).reshape(N * C)

    # Pass 2: lane-dense single-FMA normalize; per-(n, c) scalars from SMEM.
    x_rc = x.reshape(N, C, rpc, 128)
    Rc2 = _pick_row_chunk(rpc, budget_rows)
    norm_params = pltpu.CompilerParams(
        dimension_semantics=("parallel", "parallel", "parallel"),
        vmem_limit_bytes=_vmem_limit_bytes(4 * Rc2 * 128 * itemsize, vmem_cap))
    norm_cost = pl.CostEstimate(flops=int(2 * numel), transcendentals=0,
                                bytes_accessed=int(2 * x_bytes + 8 * N * C))
    out = pl.pallas_call(
        functools.partial(_gn_norm_kernel, num_channels=C),
        out_shape=jax.ShapeDtypeStruct((N, C, rpc, 128), x.dtype),
        grid=(N, C, rpc // Rc2),
        in_specs=[
            pl.BlockSpec(memory_space=pltpu.MemorySpace.SMEM),
            pl.BlockSpec(memory_space=pltpu.MemorySpace.SMEM),
            pl.BlockSpec((None, None, Rc2, 128), lambda n, c, r: (n, c, r, 0)),
        ],
        out_specs=pl.BlockSpec((None, None, Rc2, 128),
                               lambda n, c, r: (n, c, r, 0)),
        compiler_params=norm_params,
        cost_estimate=norm_cost,
    )(scale, shift, x_rc)
    return out.reshape(N, C, H, W, D)


# --------------------------------------------------------------------------
# Self-test
# --------------------------------------------------------------------------
if __name__ == "__main__":
    num_groups = 16
    eps = 1e-5
    key = jax.random.PRNGKey(0)
    kx, kw, kb = jax.random.split(key, 3)

    configs = [
        # (shape,              dtype,        budget override, tol)
        ((2, 32, 4, 4, 8),     jnp.float32,  None,            2e-4),  # fast, R=2
        ((2, 32, 8, 8, 8),     jnp.float32,  None,            2e-4),  # fast, R=8
        ((1, 32, 4, 4, 8),     jnp.float32,  None,            2e-4),  # N=1 -> forced 2-way group split
        ((1, 32, 8, 8, 16),    jnp.float32,  4096,            2e-4),  # tiny budget -> chunked path
        ((2, 32, 8, 8, 8),     jnp.bfloat16, None,            5e-2),  # bf16 activations
    ]
    for shape, dtype, budget, tol in configs:
        N, C, H, W, D = shape
        x = jax.random.normal(kx, shape, dtype=jnp.float32).astype(dtype)
        weight = 1.0 + 0.1 * jax.random.normal(kw, (1, C, 1, 1, 1), jnp.float32)
        bias = 0.1 * jax.random.normal(kb, (1, C, 1, 1, 1), jnp.float32)

        kwargs = dict(num_groups=num_groups, eps=eps)
        if budget is not None:
            kwargs["block_budget_bytes"] = budget

        out = jax.block_until_ready(group_norm_3d(x, weight, bias, **kwargs))
        ref = _reference(x.astype(jnp.float32), weight, bias,
                         num_groups=num_groups, eps=eps)
        assert out.shape == shape
        assert out.dtype == dtype
        err = float(jnp.max(jnp.abs(out.astype(jnp.float32) - ref)))
        assert err < tol, (shape, str(dtype), err)

    print("KERNEL_OK")
</pallas_src>

<mosaic_0001>
module attributes {stable_mosaic.version = 11 : i64} {
  func.func @_gn_fused_kernel(%arg0: i32, %arg1: i32, %arg2: memref<32xf32, #tpu.memory_space<smem>>, %arg3: memref<32xf32, #tpu.memory_space<smem>>, %arg4: memref<1x16x2x128xf32, #tpu.memory_space<vmem>>, %arg5: memref<1x16x2x128xf32, #tpu.memory_space<vmem>>) attributes {dimension_semantics = [#tpu.dimension_semantics<parallel>, #tpu.dimension_semantics<parallel>], iteration_bounds = array<i64: 1, 2>, scalar_prefetch = 0 : i64, scratch_operands = 0 : i64, tpu.core_type = #tpu.core_type<tc>, window_params = [{transform_indices = @transform_0, window_bounds = array<i64: 32>}, {transform_indices = @transform_1, window_bounds = array<i64: 32>}, {transform_indices = @transform_2, window_bounds = array<i64: 1, 16, 2, 128>}, {transform_indices = @transform_3, window_bounds = array<i64: 1, 16, 2, 128>}]} {
    %c0 = arith.constant 0 : index
    %c0_0 = arith.constant 0 : index
    %c0_1 = arith.constant 0 : index
    %c0_2 = arith.constant 0 : index
    %0 = vector.load %arg4[%c0, %c0_0, %c0_1, %c0_2] : memref<1x16x2x128xf32, #tpu.memory_space<vmem>>, vector<1x1x2x128xf32>
    %1 = vector.shape_cast %0 : vector<1x1x2x128xf32> to vector<2x128xf32>
    %cst = arith.constant dense<0.000000e+00> : vector<128xf32>
    %2 = vector.multi_reduction <add>, %1, %cst [0] : vector<2x128xf32> to vector<128xf32>
    %3 = vector.shape_cast %2 : vector<128xf32> to vector<1x128xf32>
    %4 = arith.mulf %1, %1 : vector<2x128xf32>
    %cst_3 = arith.constant dense<0.000000e+00> : vector<128xf32>
    %5 = vector.multi_reduction <add>, %4, %cst_3 [0] : vector<2x128xf32> to vector<128xf32>
    %6 = vector.shape_cast %5 : vector<128xf32> to vector<1x128xf32>
    %cst_4 = arith.constant dense<0.000000e+00> : vector<1xf32>
    %7 = vector.multi_reduction <add>, %3, %cst_4 [1] : vector<1x128xf32> to vector<1xf32>
    %8 = vector.shape_cast %7 : vector<1xf32> to vector<1x1xf32>
    %cst_5 = arith.constant dense<0.000000e+00> : vector<1xf32>
    %9 = vector.multi_reduction <add>, %6, %cst_5 [1] : vector<1x128xf32> to vector<1xf32>
    %10 = vector.shape_cast %9 : vector<1xf32> to vector<1x1xf32>
    %cst_6 = arith.constant 3.906250e-03 : f32
    %11 = vector.broadcast %cst_6 : f32 to vector<1x1xf32>
    %12 = arith.mulf %8, %11 : vector<1x1xf32>
    %13 = arith.mulf %8, %12 : vector<1x1xf32>
    %14 = arith.subf %10, %13 : vector<1x1xf32>
    %cst_7 = arith.constant 0.000000e+00 : f32
    %15 = vector.broadcast %cst_7 : f32 to vector<1x1xf32>
    %16 = arith.maximumf %14, %15 : vector<1x1xf32>
    %cst_8 = arith.constant 0.00392156886 : f32
    %17 = vector.broadcast %cst_8 : f32 to vector<1x1xf32>
    %18 = arith.mulf %16, %17 : vector<1x1xf32>
    %cst_9 = arith.constant 9.99999974E-6 : f32
    %19 = vector.broadcast %cst_9 : f32 to vector<1x1xf32>
    %20 = arith.addf %18, %19 : vector<1x1xf32>
    %21 = math.rsqrt %20 : vector<1x1xf32>
    %c16_i32 = arith.constant 16 : i32
    %22 = arith.muli %arg0, %c16_i32 : i32
    %c0_i32 = arith.constant 0 : i32
    %23 = arith.addi %22, %c0_i32 : i32
    %c2_i32 = arith.constant 2 : i32
    %24 = arith.muli %23, %c2_i32 : i32
    %c0_i32_10 = arith.constant 0 : i32
    %25 = arith.addi %24, %c0_i32_10 : i32
    %26 = arith.index_cast %25 : i32 to index
    %27 = memref.load %arg2[%26] : memref<32xf32, #tpu.memory_space<smem>>
    %c0_i32_11 = arith.constant 0 : i32
    %28 = arith.addi %24, %c0_i32_11 : i32
    %29 = arith.index_cast %28 : i32 to index
    %30 = memref.load %arg3[%29] : memref<32xf32, #tpu.memory_space<smem>>
    %31 = vector.broadcast %27 : f32 to vector<1x1xf32>
    %32 = arith.mulf %31, %21 : vector<1x1xf32>
    %33 = arith.mulf %12, %32 : vector<1x1xf32>
    %34 = vector.broadcast %30 : f32 to vector<1x1xf32>
    %35 = arith.subf %34, %33 : vector<1x1xf32>
    %c0_12 = arith.constant 0 : index
    %c0_13 = arith.constant 0 : index
    %c0_14 = arith.constant 0 : index
    %c0_15 = arith.constant 0 : index
    %36 = vector.load %arg4[%c0_12, %c0_13, %c0_14, %c0_15] : memref<1x16x2x128xf32, #tpu.memory_space<vmem>>, vector<1x1x1x128xf32>
    %37 = vector.shape_cast %36 : vector<1x1x1x128xf32> to vector<1x128xf32>
    %38 = vector.broadcast %32 : vector<1x1xf32> to vector<1x128xf32>
    %39 = arith.mulf %37, %38 : vector<1x128xf32>
    %40 = vector.broadcast %35 : vector<1x1xf32> to vector<1x128xf32>
    %41 = arith.addf %39, %40 : vector<1x128xf32>
    %c0_16 = arith.constant 0 : index
    %c0_17 = arith.constant 0 : index
    %c0_18 = arith.constant 0 : index
    %c0_19 = arith.constant 0 : index
    %42 = vector.load %arg5[%c0_16, %c0_17, %c0_18, %c0_19] : memref<1x16x2x128xf32, #tpu.memory_space<vmem>>, vector<1x1x1x128xf32>
    %43 = vector.shape_cast %42 : vector<1x1x1x128xf32> to vector<1x128xf32>
    %44 = vector.shape_cast %41 : vector<1x128xf32> to vector<1x1x1x128xf32>
    tpu.vector_store %arg5[%c0_16, %c0_17, %c0_18, %c0_19], %44 {strides = array<i32>} : memref<1x16x2x128xf32, #tpu.memory_space<vmem>>, vector<1x1x1x128xf32>,
    %c1_i32 = arith.constant 1 : i32
    %45 = arith.addi %24, %c1_i32 : i32
    %46 = arith.index_cast %45 : i32 to index
    %47 = memref.load %arg2[%46] : memref<32xf32, #tpu.memory_space<smem>>
    %c1_i32_20 = arith.constant 1 : i32
    %48 = arith.addi %24, %c1_i32_20 : i32
    %49 = arith.index_cast %48 : i32 to index
    %50 = memref.load %arg3[%49] : memref<32xf32, #tpu.memory_space<smem>>
    %51 = vector.broadcast %47 : f32 to vector<1x1xf32>
    %52 = arith.mulf %51, %21 : vector<1x1xf32>
    %53 = arith.mulf %12, %52 : vector<1x1xf32>
    %54 = vector.broadcast %50 : f32 to vector<1x1xf32>
    %55 = arith.subf %54, %53 : vector<1x1xf32>
    %c0_21 = arith.constant 0 : index
    %c0_22 = arith.constant 0 : index
    %c1 = arith.constant 1 : index
    %c0_23 = arith.constant 0 : index
    %56 = vector.load %arg4[%c0_21, %c0_22, %c1, %c0_23] : memref<1x16x2x128xf32, #tpu.memory_space<vmem>>, vector<1x1x1x128xf32>
    %57 = vector.shape_cast %56 : vector<1x1x1x128xf32> to vector<1x128xf32>
    %58 = vector.broadcast %52 : vector<1x1xf32> to vector<1x128xf32>
    %59 = arith.mulf %57, %58 : vector<1x128xf32>
    %60 = vector.broadcast %55 : vector<1x1xf32> to vector<1x128xf32>
    %61 = arith.addf %59, %60 : vector<1x128xf32>
    %c0_24 = arith.constant 0 : index
    %c0_25 = arith.constant 0 : index
    %c1_26 = arith.constant 1 : index
    %c0_27 = arith.constant 0 : index
    %62 = vector.load %arg5[%c0_24, %c0_25, %c1_26, %c0_27] : memref<1x16x2x128xf32, #tpu.memory_space<vmem>>, vector<1x1x1x128xf32>
    %63 = vector.shape_cast %62 : vector<1x1x1x128xf32> to vector<1x128xf32>
    %64 = vector.shape_cast %61 : vector<1x128xf32> to vector<1x1x1x128xf32>
    tpu.vector_store %arg5[%c0_24, %c0_25, %c1_26, %c0_27], %64 {strides = array<i32>} : memref<1x16x2x128xf32, #tpu.memory_space<vmem>>, vector<1x1x1x128xf32>,
    %c0_28 = arith.constant 0 : index
    %c1_29 = arith.constant 1 : index
    %c0_30 = arith.constant 0 : index
    %c0_31 = arith.constant 0 : index
    %65 = vector.load %arg4[%c0_28, %c1_29, %c0_30, %c0_31] : memref<1x16x2x128xf32, #tpu.memory_space<vmem>>, vector<1x1x2x128xf32>
    %66 = vector.shape_cast %65 : vector<1x1x2x128xf32> to vector<2x128xf32>
    %cst_32 = arith.constant dense<0.000000e+00> : vector<128xf32>
    %67 = vector.multi_reduction <add>, %66, %cst_32 [0] : vector<2x128xf32> to vector<128xf32>
    %68 = vector.shape_cast %67 : vector<128xf32> to vector<1x128xf32>
    %69 = arith.mulf %66, %66 : vector<2x128xf32>
    %cst_33 = arith.constant dense<0.000000e+00> : vector<128xf32>
    %70 = vector.multi_reduction <add>, %69, %cst_33 [0] : vector<2x128xf32> to vector<128xf32>
    %71 = vector.shape_cast %70 : vector<128xf32> to vector<1x128xf32>
    %cst_34 = arith.constant dense<0.000000e+00> : vector<1xf32>
    %72 = vector.multi_reduction <add>, %68, %cst_34 [1] : vector<1x128xf32> to vector<1xf32>
    %73 = vector.shape_cast %72 : vector<1xf32> to vector<1x1xf32>
    %cst_35 = arith.constant dense<0.000000e+00> : vector<1xf32>
    %74 = vector.multi_reduction <add>, %71, %cst_35 [1] : vector<1x128xf32> to vector<1xf32>
    %75 = vector.shape_cast %74 : vector<1xf32> to vector<1x1xf32>
    %cst_36 = arith.constant 3.906250e-03 : f32
    %76 = vector.broadcast %cst_36 : f32 to vector<1x1xf32>
    %77 = arith.mulf %73, %76 : vector<1x1xf32>
    %78 = arith.mulf %73, %77 : vector<1x1xf32>
    %79 = arith.subf %75, %78 : vector<1x1xf32>
    %cst_37 = arith.constant 0.000000e+00 : f32
    %80 = vector.broadcast %cst_37 : f32 to vector<1x1xf32>
    %81 = arith.maximumf %79, %80 : vector<1x1xf32>
    %cst_38 = arith.constant 0.00392156886 : f32
    %82 = vector.broadcast %cst_38 : f32 to vector<1x1xf32>
    %83 = arith.mulf %81, %82 : vector<1x1xf32>
    %cst_39 = arith.constant 9.99999974E-6 : f32
    %84 = vector.broadcast %cst_39 : f32 to vector<1x1xf32>
    %85 = arith.addf %83, %84 : vector<1x1xf32>
    %86 = math.rsqrt %85 : vector<1x1xf32>
    %c16_i32_40 = arith.constant 16 : i32
    %87 = arith.muli %arg0, %c16_i32_40 : i32
    %c1_i32_41 = arith.constant 1 : i32
    %88 = arith.addi %87, %c1_i32_41 : i32
    %c2_i32_42 = arith.constant 2 : i32
    %89 = arith.muli %88, %c2_i32_42 : i32
    %c0_i32_43 = arith.constant 0 : i32
    %90 = arith.addi %89, %c0_i32_43 : i32
    %91 = arith.index_cast %90 : i32 to index
    %92 = memref.load %arg2[%91] : memref<32xf32, #tpu.memory_space<smem>>
    %c0_i32_44 = arith.constant 0 : i32
    %93 = arith.addi %89, %c0_i32_44 : i32
    %94 = arith.index_cast %93 : i32 to index
    %95 = memref.load %arg3[%94] : memref<32xf32, #tpu.memory_space<smem>>
    %96 = vector.broadcast %92 : f32 to vector<1x1xf32>
    %97 = arith.mulf %96, %86 : vector<1x1xf32>
    %98 = arith.mulf %77, %97 : vector<1x1xf32>
    %99 = vector.broadcast %95 : f32 to vector<1x1xf32>
    %100 = arith.subf %99, %98 : vector<1x1xf32>
    %c0_45 = arith.constant 0 : index
    %c1_46 = arith.constant 1 : index
    %c0_47 = arith.constant 0 : index
    %c0_48 = arith.constant 0 : index
    %101 = vector.load %arg4[%c0_45, %c1_46, %c0_47, %c0_48] : memref<1x16x2x128xf32, #tpu.memory_space<vmem>>, vector<1x1x1x128xf32>
    %102 = vector.shape_cast %101 : vector<1x1x1x128xf32> to vector<1x128xf32>
    %103 = vector.broadcast %97 : vector<1x1xf32> to vector<1x128xf32>
    %104 = arith.mulf %102, %103 : vector<1x128xf32>
    %105 = vector.broadcast %100 : vector<1x1xf32> to vector<1x128xf32>
    %106 = arith.addf %104, %105 : vector<1x128xf32>
    %c0_49 = arith.constant 0 : index
    %c1_50 = arith.constant 1 : index
    %c0_51 = arith.constant 0 : index
    %c0_52 = arith.constant 0 : index
    %107 = vector.load %arg5[%c0_49, %c1_50, %c0_51, %c0_52] : memref<1x16x2x128xf32, #tpu.memory_space<vmem>>, vector<1x1x1x128xf32>
    %108 = vector.shape_cast %107 : vector<1x1x1x128xf32> to vector<1x128xf32>
    %109 = vector.shape_cast %106 : vector<1x128xf32> to vector<1x1x1x128xf32>
    tpu.vector_store %arg5[%c0_49, %c1_50, %c0_51, %c0_52], %109 {strides = array<i32>} : memref<1x16x2x128xf32, #tpu.memory_space<vmem>>, vector<1x1x1x128xf32>,
    %c1_i32_53 = arith.constant 1 : i32
    %110 = arith.addi %89, %c1_i32_53 : i32
    %111 = arith.index_cast %110 : i32 to index
    %112 = memref.load %arg2[%111] : memref<32xf32, #tpu.memory_space<smem>>
    %c1_i32_54 = arith.constant 1 : i32
    %113 = arith.addi %89, %c1_i32_54 : i32
    %114 = arith.index_cast %113 : i32 to index
    %115 = memref.load %arg3[%114] : memref<32xf32, #tpu.memory_space<smem>>
    %116 = vector.broadcast %112 : f32 to vector<1x1xf32>
    %117 = arith.mulf %116, %86 : vector<1x1xf32>
    %118 = arith.mulf %77, %117 : vector<1x1xf32>
    %119 = vector.broadcast %115 : f32 to vector<1x1xf32>
    %120 = arith.subf %119, %118 : vector<1x1xf32>
    %c0_55 = arith.constant 0 : index
    %c1_56 = arith.constant 1 : index
    %c1_57 = arith.constant 1 : index
    %c0_58 = arith.constant 0 : index
    %121 = vector.load %arg4[%c0_55, %c1_56, %c1_57, %c0_58] : memref<1x16x2x128xf32, #tpu.memory_space<vmem>>, vector<1x1x1x128xf32>
    %122 = vector.shape_cast %121 : vector<1x1x1x128xf32> to vector<1x128xf32>
    %123 = vector.broadcast %117 : vector<1x1xf32> to vector<1x128xf32>
    %124 = arith.mulf %122, %123 : vector<1x128xf32>
    %125 = vector.broadcast %120 : vector<1x1xf32> to vector<1x128xf32>
    %126 = arith.addf %124, %125 : vector<1x128xf32>
    %c0_59 = arith.constant 0 : index
    %c1_60 = arith.constant 1 : index
    %c1_61 = arith.constant 1 : index
    %c0_62 = arith.constant 0 : index
    %127 = vector.load %arg5[%c0_59, %c1_60, %c1_61, %c0_62] : memref<1x16x2x128xf32, #tpu.memory_space<vmem>>, vector<1x1x1x128xf32>
    %128 = vector.shape_cast %127 : vector<1x1x1x128xf32> to vector<1x128xf32>
    %129 = vector.shape_cast %126 : vector<1x128xf32> to vector<1x1x1x128xf32>
    tpu.vector_store %arg5[%c0_59, %c1_60, %c1_61, %c0_62], %129 {strides = array<i32>} : memref<1x16x2x128xf32, #tpu.memory_space<vmem>>, vector<1x1x1x128xf32>,
    %c0_63 = arith.constant 0 : index
    %c2 = arith.constant 2 : index
    %c0_64 = arith.constant 0 : index
    %c0_65 = arith.constant 0 : index
    %130 = vector.load %arg4[%c0_63, %c2, %c0_64, %c0_65] : memref<1x16x2x128xf32, #tpu.memory_space<vmem>>, vector<1x1x2x128xf32>
    %131 = vector.shape_cast %130 : vector<1x1x2x128xf32> to vector<2x128xf32>
    %cst_66 = arith.constant dense<0.000000e+00> : vector<128xf32>
    %132 = vector.multi_reduction <add>, %131, %cst_66 [0] : vector<2x128xf32> to vector<128xf32>
    %133 = vector.shape_cast %132 : vector<128xf32> to vector<1x128xf32>
    %134 = arith.mulf %131, %131 : vector<2x128xf32>
    %cst_67 = arith.constant dense<0.000000e+00> : vector<128xf32>
    %135 = vector.multi_reduction <add>, %134, %cst_67 [0] : vector<2x128xf32> to vector<128xf32>
    %136 = vector.shape_cast %135 : vector<128xf32> to vector<1x128xf32>
    %cst_68 = arith.constant dense<0.000000e+00> : vector<1xf32>
    %137 = vector.multi_reduction <add>, %133, %cst_68 [1] : vector<1x128xf32> to vector<1xf32>
    %138 = vector.shape_cast %137 : vector<1xf32> to vector<1x1xf32>
    %cst_69 = arith.constant dense<0.000000e+00> : vector<1xf32>
    %139 = vector.multi_reduction <add>, %136, %cst_69 [1] : vector<1x128xf32> to vector<1xf32>
    %140 = vector.shape_cast %139 : vector<1xf32> to vector<1x1xf32>
    %cst_70 = arith.constant 3.906250e-03 : f32
    %141 = vector.broadcast %cst_70 : f32 to vector<1x1xf32>
    %142 = arith.mulf %138, %141 : vector<1x1xf32>
    %143 = arith.mulf %138, %142 : vector<1x1xf32>
    %144 = arith.subf %140, %143 : vector<1x1xf32>
    %cst_71 = arith.constant 0.000000e+00 : f32
    %145 = vector.broadcast %cst_71 : f32 to vector<1x1xf32>
    %146 = arith.maximumf %144, %145 : vector<1x1xf32>
    %cst_72 = arith.constant 0.00392156886 : f32
    %147 = vector.broadcast %cst_72 : f32 to vector<1x1xf32>
    %148 = arith.mulf %146, %147 : vector<1x1xf32>
    %cst_73 = arith.constant 9.99999974E-6 : f32
    %149 = vector.broadcast %cst_73 : f32 to vector<1x1xf32>
    %150 = arith.addf %148, %149 : vector<1x1xf32>
    %151 = math.rsqrt %150 : vector<1x1xf32>
    %c16_i32_74 = arith.constant 16 : i32
    %152 = arith.muli %arg0, %c16_i32_74 : i32
    %c2_i32_75 = arith.constant 2 : i32
    %153 = arith.addi %152, %c2_i32_75 : i32
    %c2_i32_76 = arith.constant 2 : i32
    %154 = arith.muli %153, %c2_i32_76 : i32
    %c0_i32_77 = arith.constant 0 : i32
    %155 = arith.addi %154, %c0_i32_77 : i32
    %156 = arith.index_cast %155 : i32 to index
    %157 = memref.load %arg2[%156] : memref<32xf32, #tpu.memory_space<smem>>
    %c0_i32_78 = arith.constant 0 : i32
    %158 = arith.addi %154, %c0_i32_78 : i32
    %159 = arith.index_cast %158 : i32 to index
    %160 = memref.load %arg3[%159] : memref<32xf32, #tpu.memory_space<smem>>
    %161 = vector.broadcast %157 : f32 to vector<1x1xf32>
    %162 = arith.mulf %161, %151 : vector<1x1xf32>
    %163 = arith.mulf %142, %162 : vector<1x1xf32>
    %164 = vector.broadcast %160 : f32 to vector<1x1xf32>
    %165 = arith.subf %164, %163 : vector<1x1xf32>
    %c0_79 = arith.constant 0 : index
    %c2_80 = arith.constant 2 : index
    %c0_81 = arith.constant 0 : index
    %c0_82 = arith.constant 0 : index
    %166 = vector.load %arg4[%c0_79, %c2_80, %c0_81, %c0_82] : memref<1x16x2x128xf32, #tpu.memory_space<vmem>>, vector<1x1x1x128xf32>
    %167 = vector.shape_cast %166 : vector<1x1x1x128xf32> to vector<1x128xf32>
    %168 = vector.broadcast %162 : vector<1x1xf32> to vector<1x128xf32>
    %169 = arith.mulf %167, %168 : vector<1x128xf32>
    %170 = vector.broadcast %165 : vector<1x1xf32> to vector<1x128xf32>
    %171 = arith.addf %169, %170 : vector<1x128xf32>
    %c0_83 = arith.constant 0 : index
    %c2_84 = arith.constant 2 : index
    %c0_85 = arith.constant 0 : index
    %c0_86 = arith.constant 0 : index
    %172 = vector.load %arg5[%c0_83, %c2_84, %c0_85, %c0_86] : memref<1x16x2x128xf32, #tpu.memory_space<vmem>>, vector<1x1x1x128xf32>
    %173 = vector.shape_cast %172 : vector<1x1x1x128xf32> to vector<1x128xf32>
    %174 = vector.shape_cast %171 : vector<1x128xf32> to vector<1x1x1x128xf32>
    tpu.vector_store %arg5[%c0_83, %c2_84, %c0_85, %c0_86], %174 {strides = array<i32>} : memref<1x16x2x128xf32, #tpu.memory_space<vmem>>, vector<1x1x1x128xf32>,
    %c1_i32_87 = arith.constant 1 : i32
    %175 = arith.addi %154, %c1_i32_87 : i32
    %176 = arith.index_cast %175 : i32 to index
    %177 = memref.load %arg2[%176] : memref<32xf32, #tpu.memory_space<smem>>
    %c1_i32_88 = arith.constant 1 : i32
    %178 = arith.addi %154, %c1_i32_88 : i32
    %179 = arith.index_cast %178 : i32 to index
    %180 = memref.load %arg3[%179] : memref<32xf32, #tpu.memory_space<smem>>
    %181 = vector.broadcast %177 : f32 to vector<1x1xf32>
    %182 = arith.mulf %181, %151 : vector<1x1xf32>
    %183 = arith.mulf %142, %182 : vector<1x1xf32>
    %184 = vector.broadcast %180 : f32 to vector<1x1xf32>
    %185 = arith.subf %184, %183 : vector<1x1xf32>
    %c0_89 = arith.constant 0 : index
    %c2_90 = arith.constant 2 : index
    %c1_91 = arith.constant 1 : index
    %c0_92 = arith.constant 0 : index
    %186 = vector.load %arg4[%c0_89, %c2_90, %c1_91, %c0_92] : memref<1x16x2x128xf32, #tpu.memory_space<vmem>>, vector<1x1x1x128xf32>
    %187 = vector.shape_cast %186 : vector<1x1x1x128xf32> to vector<1x128xf32>
    %188 = vector.broadcast %182 : vector<1x1xf32> to vector<1x128xf32>
    %189 = arith.mulf %187, %188 : vector<1x128xf32>
    %190 = vector.broadcast %185 : vector<1x1xf32> to vector<1x128xf32>
    %191 = arith.addf %189, %190 : vector<1x128xf32>
    %c0_93 = arith.constant 0 : index
    %c2_94 = arith.constant 2 : index
    %c1_95 = arith.constant 1 : index
    %c0_96 = arith.constant 0 : index
    %192 = vector.load %arg5[%c0_93, %c2_94, %c1_95, %c0_96] : memref<1x16x2x128xf32, #tpu.memory_space<vmem>>, vector<1x1x1x128xf32>
    %193 = vector.shape_cast %192 : vector<1x1x1x128xf32> to vector<1x128xf32>
    %194 = vector.shape_cast %191 : vector<1x128xf32> to vector<1x1x1x128xf32>
    tpu.vector_store %arg5[%c0_93, %c2_94, %c1_95, %c0_96], %194 {strides = array<i32>} : memref<1x16x2x128xf32, #tpu.memory_space<vmem>>, vector<1x1x1x128xf32>,
    %c0_97 = arith.constant 0 : index
    %c3 = arith.constant 3 : index
    %c0_98 = arith.constant 0 : index
    %c0_99 = arith.constant 0 : index
    %195 = vector.load %arg4[%c0_97, %c3, %c0_98, %c0_99] : memref<1x16x2x128xf32, #tpu.memory_space<vmem>>, vector<1x1x2x128xf32>
    %196 = vector.shape_cast %195 : vector<1x1x2x128xf32> to vector<2x128xf32>
    %cst_100 = arith.constant dense<0.000000e+00> : vector<128xf32>
    %197 = vector.multi_reduction <add>, %196, %cst_100 [0] : vector<2x128xf32> to vector<128xf32>
    %198 = vector.shape_cast %197 : vector<128xf32> to vector<1x128xf32>
    %199 = arith.mulf %196, %196 : vector<2x128xf32>
    %cst_101 = arith.constant dense<0.000000e+00> : vector<128xf32>
    %200 = vector.multi_reduction <add>, %199, %cst_101 [0] : vector<2x128xf32> to vector<128xf32>
    %201 = vector.shape_cast %200 : vector<128xf32> to vector<1x128xf32>
    %cst_102 = arith.constant dense<0.000000e+00> : vector<1xf32>
    %202 = vector.multi_reduction <add>, %198, %cst_102 [1] : vector<1x128xf32> to vector<1xf32>
    %203 = vector.shape_cast %202 : vector<1xf32> to vector<1x1xf32>
    %cst_103 = arith.constant dense<0.000000e+00> : vector<1xf32>
    %204 = vector.multi_reduction <add>, %201, %cst_103 [1] : vector<1x128xf32> to vector<1xf32>
    %205 = vector.shape_cast %204 : vector<1xf32> to vector<1x1xf32>
    %cst_104 = arith.constant 3.906250e-03 : f32
    %206 = vector.broadcast %cst_104 : f32 to vector<1x1xf32>
    %207 = arith.mulf %203, %206 : vector<1x1xf32>
    %208 = arith.mulf %203, %207 : vector<1x1xf32>
    %209 = arith.subf %205, %208 : vector<1x1xf32>
    %cst_105 = arith.constant 0.000000e+00 : f32
    %210 = vector.broadcast %cst_105 : f32 to vector<1x1xf32>
    %211 = arith.maximumf %209, %210 : vector<1x1xf32>
    %cst_106 = arith.constant 0.00392156886 : f32
    %212 = vector.broadcast %cst_106 : f32 to vector<1x1xf32>
    %213 = arith.mulf %211, %212 : vector<1x1xf32>
    %cst_107 = arith.constant 9.99999974E-6 : f32
    %214 = vector.broadcast %cst_107 : f32 to vector<1x1xf32>
    %215 = arith.addf %213, %214 : vector<1x1xf32>
    %216 = math.rsqrt %215 : vector<1x1xf32>
    %c16_i32_108 = arith.constant 16 : i32
    %217 = arith.muli %arg0, %c16_i32_108 : i32
    %c3_i32 = arith.constant 3 : i32
    %218 = arith.addi %217, %c3_i32 : i32
    %c2_i32_109 = arith.constant 2 : i32
    %219 = arith.muli %218, %c2_i32_109 : i32
    %c0_i32_110 = arith.constant 0 : i32
    %220 = arith.addi %219, %c0_i32_110 : i32
    %221 = arith.index_cast %220 : i32 to index
    %222 = memref.load %arg2[%221] : memref<32xf32, #tpu.memory_space<smem>>
    %c0_i32_111 = arith.constant 0 : i32
    %223 = arith.addi %219, %c0_i32_111 : i32
    %224 = arith.index_cast %223 : i32 to index
    %225 = memref.load %arg3[%224] : memref<32xf32, #tpu.memory_space<smem>>
    %226 = vector.broadcast %222 : f32 to vector<1x1xf32>
    %227 = arith.mulf %226, %216 : vector<1x1xf32>
    %228 = arith.mulf %207, %227 : vector<1x1xf32>
    %229 = vector.broadcast %225 : f32 to vector<1x1xf32>
    %230 = arith.subf %229, %228 : vector<1x1xf32>
    %c0_112 = arith.constant 0 : index
    %c3_113 = arith.constant 3 : index
    %c0_114 = arith.constant 0 : index
    %c0_115 = arith.constant 0 : index
    %231 = vector.load %arg4[%c0_112, %c3_113, %c0_114, %c0_115] : memref<1x16x2x128xf32, #tpu.memory_space<vmem>>, vector<1x1x1x128xf32>
    %232 = vector.shape_cast %231 : vector<1x1x1x128xf32> to vector<1x128xf32>
    %233 = vector.broadcast %227 : vector<1x1xf32> to vector<1x128xf32>
    %234 = arith.mulf %232, %233 : vector<1x128xf32>
    %235 = vector.broadcast %230 : vector<1x1xf32> to vector<1x128xf32>
    %236 = arith.addf %234, %235 : vector<1x128xf32>
    %c0_116 = arith.constant 0 : index
    %c3_117 = arith.constant 3 : index
    %c0_118 = arith.constant 0 : index
    %c0_119 = arith.constant 0 : index
    %237 = vector.load %arg5[%c0_116, %c3_117, %c0_118, %c0_119] : memref<1x16x2x128xf32, #tpu.memory_space<vmem>>, vector<1x1x1x128xf32>
    %238 = vector.shape_cast %237 : vector<1x1x1x128xf32> to vector<1x128xf32>
    %239 = vector.shape_cast %236 : vector<1x128xf32> to vector<1x1x1x128xf32>
    tpu.vector_store %arg5[%c0_116, %c3_117, %c0_118, %c0_119], %239 {strides = array<i32>} : memref<1x16x2x128xf32, #tpu.memory_space<vmem>>, vector<1x1x1x128xf32>,
    %c1_i32_120 = arith.constant 1 : i32
    %240 = arith.addi %219, %c1_i32_120 : i32
    %241 = arith.index_cast %240 : i32 to index
    %242 = memref.load %arg2[%241] : memref<32xf32, #tpu.memory_space<smem>>
    %c1_i32_121 = arith.constant 1 : i32
    %243 = arith.addi %219, %c1_i32_121 : i32
    %244 = arith.index_cast %243 : i32 to index
    %245 = memref.load %arg3[%244] : memref<32xf32, #tpu.memory_space<smem>>
    %246 = vector.broadcast %242 : f32 to vector<1x1xf32>
    %247 = arith.mulf %246, %216 : vector<1x1xf32>
    %248 = arith.mulf %207, %247 : vector<1x1xf32>
    %249 = vector.broadcast %245 : f32 to vector<1x1xf32>
    %250 = arith.subf %249, %248 : vector<1x1xf32>
    %c0_122 = arith.constant 0 : index
    %c3_123 = arith.constant 3 : index
    %c1_124 = arith.constant 1 : index
    %c0_125 = arith.constant 0 : index
    %251 = vector.load %arg4[%c0_122, %c3_123, %c1_124, %c0_125] : memref<1x16x2x128xf32, #tpu.memory_space<vmem>>, vector<1x1x1x128xf32>
    %252 = vector.shape_cast %251 : vector<1x1x1x128xf32> to vector<1x128xf32>
    %253 = vector.broadcast %247 : vector<1x1xf32> to vector<1x128xf32>
    %254 = arith.mulf %252, %253 : vector<1x128xf32>
    %255 = vector.broadcast %250 : vector<1x1xf32> to vector<1x128xf32>
    %256 = arith.addf %254, %255 : vector<1x128xf32>
    %c0_126 = arith.constant 0 : index
    %c3_127 = arith.constant 3 : index
    %c1_128 = arith.constant 1 : index
    %c0_129 = arith.constant 0 : index
    %257 = vector.load %arg5[%c0_126, %c3_127, %c1_128, %c0_129] : memref<1x16x2x128xf32, #tpu.memory_space<vmem>>, vector<1x1x1x128xf32>
    %258 = vector.shape_cast %257 : vector<1x1x1x128xf32> to vector<1x128xf32>
    %259 = vector.shape_cast %256 : vector<1x128xf32> to vector<1x1x1x128xf32>
    tpu.vector_store %arg5[%c0_126, %c3_127, %c1_128, %c0_129], %259 {strides = array<i32>} : memref<1x16x2x128xf32, #tpu.memory_space<vmem>>, vector<1x1x1x128xf32>,
    %c0_130 = arith.constant 0 : index
    %c4 = arith.constant 4 : index
    %c0_131 = arith.constant 0 : index
    %c0_132 = arith.constant 0 : index
    %260 = vector.load %arg4[%c0_130, %c4, %c0_131, %c0_132] : memref<1x16x2x128xf32, #tpu.memory_space<vmem>>, vector<1x1x2x128xf32>
    %261 = vector.shape_cast %260 : vector<1x1x2x128xf32> to vector<2x128xf32>
    %cst_133 = arith.constant dense<0.000000e+00> : vector<128xf32>
    %262 = vector.multi_reduction <add>, %261, %cst_133 [0] : vector<2x128xf32> to vector<128xf32>
    %263 = vector.shape_cast %262 : vector<128xf32> to vector<1x128xf32>
    %264 = arith.mulf %261, %261 : vector<2x128xf32>
    %cst_134 = arith.constant dense<0.000000e+00> : vector<128xf32>
    %265 = vector.multi_reduction <add>, %264, %cst_134 [0] : vector<2x128xf32> to vector<128xf32>
    %266 = vector.shape_cast %265 : vector<128xf32> to vector<1x128xf32>
    %cst_135 = arith.constant dense<0.000000e+00> : vector<1xf32>
    %267 = vector.multi_reduction <add>, %263, %cst_135 [1] : vector<1x128xf32> to vector<1xf32>
    %268 = vector.shape_cast %267 : vector<1xf32> to vector<1x1xf32>
    %cst_136 = arith.constant dense<0.000000e+00> : vector<1xf32>
    %269 = vector.multi_reduction <add>, %266, %cst_136 [1] : vector<1x128xf32> to vector<1xf32>
    %270 = vector.shape_cast %269 : vector<1xf32> to vector<1x1xf32>
    %cst_137 = arith.constant 3.906250e-03 : f32
    %271 = vector.broadcast %cst_137 : f32 to vector<1x1xf32>
    %272 = arith.mulf %268, %271 : vector<1x1xf32>
    %273 = arith.mulf %268, %272 : vector<1x1xf32>
    %274 = arith.subf %270, %273 : vector<1x1xf32>
    %cst_138 = arith.constant 0.000000e+00 : f32
    %275 = vector.broadcast %cst_138 : f32 to vector<1x1xf32>
    %276 = arith.maximumf %274, %275 : vector<1x1xf32>
    %cst_139 = arith.constant 0.00392156886 : f32
    %277 = vector.broadcast %cst_139 : f32 to vector<1x1xf32>
    %278 = arith.mulf %276, %277 : vector<1x1xf32>
    %cst_140 = arith.constant 9.99999974E-6 : f32
    %279 = vector.broadcast %cst_140 : f32 to vector<1x1xf32>
    %280 = arith.addf %278, %279 : vector<1x1xf32>
    %281 = math.rsqrt %280 : vector<1x1xf32>
    %c16_i32_141 = arith.constant 16 : i32
    %282 = arith.muli %arg0, %c16_i32_141 : i32
    %c4_i32 = arith.constant 4 : i32
    %283 = arith.addi %282, %c4_i32 : i32
    %c2_i32_142 = arith.constant 2 : i32
    %284 = arith.muli %283, %c2_i32_142 : i32
    %c0_i32_143 = arith.constant 0 : i32
    %285 = arith.addi %284, %c0_i32_143 : i32
    %286 = arith.index_cast %285 : i32 to index
    %287 = memref.load %arg2[%286] : memref<32xf32, #tpu.memory_space<smem>>
    %c0_i32_144 = arith.constant 0 : i32
    %288 = arith.addi %284, %c0_i32_144 : i32
    %289 = arith.index_cast %288 : i32 to index
    %290 = memref.load %arg3[%289] : memref<32xf32, #tpu.memory_space<smem>>
    %291 = vector.broadcast %287 : f32 to vector<1x1xf32>
    %292 = arith.mulf %291, %281 : vector<1x1xf32>
    %293 = arith.mulf %272, %292 : vector<1x1xf32>
    %294 = vector.broadcast %290 : f32 to vector<1x1xf32>
    %295 = arith.subf %294, %293 : vector<1x1xf32>
    %c0_145 = arith.constant 0 : index
    %c4_146 = arith.constant 4 : index
    %c0_147 = arith.constant 0 : index
    %c0_148 = arith.constant 0 : index
    %296 = vector.load %arg4[%c0_145, %c4_146, %c0_147, %c0_148] : memref<1x16x2x128xf32, #tpu.memory_space<vmem>>, vector<1x1x1x128xf32>
    %297 = vector.shape_cast %296 : vector<1x1x1x128xf32> to vector<1x128xf32>
    %298 = vector.broadcast %292 : vector<1x1xf32> to vector<1x128xf32>
    %299 = arith.mulf %297, %298 : vector<1x128xf32>
    %300 = vector.broadcast %295 : vector<1x1xf32> to vector<1x128xf32>
    %301 = arith.addf %299, %300 : vector<1x128xf32>
    %c0_149 = arith.constant 0 : index
    %c4_150 = arith.constant 4 : index
    %c0_151 = arith.constant 0 : index
    %c0_152 = arith.constant 0 : index
    %302 = vector.load %arg5[%c0_149, %c4_150, %c0_151, %c0_152] : memref<1x16x2x128xf32, #tpu.memory_space<vmem>>, vector<1x1x1x128xf32>
    %303 = vector.shape_cast %302 : vector<1x1x1x128xf32> to vector<1x128xf32>
    %304 = vector.shape_cast %301 : vector<1x128xf32> to vector<1x1x1x128xf32>
    tpu.vector_store %arg5[%c0_149, %c4_150, %c0_151, %c0_152], %304 {strides = array<i32>} : memref<1x16x2x128xf32, #tpu.memory_space<vmem>>, vector<1x1x1x128xf32>,
    %c1_i32_153 = arith.constant 1 : i32
    %305 = arith.addi %284, %c1_i32_153 : i32
    %306 = arith.index_cast %305 : i32 to index
    %307 = memref.load %arg2[%306] : memref<32xf32, #tpu.memory_space<smem>>
    %c1_i32_154 = arith.constant 1 : i32
    %308 = arith.addi %284, %c1_i32_154 : i32
    %309 = arith.index_cast %308 : i32 to index
    %310 = memref.load %arg3[%309] : memref<32xf32, #tpu.memory_space<smem>>
    %311 = vector.broadcast %307 : f32 to vector<1x1xf32>
    %312 = arith.mulf %311, %281 : vector<1x1xf32>
    %313 = arith.mulf %272, %312 : vector<1x1xf32>
    %314 = vector.broadcast %310 : f32 to vector<1x1xf32>
    %315 = arith.subf %314, %313 : vector<1x1xf32>
    %c0_155 = arith.constant 0 : index
    %c4_156 = arith.constant 4 : index
    %c1_157 = arith.constant 1 : index
    %c0_158 = arith.constant 0 : index
    %316 = vector.load %arg4[%c0_155, %c4_156, %c1_157, %c0_158] : memref<1x16x2x128xf32, #tpu.memory_space<vmem>>, vector<1x1x1x128xf32>
    %317 = vector.shape_cast %316 : vector<1x1x1x128xf32> to vector<1x128xf32>
    %318 = vector.broadcast %312 : vector<1x1xf32> to vector<1x128xf32>
    %319 = arith.mulf %317, %318 : vector<1x128xf32>
    %320 = vector.broadcast %315 : vector<1x1xf32> to vector<1x128xf32>
    %321 = arith.addf %319, %320 : vector<1x128xf32>
    %c0_159 = arith.constant 0 : index
    %c4_160 = arith.constant 4 : index
    %c1_161 = arith.constant 1 : index
    %c0_162 = arith.constant 0 : index
    %322 = vector.load %arg5[%c0_159, %c4_160, %c1_161, %c0_162] : memref<1x16x2x128xf32, #tpu.memory_space<vmem>>, vector<1x1x1x128xf32>
    %323 = vector.shape_cast %322 : vector<1x1x1x128xf32> to vector<1x128xf32>
    %324 = vector.shape_cast %321 : vector<1x128xf32> to vector<1x1x1x128xf32>
    tpu.vector_store %arg5[%c0_159, %c4_160, %c1_161, %c0_162], %324 {strides = array<i32>} : memref<1x16x2x128xf32, #tpu.memory_space<vmem>>, vector<1x1x1x128xf32>,
    %c0_163 = arith.constant 0 : index
    %c5 = arith.constant 5 : index
    %c0_164 = arith.constant 0 : index
    %c0_165 = arith.constant 0 : index
    %325 = vector.load %arg4[%c0_163, %c5, %c0_164, %c0_165] : memref<1x16x2x128xf32, #tpu.memory_space<vmem>>, vector<1x1x2x128xf32>
    %326 = vector.shape_cast %325 : vector<1x1x2x128xf32> to vector<2x128xf32>
    %cst_166 = arith.constant dense<0.000000e+00> : vector<128xf32>
    %327 = vector.multi_reduction <add>, %326, %cst_166 [0] : vector<2x128xf32> to vector<128xf32>
    %328 = vector.shape_cast %327 : vector<128xf32> to vector<1x128xf32>
    %329 = arith.mulf %326, %326 : vector<2x128xf32>
    %cst_167 = arith.constant dense<0.000000e+00> : vector<128xf32>
    %330 = vector.multi_reduction <add>, %329, %cst_167 [0] : vector<2x128xf32> to vector<128xf32>
    %331 = vector.shape_cast %330 : vector<128xf32> to vector<1x128xf32>
    %cst_168 = arith.constant dense<0.000000e+00> : vector<1xf32>
    %332 = vector.multi_reduction <add>, %328, %cst_168 [1] : vector<1x128xf32> to vector<1xf32>
    %333 = vector.shape_cast %332 : vector<1xf32> to vector<1x1xf32>
    %cst_169 = arith.constant dense<0.000000e+00> : vector<1xf32>
    %334 = vector.multi_reduction <add>, %331, %cst_169 [1] : vector<1x128xf32> to vector<1xf32>
    %335 = vector.shape_cast %334 : vector<1xf32> to vector<1x1xf32>
    %cst_170 = arith.constant 3.906250e-03 : f32
    %336 = vector.broadcast %cst_170 : f32 to vector<1x1xf32>
    %337 = arith.mulf %333, %336 : vector<1x1xf32>
    %338 = arith.mulf %333, %337 : vector<1x1xf32>
    %339 = arith.subf %335, %338 : vector<1x1xf32>
    %cst_171 = arith.constant 0.000000e+00 : f32
    %340 = vector.broadcast %cst_171 : f32 to vector<1x1xf32>
    %341 = arith.maximumf %339, %340 : vector<1x1xf32>
    %cst_172 = arith.constant 0.00392156886 : f32
    %342 = vector.broadcast %cst_172 : f32 to vector<1x1xf32>
    %343 = arith.mulf %341, %342 : vector<1x1xf32>
    %cst_173 = arith.constant 9.99999974E-6 : f32
    %344 = vector.broadcast %cst_173 : f32 to vector<1x1xf32>
    %345 = arith.addf %343, %344 : vector<1x1xf32>
    %346 = math.rsqrt %345 : vector<1x1xf32>
    %c16_i32_174 = arith.constant 16 : i32
    %347 = arith.muli %arg0, %c16_i32_174 : i32
    %c5_i32 = arith.constant 5 : i32
    %348 = arith.addi %347, %c5_i32 : i32
    %c2_i32_175 = arith.constant 2 : i32
    %349 = arith.muli %348, %c2_i32_175 : i32
    %c0_i32_176 = arith.constant 0 : i32
    %350 = arith.addi %349, %c0_i32_176 : i32
    %351 = arith.index_cast %350 : i32 to index
    %352 = memref.load %arg2[%351] : memref<32xf32, #tpu.memory_space<smem>>
    %c0_i32_177 = arith.constant 0 : i32
    %353 = arith.addi %349, %c0_i32_177 : i32
    %354 = arith.index_cast %353 : i32 to index
    %355 = memref.load %arg3[%354] : memref<32xf32, #tpu.memory_space<smem>>
    %356 = vector.broadcast %352 : f32 to vector<1x1xf32>
    %357 = arith.mulf %356, %346 : vector<1x1xf32>
    %358 = arith.mulf %337, %357 : vector<1x1xf32>
    %359 = vector.broadcast %355 : f32 to vector<1x1xf32>
    %360 = arith.subf %359, %358 : vector<1x1xf32>
    %c0_178 = arith.constant 0 : index
    %c5_179 = arith.constant 5 : index
    %c0_180 = arith.constant 0 : index
    %c0_181 = arith.constant 0 : index
    %361 = vector.load %arg4[%c0_178, %c5_179, %c0_180, %c0_181] : memref<1x16x2x128xf32, #tpu.memory_space<vmem>>, vector<1x1x1x128xf32>
    %362 = vector.shape_cast %361 : vector<1x1x1x128xf32> to vector<1x128xf32>
    %363 = vector.broadcast %357 : vector<1x1xf32> to vector<1x128xf32>
    %364 = arith.mulf %362, %363 : vector<1x128xf32>
    %365 = vector.broadcast %360 : vector<1x1xf32> to vector<1x128xf32>
    %366 = arith.addf %364, %365 : vector<1x128xf32>
    %c0_182 = arith.constant 0 : index
    %c5_183 = arith.constant 5 : index
    %c0_184 = arith.constant 0 : index
    %c0_185 = arith.constant 0 : index
    %367 = vector.load %arg5[%c0_182, %c5_183, %c0_184, %c0_185] : memref<1x16x2x128xf32, #tpu.memory_space<vmem>>, vector<1x1x1x128xf32>
    %368 = vector.shape_cast %367 : vector<1x1x1x128xf32> to vector<1x128xf32>
    %369 = vector.shape_cast %366 : vector<1x128xf32> to vector<1x1x1x128xf32>
    tpu.vector_store %arg5[%c0_182, %c5_183, %c0_184, %c0_185], %369 {strides = array<i32>} : memref<1x16x2x128xf32, #tpu.memory_space<vmem>>, vector<1x1x1x128xf32>,
    %c1_i32_186 = arith.constant 1 : i32
    %370 = arith.addi %349, %c1_i32_186 : i32
    %371 = arith.index_cast %370 : i32 to index
    %372 = memref.load %arg2[%371] : memref<32xf32, #tpu.memory_space<smem>>
    %c1_i32_187 = arith.constant 1 : i32
    %373 = arith.addi %349, %c1_i32_187 : i32
    %374 = arith.index_cast %373 : i32 to index
    %375 = memref.load %arg3[%374] : memref<32xf32, #tpu.memory_space<smem>>
    %376 = vector.broadcast %372 : f32 to vector<1x1xf32>
    %377 = arith.mulf %376, %346 : vector<1x1xf32>
    %378 = arith.mulf %337, %377 : vector<1x1xf32>
    %379 = vector.broadcast %375 : f32 to vector<1x1xf32>
    %380 = arith.subf %379, %378 : vector<1x1xf32>
    %c0_188 = arith.constant 0 : index
    %c5_189 = arith.constant 5 : index
    %c1_190 = arith.constant 1 : index
    %c0_191 = arith.constant 0 : index
    %381 = vector.load %arg4[%c0_188, %c5_189, %c1_190, %c0_191] : memref<1x16x2x128xf32, #tpu.memory_space<vmem>>, vector<1x1x1x128xf32>
    %382 = vector.shape_cast %381 : vector<1x1x1x128xf32> to vector<1x128xf32>
    %383 = vector.broadcast %377 : vector<1x1xf32> to vector<1x128xf32>
    %384 = arith.mulf %382, %383 : vector<1x128xf32>
    %385 = vector.broadcast %380 : vector<1x1xf32> to vector<1x128xf32>
    %386 = arith.addf %384, %385 : vector<1x128xf32>
    %c0_192 = arith.constant 0 : index
    %c5_193 = arith.constant 5 : index
    %c1_194 = arith.constant 1 : index
    %c0_195 = arith.constant 0 : index
    %387 = vector.load %arg5[%c0_192, %c5_193, %c1_194, %c0_195] : memref<1x16x2x128xf32, #tpu.memory_space<vmem>>, vector<1x1x1x128xf32>
    %388 = vector.shape_cast %387 : vector<1x1x1x128xf32> to vector<1x128xf32>
    %389 = vector.shape_cast %386 : vector<1x128xf32> to vector<1x1x1x128xf32>
    tpu.vector_store %arg5[%c0_192, %c5_193, %c1_194, %c0_195], %389 {strides = array<i32>} : memref<1x16x2x128xf32, #tpu.memory_space<vmem>>, vector<1x1x1x128xf32>,
    %c0_196 = arith.constant 0 : index
    %c6 = arith.constant 6 : index
    %c0_197 = arith.constant 0 : index
    %c0_198 = arith.constant 0 : index
    %390 = vector.load %arg4[%c0_196, %c6, %c0_197, %c0_198] : memref<1x16x2x128xf32, #tpu.memory_space<vmem>>, vector<1x1x2x128xf32>
    %391 = vector.shape_cast %390 : vector<1x1x2x128xf32> to vector<2x128xf32>
    %cst_199 = arith.constant dense<0.000000e+00> : vector<128xf32>
    %392 = vector.multi_reduction <add>, %391, %cst_199 [0] : vector<2x128xf32> to vector<128xf32>
    %393 = vector.shape_cast %392 : vector<128xf32> to vector<1x128xf32>
    %394 = arith.mulf %391, %391 : vector<2x128xf32>
    %cst_200 = arith.constant dense<0.000000e+00> : vector<128xf32>
    %395 = vector.multi_reduction <add>, %394, %cst_200 [0] : vector<2x128xf32> to vector<128xf32>
    %396 = vector.shape_cast %395 : vector<128xf32> to vector<1x128xf32>
    %cst_201 = arith.constant dense<0.000000e+00> : vector<1xf32>
    %397 = vector.multi_reduction <add>, %393, %cst_201 [1] : vector<1x128xf32> to vector<1xf32>
    %398 = vector.shape_cast %397 : vector<1xf32> to vector<1x1xf32>
    %cst_202 = arith.constant dense<0.000000e+00> : vector<1xf32>
    %399 = vector.multi_reduction <add>, %396, %cst_202 [1] : vector<1x128xf32> to vector<1xf32>
    %400 = vector.shape_cast %399 : vector<1xf32> to vector<1x1xf32>
    %cst_203 = arith.constant 3.906250e-03 : f32
    %401 = vector.broadcast %cst_203 : f32 to vector<1x1xf32>
    %402 = arith.mulf %398, %401 : vector<1x1xf32>
    %403 = arith.mulf %398, %402 : vector<1x1xf32>
    %404 = arith.subf %400, %403 : vector<1x1xf32>
    %cst_204 = arith.constant 0.000000e+00 : f32
    %405 = vector.broadcast %cst_204 : f32 to vector<1x1xf32>
    %406 = arith.maximumf %404, %405 : vector<1x1xf32>
    %cst_205 = arith.constant 0.00392156886 : f32
    %407 = vector.broadcast %cst_205 : f32 to vector<1x1xf32>
    %408 = arith.mulf %406, %407 : vector<1x1xf32>
    %cst_206 = arith.constant 9.99999974E-6 : f32
    %409 = vector.broadcast %cst_206 : f32 to vector<1x1xf32>
    %410 = arith.addf %408, %409 : vector<1x1xf32>
    %411 = math.rsqrt %410 : vector<1x1xf32>
    %c16_i32_207 = arith.constant 16 : i32
    %412 = arith.muli %arg0, %c16_i32_207 : i32
    %c6_i32 = arith.constant 6 : i32
    %413 = arith.addi %412, %c6_i32 : i32
    %c2_i32_208 = arith.constant 2 : i32
    %414 = arith.muli %413, %c2_i32_208 : i32
    %c0_i32_209 = arith.constant 0 : i32
    %415 = arith.addi %414, %c0_i32_209 : i32
    %416 = arith.index_cast %415 : i32 to index
    %417 = memref.load %arg2[%416] : memref<32xf32, #tpu.memory_space<smem>>
    %c0_i32_210 = arith.constant 0 : i32
    %418 = arith.addi %414, %c0_i32_210 : i32
    %419 = arith.index_cast %418 : i32 to index
    %420 = memref.load %arg3[%419] : memref<32xf32, #tpu.memory_space<smem>>
    %421 = vector.broadcast %417 : f32 to vector<1x1xf32>
    %422 = arith.mulf %421, %411 : vector<1x1xf32>
    %423 = arith.mulf %402, %422 : vector<1x1xf32>
    %424 = vector.broadcast %420 : f32 to vector<1x1xf32>
    %425 = arith.subf %424, %423 : vector<1x1xf32>
    %c0_211 = arith.constant 0 : index
    %c6_212 = arith.constant 6 : index
    %c0_213 = arith.constant 0 : index
    %c0_214 = arith.constant 0 : index
    %426 = vector.load %arg4[%c0_211, %c6_212, %c0_213, %c0_214] : memref<1x16x2x128xf32, #tpu.memory_space<vmem>>, vector<1x1x1x128xf32>
    %427 = vector.shape_cast %426 : vector<1x1x1x128xf32> to vector<1x128xf32>
    %428 = vector.broadcast %422 : vector<1x1xf32> to vector<1x128xf32>
    %429 = arith.mulf %427, %428 : vector<1x128xf32>
    %430 = vector.broadcast %425 : vector<1x1xf32> to vector<1x128xf32>
    %431 = arith.addf %429, %430 : vector<1x128xf32>
    %c0_215 = arith.constant 0 : index
    %c6_216 = arith.constant 6 : index
    %c0_217 = arith.constant 0 : index
    %c0_218 = arith.constant 0 : index
    %432 = vector.load %arg5[%c0_215, %c6_216, %c0_217, %c0_218] : memref<1x16x2x128xf32, #tpu.memory_space<vmem>>, vector<1x1x1x128xf32>
    %433 = vector.shape_cast %432 : vector<1x1x1x128xf32> to vector<1x128xf32>
    %434 = vector.shape_cast %431 : vector<1x128xf32> to vector<1x1x1x128xf32>
    tpu.vector_store %arg5[%c0_215, %c6_216, %c0_217, %c0_218], %434 {strides = array<i32>} : memref<1x16x2x128xf32, #tpu.memory_space<vmem>>, vector<1x1x1x128xf32>,
    %c1_i32_219 = arith.constant 1 : i32
    %435 = arith.addi %414, %c1_i32_219 : i32
    %436 = arith.index_cast %435 : i32 to index
    %437 = memref.load %arg2[%436] : memref<32xf32, #tpu.memory_space<smem>>
    %c1_i32_220 = arith.constant 1 : i32
    %438 = arith.addi %414, %c1_i32_220 : i32
    %439 = arith.index_cast %438 : i32 to index
    %440 = memref.load %arg3[%439] : memref<32xf32, #tpu.memory_space<smem>>
    %441 = vector.broadcast %437 : f32 to vector<1x1xf32>
    %442 = arith.mulf %441, %411 : vector<1x1xf32>
    %443 = arith.mulf %402, %442 : vector<1x1xf32>
    %444 = vector.broadcast %440 : f32 to vector<1x1xf32>
    %445 = arith.subf %444, %443 : vector<1x1xf32>
    %c0_221 = arith.constant 0 : index
    %c6_222 = arith.constant 6 : index
    %c1_223 = arith.constant 1 : index
    %c0_224 = arith.constant 0 : index
    %446 = vector.load %arg4[%c0_221, %c6_222, %c1_223, %c0_224] : memref<1x16x2x128xf32, #tpu.memory_space<vmem>>, vector<1x1x1x128xf32>
    %447 = vector.shape_cast %446 : vector<1x1x1x128xf32> to vector<1x128xf32>
    %448 = vector.broadcast %442 : vector<1x1xf32> to vector<1x128xf32>
    %449 = arith.mulf %447, %448 : vector<1x128xf32>
    %450 = vector.broadcast %445 : vector<1x1xf32> to vector<1x128xf32>
    %451 = arith.addf %449, %450 : vector<1x128xf32>
    %c0_225 = arith.constant 0 : index
    %c6_226 = arith.constant 6 : index
    %c1_227 = arith.constant 1 : index
    %c0_228 = arith.constant 0 : index
    %452 = vector.load %arg5[%c0_225, %c6_226, %c1_227, %c0_228] : memref<1x16x2x128xf32, #tpu.memory_space<vmem>>, vector<1x1x1x128xf32>
    %453 = vector.shape_cast %452 : vector<1x1x1x128xf32> to vector<1x128xf32>
    %454 = vector.shape_cast %451 : vector<1x128xf32> to vector<1x1x1x128xf32>
    tpu.vector_store %arg5[%c0_225, %c6_226, %c1_227, %c0_228], %454 {strides = array<i32>} : memref<1x16x2x128xf32, #tpu.memory_space<vmem>>, vector<1x1x1x128xf32>,
    %c0_229 = arith.constant 0 : index
    %c7 = arith.constant 7 : index
    %c0_230 = arith.constant 0 : index
    %c0_231 = arith.constant 0 : index
    %455 = vector.load %arg4[%c0_229, %c7, %c0_230, %c0_231] : memref<1x16x2x128xf32, #tpu.memory_space<vmem>>, vector<1x1x2x128xf32>
    %456 = vector.shape_cast %455 : vector<1x1x2x128xf32> to vector<2x128xf32>
    %cst_232 = arith.constant dense<0.000000e+00> : vector<128xf32>
    %457 = vector.multi_reduction <add>, %456, %cst_232 [0] : vector<2x128xf32> to vector<128xf32>
    %458 = vector.shape_cast %457 : vector<128xf32> to vector<1x128xf32>
    %459 = arith.mulf %456, %456 : vector<2x128xf32>
    %cst_233 = arith.constant dense<0.000000e+00> : vector<128xf32>
    %460 = vector.multi_reduction <add>, %459, %cst_233 [0] : vector<2x128xf32> to vector<128xf32>
    %461 = vector.shape_cast %460 : vector<128xf32> to vector<1x128xf32>
    %cst_234 = arith.constant dense<0.000000e+00> : vector<1xf32>
    %462 = vector.multi_reduction <add>, %458, %cst_234 [1] : vector<1x128xf32> to vector<1xf32>
    %463 = vector.shape_cast %462 : vector<1xf32> to vector<1x1xf32>
    %cst_235 = arith.constant dense<0.000000e+00> : vector<1xf32>
    %464 = vector.multi_reduction <add>, %461, %cst_235 [1] : vector<1x128xf32> to vector<1xf32>
    %465 = vector.shape_cast %464 : vector<1xf32> to vector<1x1xf32>
    %cst_236 = arith.constant 3.906250e-03 : f32
    %466 = vector.broadcast %cst_236 : f32 to vector<1x1xf32>
    %467 = arith.mulf %463, %466 : vector<1x1xf32>
    %468 = arith.mulf %463, %467 : vector<1x1xf32>
    %469 = arith.subf %465, %468 : vector<1x1xf32>
    %cst_237 = arith.constant 0.000000e+00 : f32
    %470 = vector.broadcast %cst_237 : f32 to vector<1x1xf32>
    %471 = arith.maximumf %469, %470 : vector<1x1xf32>
    %cst_238 = arith.constant 0.00392156886 : f32
    %472 = vector.broadcast %cst_238 : f32 to vector<1x1xf32>
    %473 = arith.mulf %471, %472 : vector<1x1xf32>
    %cst_239 = arith.constant 9.99999974E-6 : f32
    %474 = vector.broadcast %cst_239 : f32 to vector<1x1xf32>
    %475 = arith.addf %473, %474 : vector<1x1xf32>
    %476 = math.rsqrt %475 : vector<1x1xf32>
    %c16_i32_240 = arith.constant 16 : i32
    %477 = arith.muli %arg0, %c16_i32_240 : i32
    %c7_i32 = arith.constant 7 : i32
    %478 = arith.addi %477, %c7_i32 : i32
    %c2_i32_241 = arith.constant 2 : i32
    %479 = arith.muli %478, %c2_i32_241 : i32
    %c0_i32_242 = arith.constant 0 : i32
    %480 = arith.addi %479, %c0_i32_242 : i32
    %481 = arith.index_cast %480 : i32 to index
    %482 = memref.load %arg2[%481] : memref<32xf32, #tpu.memory_space<smem>>
    %c0_i32_243 = arith.constant 0 : i32
    %483 = arith.addi %479, %c0_i32_243 : i32
    %484 = arith.index_cast %483 : i32 to index
    %485 = memref.load %arg3[%484] : memref<32xf32, #tpu.memory_space<smem>>
    %486 = vector.broadcast %482 : f32 to vector<1x1xf32>
    %487 = arith.mulf %486, %476 : vector<1x1xf32>
    %488 = arith.mulf %467, %487 : vector<1x1xf32>
    %489 = vector.broadcast %485 : f32 to vector<1x1xf32>
    %490 = arith.subf %489, %488 : vector<1x1xf32>
    %c0_244 = arith.constant 0 : index
    %c7_245 = arith.constant 7 : index
    %c0_246 = arith.constant 0 : index
    %c0_247 = arith.constant 0 : index
    %491 = vector.load %arg4[%c0_244, %c7_245, %c0_246, %c0_247] : memref<1x16x2x128xf32, #tpu.memory_space<vmem>>, vector<1x1x1x128xf32>
    %492 = vector.shape_cast %491 : vector<1x1x1x128xf32> to vector<1x128xf32>
    %493 = vector.broadcast %487 : vector<1x1xf32> to vector<1x128xf32>
    %494 = arith.mulf %492, %493 : vector<1x128xf32>
    %495 = vector.broadcast %490 : vector<1x1xf32> to vector<1x128xf32>
    %496 = arith.addf %494, %495 : vector<1x128xf32>
    %c0_248 = arith.constant 0 : index
    %c7_249 = arith.constant 7 : index
    %c0_250 = arith.constant 0 : index
    %c0_251 = arith.constant 0 : index
    %497 = vector.load %arg5[%c0_248, %c7_249, %c0_250, %c0_251] : memref<1x16x2x128xf32, #tpu.memory_space<vmem>>, vector<1x1x1x128xf32>
    %498 = vector.shape_cast %497 : vector<1x1x1x128xf32> to vector<1x128xf32>
    %499 = vector.shape_cast %496 : vector<1x128xf32> to vector<1x1x1x128xf32>
    tpu.vector_store %arg5[%c0_248, %c7_249, %c0_250, %c0_251], %499 {strides = array<i32>} : memref<1x16x2x128xf32, #tpu.memory_space<vmem>>, vector<1x1x1x128xf32>,
    %c1_i32_252 = arith.constant 1 : i32
    %500 = arith.addi %479, %c1_i32_252 : i32
    %501 = arith.index_cast %500 : i32 to index
    %502 = memref.load %arg2[%501] : memref<32xf32, #tpu.memory_space<smem>>
    %c1_i32_253 = arith.constant 1 : i32
    %503 = arith.addi %479, %c1_i32_253 : i32
    %504 = arith.index_cast %503 : i32 to index
    %505 = memref.load %arg3[%504] : memref<32xf32, #tpu.memory_space<smem>>
    %506 = vector.broadcast %502 : f32 to vector<1x1xf32>
    %507 = arith.mulf %506, %476 : vector<1x1xf32>
    %508 = arith.mulf %467, %507 : vector<1x1xf32>
    %509 = vector.broadcast %505 : f32 to vector<1x1xf32>
    %510 = arith.subf %509, %508 : vector<1x1xf32>
    %c0_254 = arith.constant 0 : index
    %c7_255 = arith.constant 7 : index
    %c1_256 = arith.constant 1 : index
    %c0_257 = arith.constant 0 : index
    %511 = vector.load %arg4[%c0_254, %c7_255, %c1_256, %c0_257] : memref<1x16x2x128xf32, #tpu.memory_space<vmem>>, vector<1x1x1x128xf32>
    %512 = vector.shape_cast %511 : vector<1x1x1x128xf32> to vector<1x128xf32>
    %513 = vector.broadcast %507 : vector<1x1xf32> to vector<1x128xf32>
    %514 = arith.mulf %512, %513 : vector<1x128xf32>
    %515 = vector.broadcast %510 : vector<1x1xf32> to vector<1x128xf32>
    %516 = arith.addf %514, %515 : vector<1x128xf32>
    %c0_258 = arith.constant 0 : index
    %c7_259 = arith.constant 7 : index
    %c1_260 = arith.constant 1 : index
    %c0_261 = arith.constant 0 : index
    %517 = vector.load %arg5[%c0_258, %c7_259, %c1_260, %c0_261] : memref<1x16x2x128xf32, #tpu.memory_space<vmem>>, vector<1x1x1x128xf32>
    %518 = vector.shape_cast %517 : vector<1x1x1x128xf32> to vector<1x128xf32>
    %519 = vector.shape_cast %516 : vector<1x128xf32> to vector<1x1x1x128xf32>
    tpu.vector_store %arg5[%c0_258, %c7_259, %c1_260, %c0_261], %519 {strides = array<i32>} : memref<1x16x2x128xf32, #tpu.memory_space<vmem>>, vector<1x1x1x128xf32>,
    %c0_262 = arith.constant 0 : index
    %c8 = arith.constant 8 : index
    %c0_263 = arith.constant 0 : index
    %c0_264 = arith.constant 0 : index
    %520 = vector.load %arg4[%c0_262, %c8, %c0_263, %c0_264] : memref<1x16x2x128xf32, #tpu.memory_space<vmem>>, vector<1x1x2x128xf32>
    %521 = vector.shape_cast %520 : vector<1x1x2x128xf32> to vector<2x128xf32>
    %cst_265 = arith.constant dense<0.000000e+00> : vector<128xf32>
    %522 = vector.multi_reduction <add>, %521, %cst_265 [0] : vector<2x128xf32> to vector<128xf32>
    %523 = vector.shape_cast %522 : vector<128xf32> to vector<1x128xf32>
    %524 = arith.mulf %521, %521 : vector<2x128xf32>
    %cst_266 = arith.constant dense<0.000000e+00> : vector<128xf32>
    %525 = vector.multi_reduction <add>, %524, %cst_266 [0] : vector<2x128xf32> to vector<128xf32>
    %526 = vector.shape_cast %525 : vector<128xf32> to vector<1x128xf32>
    %cst_267 = arith.constant dense<0.000000e+00> : vector<1xf32>
    %527 = vector.multi_reduction <add>, %523, %cst_267 [1] : vector<1x128xf32> to vector<1xf32>
    %528 = vector.shape_cast %527 : vector<1xf32> to vector<1x1xf32>
    %cst_268 = arith.constant dense<0.000000e+00> : vector<1xf32>
    %529 = vector.multi_reduction <add>, %526, %cst_268 [1] : vector<1x128xf32> to vector<1xf32>
    %530 = vector.shape_cast %529 : vector<1xf32> to vector<1x1xf32>
    %cst_269 = arith.constant 3.906250e-03 : f32
    %531 = vector.broadcast %cst_269 : f32 to vector<1x1xf32>
    %532 = arith.mulf %528, %531 : vector<1x1xf32>
    %533 = arith.mulf %528, %532 : vector<1x1xf32>
    %534 = arith.subf %530, %533 : vector<1x1xf32>
    %cst_270 = arith.constant 0.000000e+00 : f32
    %535 = vector.broadcast %cst_270 : f32 to vector<1x1xf32>
    %536 = arith.maximumf %534, %535 : vector<1x1xf32>
    %cst_271 = arith.constant 0.00392156886 : f32
    %537 = vector.broadcast %cst_271 : f32 to vector<1x1xf32>
    %538 = arith.mulf %536, %537 : vector<1x1xf32>
    %cst_272 = arith.constant 9.99999974E-6 : f32
    %539 = vector.broadcast %cst_272 : f32 to vector<1x1xf32>
    %540 = arith.addf %538, %539 : vector<1x1xf32>
    %541 = math.rsqrt %540 : vector<1x1xf32>
    %c16_i32_273 = arith.constant 16 : i32
    %542 = arith.muli %arg0, %c16_i32_273 : i32
    %c8_i32 = arith.constant 8 : i32
    %543 = arith.addi %542, %c8_i32 : i32
    %c2_i32_274 = arith.constant 2 : i32
    %544 = arith.muli %543, %c2_i32_274 : i32
    %c0_i32_275 = arith.constant 0 : i32
    %545 = arith.addi %544, %c0_i32_275 : i32
    %546 = arith.index_cast %545 : i32 to index
    %547 = memref.load %arg2[%546] : memref<32xf32, #tpu.memory_space<smem>>
    %c0_i32_276 = arith.constant 0 : i32
    %548 = arith.addi %544, %c0_i32_276 : i32
    %549 = arith.index_cast %548 : i32 to index
    %550 = memref.load %arg3[%549] : memref<32xf32, #tpu.memory_space<smem>>
    %551 = vector.broadcast %547 : f32 to vector<1x1xf32>
    %552 = arith.mulf %551, %541 : vector<1x1xf32>
    %553 = arith.mulf %532, %552 : vector<1x1xf32>
    %554 = vector.broadcast %550 : f32 to vector<1x1xf32>
    %555 = arith.subf %554, %553 : vector<1x1xf32>
    %c0_277 = arith.constant 0 : index
    %c8_278 = arith.constant 8 : index
    %c0_279 = arith.constant 0 : index
    %c0_280 = arith.constant 0 : index
    %556 = vector.load %arg4[%c0_277, %c8_278, %c0_279, %c0_280] : memref<1x16x2x128xf32, #tpu.memory_space<vmem>>, vector<1x1x1x128xf32>
    %557 = vector.shape_cast %556 : vector<1x1x1x128xf32> to vector<1x128xf32>
    %558 = vector.broadcast %552 : vector<1x1xf32> to vector<1x128xf32>
    %559 = arith.mulf %557, %558 : vector<1x128xf32>
    %560 = vector.broadcast %555 : vector<1x1xf32> to vector<1x128xf32>
    %561 = arith.addf %559, %560 : vector<1x128xf32>
    %c0_281 = arith.constant 0 : index
    %c8_282 = arith.constant 8 : index
    %c0_283 = arith.constant 0 : index
    %c0_284 = arith.constant 0 : index
    %562 = vector.load %arg5[%c0_281, %c8_282, %c0_283, %c0_284] : memref<1x16x2x128xf32, #tpu.memory_space<vmem>>, vector<1x1x1x128xf32>
    %563 = vector.shape_cast %562 : vector<1x1x1x128xf32> to vector<1x128xf32>
    %564 = vector.shape_cast %561 : vector<1x128xf32> to vector<1x1x1x128xf32>
    tpu.vector_store %arg5[%c0_281, %c8_282, %c0_283, %c0_284], %564 {strides = array<i32>} : memref<1x16x2x128xf32, #tpu.memory_space<vmem>>, vector<1x1x1x128xf32>,
    %c1_i32_285 = arith.constant 1 : i32
    %565 = arith.addi %544, %c1_i32_285 : i32
    %566 = arith.index_cast %565 : i32 to index
    %567 = memref.load %arg2[%566] : memref<32xf32, #tpu.memory_space<smem>>
    %c1_i32_286 = arith.constant 1 : i32
    %568 = arith.addi %544, %c1_i32_286 : i32
    %569 = arith.index_cast %568 : i32 to index
    %570 = memref.load %arg3[%569] : memref<32xf32, #tpu.memory_space<smem>>
    %571 = vector.broadcast %567 : f32 to vector<1x1xf32>
    %572 = arith.mulf %571, %541 : vector<1x1xf32>
    %573 = arith.mulf %532, %572 : vector<1x1xf32>
    %574 = vector.broadcast %570 : f32 to vector<1x1xf32>
    %575 = arith.subf %574, %573 : vector<1x1xf32>
    %c0_287 = arith.constant 0 : index
    %c8_288 = arith.constant 8 : index
    %c1_289 = arith.constant 1 : index
    %c0_290 = arith.constant 0 : index
    %576 = vector.load %arg4[%c0_287, %c8_288, %c1_289, %c0_290] : memref<1x16x2x128xf32, #tpu.memory_space<vmem>>, vector<1x1x1x128xf32>
    %577 = vector.shape_cast %576 : vector<1x1x1x128xf32> to vector<1x128xf32>
    %578 = vector.broadcast %572 : vector<1x1xf32> to vector<1x128xf32>
    %579 = arith.mulf %577, %578 : vector<1x128xf32>
    %580 = vector.broadcast %575 : vector<1x1xf32> to vector<1x128xf32>
    %581 = arith.addf %579, %580 : vector<1x128xf32>
    %c0_291 = arith.constant 0 : index
    %c8_292 = arith.constant 8 : index
    %c1_293 = arith.constant 1 : index
    %c0_294 = arith.constant 0 : index
    %582 = vector.load %arg5[%c0_291, %c8_292, %c1_293, %c0_294] : memref<1x16x2x128xf32, #tpu.memory_space<vmem>>, vector<1x1x1x128xf32>
    %583 = vector.shape_cast %582 : vector<1x1x1x128xf32> to vector<1x128xf32>
    %584 = vector.shape_cast %581 : vector<1x128xf32> to vector<1x1x1x128xf32>
    tpu.vector_store %arg5[%c0_291, %c8_292, %c1_293, %c0_294], %584 {strides = array<i32>} : memref<1x16x2x128xf32, #tpu.memory_space<vmem>>, vector<1x1x1x128xf32>,
    %c0_295 = arith.constant 0 : index
    %c9 = arith.constant 9 : index
    %c0_296 = arith.constant 0 : index
    %c0_297 = arith.constant 0 : index
    %585 = vector.load %arg4[%c0_295, %c9, %c0_296, %c0_297] : memref<1x16x2x128xf32, #tpu.memory_space<vmem>>, vector<1x1x2x128xf32>
    %586 = vector.shape_cast %585 : vector<1x1x2x128xf32> to vector<2x128xf32>
    %cst_298 = arith.constant dense<0.000000e+00> : vector<128xf32>
    %587 = vector.multi_reduction <add>, %586, %cst_298 [0] : vector<2x128xf32> to vector<128xf32>
    %588 = vector.shape_cast %587 : vector<128xf32> to vector<1x128xf32>
    %589 = arith.mulf %586, %586 : vector<2x128xf32>
    %cst_299 = arith.constant dense<0.000000e+00> : vector<128xf32>
    %590 = vector.multi_reduction <add>, %589, %cst_299 [0] : vector<2x128xf32> to vector<128xf32>
    %591 = vector.shape_cast %590 : vector<128xf32> to vector<1x128xf32>
    %cst_300 = arith.constant dense<0.000000e+00> : vector<1xf32>
    %592 = vector.multi_reduction <add>, %588, %cst_300 [1] : vector<1x128xf32> to vector<1xf32>
    %593 = vector.shape_cast %592 : vector<1xf32> to vector<1x1xf32>
    %cst_301 = arith.constant dense<0.000000e+00> : vector<1xf32>
    %594 = vector.multi_reduction <add>, %591, %cst_301 [1] : vector<1x128xf32> to vector<1xf32>
    %595 = vector.shape_cast %594 : vector<1xf32> to vector<1x1xf32>
    %cst_302 = arith.constant 3.906250e-03 : f32
    %596 = vector.broadcast %cst_302 : f32 to vector<1x1xf32>
    %597 = arith.mulf %593, %596 : vector<1x1xf32>
    %598 = arith.mulf %593, %597 : vector<1x1xf32>
    %599 = arith.subf %595, %598 : vector<1x1xf32>
    %cst_303 = arith.constant 0.000000e+00 : f32
    %600 = vector.broadcast %cst_303 : f32 to vector<1x1xf32>
    %601 = arith.maximumf %599, %600 : vector<1x1xf32>
    %cst_304 = arith.constant 0.00392156886 : f32
    %602 = vector.broadcast %cst_304 : f32 to vector<1x1xf32>
    %603 = arith.mulf %601, %602 : vector<1x1xf32>
    %cst_305 = arith.constant 9.99999974E-6 : f32
    %604 = vector.broadcast %cst_305 : f32 to vector<1x1xf32>
    %605 = arith.addf %603, %604 : vector<1x1xf32>
    %606 = math.rsqrt %605 : vector<1x1xf32>
    %c16_i32_306 = arith.constant 16 : i32
    %607 = arith.muli %arg0, %c16_i32_306 : i32
    %c9_i32 = arith.constant 9 : i32
    %608 = arith.addi %607, %c9_i32 : i32
    %c2_i32_307 = arith.constant 2 : i32
    %609 = arith.muli %608, %c2_i32_307 : i32
    %c0_i32_308 = arith.constant 0 : i32
    %610 = arith.addi %609, %c0_i32_308 : i32
    %611 = arith.index_cast %610 : i32 to index
    %612 = memref.load %arg2[%611] : memref<32xf32, #tpu.memory_space<smem>>
    %c0_i32_309 = arith.constant 0 : i32
    %613 = arith.addi %609, %c0_i32_309 : i32
    %614 = arith.index_cast %613 : i32 to index
    %615 = memref.load %arg3[%614] : memref<32xf32, #tpu.memory_space<smem>>
    %616 = vector.broadcast %612 : f32 to vector<1x1xf32>
    %617 = arith.mulf %616, %606 : vector<1x1xf32>
    %618 = arith.mulf %597, %617 : vector<1x1xf32>
    %619 = vector.broadcast %615 : f32 to vector<1x1xf32>
    %620 = arith.subf %619, %618 : vector<1x1xf32>
    %c0_310 = arith.constant 0 : index
    %c9_311 = arith.constant 9 : index
    %c0_312 = arith.constant 0 : index
    %c0_313 = arith.constant 0 : index
    %621 = vector.load %arg4[%c0_310, %c9_311, %c0_312, %c0_313] : memref<1x16x2x128xf32, #tpu.memory_space<vmem>>, vector<1x1x1x128xf32>
    %622 = vector.shape_cast %621 : vector<1x1x1x128xf32> to vector<1x128xf32>
    %623 = vector.broadcast %617 : vector<1x1xf32> to vector<1x128xf32>
    %624 = arith.mulf %622, %623 : vector<1x128xf32>
    %625 = vector.broadcast %620 : vector<1x1xf32> to vector<1x128xf32>
    %626 = arith.addf %624, %625 : vector<1x128xf32>
    %c0_314 = arith.constant 0 : index
    %c9_315 = arith.constant 9 : index
    %c0_316 = arith.constant 0 : index
    %c0_317 = arith.constant 0 : index
    %627 = vector.load %arg5[%c0_314, %c9_315, %c0_316, %c0_317] : memref<1x16x2x128xf32, #tpu.memory_space<vmem>>, vector<1x1x1x128xf32>
    %628 = vector.shape_cast %627 : vector<1x1x1x128xf32> to vector<1x128xf32>
    %629 = vector.shape_cast %626 : vector<1x128xf32> to vector<1x1x1x128xf32>
    tpu.vector_store %arg5[%c0_314, %c9_315, %c0_316, %c0_317], %629 {strides = array<i32>} : memref<1x16x2x128xf32, #tpu.memory_space<vmem>>, vector<1x1x1x128xf32>,
    %c1_i32_318 = arith.constant 1 : i32
    %630 = arith.addi %609, %c1_i32_318 : i32
    %631 = arith.index_cast %630 : i32 to index
    %632 = memref.load %arg2[%631] : memref<32xf32, #tpu.memory_space<smem>>
    %c1_i32_319 = arith.constant 1 : i32
    %633 = arith.addi %609, %c1_i32_319 : i32
    %634 = arith.index_cast %633 : i32 to index
    %635 = memref.load %arg3[%634] : memref<32xf32, #tpu.memory_space<smem>>
    %636 = vector.broadcast %632 : f32 to vector<1x1xf32>
    %637 = arith.mulf %636, %606 : vector<1x1xf32>
    %638 = arith.mulf %597, %637 : vector<1x1xf32>
    %639 = vector.broadcast %635 : f32 to vector<1x1xf32>
    %640 = arith.subf %639, %638 : vector<1x1xf32>
    %c0_320 = arith.constant 0 : index
    %c9_321 = arith.constant 9 : index
    %c1_322 = arith.constant 1 : index
    %c0_323 = arith.constant 0 : index
    %641 = vector.load %arg4[%c0_320, %c9_321, %c1_322, %c0_323] : memref<1x16x2x128xf32, #tpu.memory_space<vmem>>, vector<1x1x1x128xf32>
    %642 = vector.shape_cast %641 : vector<1x1x1x128xf32> to vector<1x128xf32>
    %643 = vector.broadcast %637 : vector<1x1xf32> to vector<1x128xf32>
    %644 = arith.mulf %642, %643 : vector<1x128xf32>
    %645 = vector.broadcast %640 : vector<1x1xf32> to vector<1x128xf32>
    %646 = arith.addf %644, %645 : vector<1x128xf32>
    %c0_324 = arith.constant 0 : index
    %c9_325 = arith.constant 9 : index
    %c1_326 = arith.constant 1 : index
    %c0_327 = arith.constant 0 : index
    %647 = vector.load %arg5[%c0_324, %c9_325, %c1_326, %c0_327] : memref<1x16x2x128xf32, #tpu.memory_space<vmem>>, vector<1x1x1x128xf32>
    %648 = vector.shape_cast %647 : vector<1x1x1x128xf32> to vector<1x128xf32>
    %649 = vector.shape_cast %646 : vector<1x128xf32> to vector<1x1x1x128xf32>
    tpu.vector_store %arg5[%c0_324, %c9_325, %c1_326, %c0_327], %649 {strides = array<i32>} : memref<1x16x2x128xf32, #tpu.memory_space<vmem>>, vector<1x1x1x128xf32>,
    %c0_328 = arith.constant 0 : index
    %c10 = arith.constant 10 : index
    %c0_329 = arith.constant 0 : index
    %c0_330 = arith.constant 0 : index
    %650 = vector.load %arg4[%c0_328, %c10, %c0_329, %c0_330] : memref<1x16x2x128xf32, #tpu.memory_space<vmem>>, vector<1x1x2x128xf32>
    %651 = vector.shape_cast %650 : vector<1x1x2x128xf32> to vector<2x128xf32>
    %cst_331 = arith.constant dense<0.000000e+00> : vector<128xf32>
    %652 = vector.multi_reduction <add>, %651, %cst_331 [0] : vector<2x128xf32> to vector<128xf32>
    %653 = vector.shape_cast %652 : vector<128xf32> to vector<1x128xf32>
    %654 = arith.mulf %651, %651 : vector<2x128xf32>
    %cst_332 = arith.constant dense<0.000000e+00> : vector<128xf32>
    %655 = vector.multi_reduction <add>, %654, %cst_332 [0] : vector<2x128xf32> to vector<128xf32>
    %656 = vector.shape_cast %655 : vector<128xf32> to vector<1x128xf32>
    %cst_333 = arith.constant dense<0.000000e+00> : vector<1xf32>
    %657 = vector.multi_reduction <add>, %653, %cst_333 [1] : vector<1x128xf32> to vector<1xf32>
    %658 = vector.shape_cast %657 : vector<1xf32> to vector<1x1xf32>
    %cst_334 = arith.constant dense<0.000000e+00> : vector<1xf32>
    %659 = vector.multi_reduction <add>, %656, %cst_334 [1] : vector<1x128xf32> to vector<1xf32>
    %660 = vector.shape_cast %659 : vector<1xf32> to vector<1x1xf32>
    %cst_335 = arith.constant 3.906250e-03 : f32
    %661 = vector.broadcast %cst_335 : f32 to vector<1x1xf32>
    %662 = arith.mulf %658, %661 : vector<1x1xf32>
    %663 = arith.mulf %658, %662 : vector<1x1xf32>
    %664 = arith.subf %660, %663 : vector<1x1xf32>
    %cst_336 = arith.constant 0.000000e+00 : f32
    %665 = vector.broadcast %cst_336 : f32 to vector<1x1xf32>
    %666 = arith.maximumf %664, %665 : vector<1x1xf32>
    %cst_337 = arith.constant 0.00392156886 : f32
    %667 = vector.broadcast %cst_337 : f32 to vector<1x1xf32>
    %668 = arith.mulf %666, %667 : vector<1x1xf32>
    %cst_338 = arith.constant 9.99999974E-6 : f32
    %669 = vector.broadcast %cst_338 : f32 to vector<1x1xf32>
    %670 = arith.addf %668, %669 : vector<1x1xf32>
    %671 = math.rsqrt %670 : vector<1x1xf32>
    %c16_i32_339 = arith.constant 16 : i32
    %672 = arith.muli %arg0, %c16_i32_339 : i32
    %c10_i32 = arith.constant 10 : i32
    %673 = arith.addi %672, %c10_i32 : i32
    %c2_i32_340 = arith.constant 2 : i32
    %674 = arith.muli %673, %c2_i32_340 : i32
    %c0_i32_341 = arith.constant 0 : i32
    %675 = arith.addi %674, %c0_i32_341 : i32
    %676 = arith.index_cast %675 : i32 to index
    %677 = memref.load %arg2[%676] : memref<32xf32, #tpu.memory_space<smem>>
    %c0_i32_342 = arith.constant 0 : i32
    %678 = arith.addi %674, %c0_i32_342 : i32
    %679 = arith.index_cast %678 : i32 to index
    %680 = memref.load %arg3[%679] : memref<32xf32, #tpu.memory_space<smem>>
    %681 = vector.broadcast %677 : f32 to vector<1x1xf32>
    %682 = arith.mulf %681, %671 : vector<1x1xf32>
    %683 = arith.mulf %662, %682 : vector<1x1xf32>
    %684 = vector.broadcast %680 : f32 to vector<1x1xf32>
    %685 = arith.subf %684, %683 : vector<1x1xf32>
    %c0_343 = arith.constant 0 : index
    %c10_344 = arith.constant 10 : index
    %c0_345 = arith.constant 0 : index
    %c0_346 = arith.constant 0 : index
    %686 = vector.load %arg4[%c0_343, %c10_344, %c0_345, %c0_346] : memref<1x16x2x128xf32, #tpu.memory_space<vmem>>, vector<1x1x1x128xf32>
    %687 = vector.shape_cast %686 : vector<1x1x1x128xf32> to vector<1x128xf32>
    %688 = vector.broadcast %682 : vector<1x1xf32> to vector<1x128xf32>
    %689 = arith.mulf %687, %688 : vector<1x128xf32>
    %690 = vector.broadcast %685 : vector<1x1xf32> to vector<1x128xf32>
    %691 = arith.addf %689, %690 : vector<1x128xf32>
    %c0_347 = arith.constant 0 : index
    %c10_348 = arith.constant 10 : index
    %c0_349 = arith.constant 0 : index
    %c0_350 = arith.constant 0 : index
    %692 = vector.load %arg5[%c0_347, %c10_348, %c0_349, %c0_350] : memref<1x16x2x128xf32, #tpu.memory_space<vmem>>, vector<1x1x1x128xf32>
    %693 = vector.shape_cast %692 : vector<1x1x1x128xf32> to vector<1x128xf32>
    %694 = vector.shape_cast %691 : vector<1x128xf32> to vector<1x1x1x128xf32>
    tpu.vector_store %arg5[%c0_347, %c10_348, %c0_349, %c0_350], %694 {strides = array<i32>} : memref<1x16x2x128xf32, #tpu.memory_space<vmem>>, vector<1x1x1x128xf32>,
    %c1_i32_351 = arith.constant 1 : i32
    %695 = arith.addi %674, %c1_i32_351 : i32
    %696 = arith.index_cast %695 : i32 to index
    %697 = memref.load %arg2[%696] : memref<32xf32, #tpu.memory_space<smem>>
    %c1_i32_352 = arith.constant 1 : i32
    %698 = arith.addi %674, %c1_i32_352 : i32
    %699 = arith.index_cast %698 : i32 to index
    %700 = memref.load %arg3[%699] : memref<32xf32, #tpu.memory_space<smem>>
    %701 = vector.broadcast %697 : f32 to vector<1x1xf32>
    %702 = arith.mulf %701, %671 : vector<1x1xf32>
    %703 = arith.mulf %662, %702 : vector<1x1xf32>
    %704 = vector.broadcast %700 : f32 to vector<1x1xf32>
    %705 = arith.subf %704, %703 : vector<1x1xf32>
    %c0_353 = arith.constant 0 : index
    %c10_354 = arith.constant 10 : index
    %c1_355 = arith.constant 1 : index
    %c0_356 = arith.constant 0 : index
    %706 = vector.load %arg4[%c0_353, %c10_354, %c1_355, %c0_356] : memref<1x16x2x128xf32, #tpu.memory_space<vmem>>, vector<1x1x1x128xf32>
    %707 = vector.shape_cast %706 : vector<1x1x1x128xf32> to vector<1x128xf32>
    %708 = vector.broadcast %702 : vector<1x1xf32> to vector<1x128xf32>
    %709 = arith.mulf %707, %708 : vector<1x128xf32>
    %710 = vector.broadcast %705 : vector<1x1xf32> to vector<1x128xf32>
    %711 = arith.addf %709, %710 : vector<1x128xf32>
    %c0_357 = arith.constant 0 : index
    %c10_358 = arith.constant 10 : index
    %c1_359 = arith.constant 1 : index
    %c0_360 = arith.constant 0 : index
    %712 = vector.load %arg5[%c0_357, %c10_358, %c1_359, %c0_360] : memref<1x16x2x128xf32, #tpu.memory_space<vmem>>, vector<1x1x1x128xf32>
    %713 = vector.shape_cast %712 : vector<1x1x1x128xf32> to vector<1x128xf32>
    %714 = vector.shape_cast %711 : vector<1x128xf32> to vector<1x1x1x128xf32>
    tpu.vector_store %arg5[%c0_357, %c10_358, %c1_359, %c0_360], %714 {strides = array<i32>} : memref<1x16x2x128xf32, #tpu.memory_space<vmem>>, vector<1x1x1x128xf32>,
    %c0_361 = arith.constant 0 : index
    %c11 = arith.constant 11 : index
    %c0_362 = arith.constant 0 : index
    %c0_363 = arith.constant 0 : index
    %715 = vector.load %arg4[%c0_361, %c11, %c0_362, %c0_363] : memref<1x16x2x128xf32, #tpu.memory_space<vmem>>, vector<1x1x2x128xf32>
    %716 = vector.shape_cast %715 : vector<1x1x2x128xf32> to vector<2x128xf32>
    %cst_364 = arith.constant dense<0.000000e+00> : vector<128xf32>
    %717 = vector.multi_reduction <add>, %716, %cst_364 [0] : vector<2x128xf32> to vector<128xf32>
    %718 = vector.shape_cast %717 : vector<128xf32> to vector<1x128xf32>
    %719 = arith.mulf %716, %716 : vector<2x128xf32>
    %cst_365 = arith.constant dense<0.000000e+00> : vector<128xf32>
    %720 = vector.multi_reduction <add>, %719, %cst_365 [0] : vector<2x128xf32> to vector<128xf32>
    %721 = vector.shape_cast %720 : vector<128xf32> to vector<1x128xf32>
    %cst_366 = arith.constant dense<0.000000e+00> : vector<1xf32>
    %722 = vector.multi_reduction <add>, %718, %cst_366 [1] : vector<1x128xf32> to vector<1xf32>
    %723 = vector.shape_cast %722 : vector<1xf32> to vector<1x1xf32>
    %cst_367 = arith.constant dense<0.000000e+00> : vector<1xf32>
    %724 = vector.multi_reduction <add>, %721, %cst_367 [1] : vector<1x128xf32> to vector<1xf32>
    %725 = vector.shape_cast %724 : vector<1xf32> to vector<1x1xf32>
    %cst_368 = arith.constant 3.906250e-03 : f32
    %726 = vector.broadcast %cst_368 : f32 to vector<1x1xf32>
    %727 = arith.mulf %723, %726 : vector<1x1xf32>
    %728 = arith.mulf %723, %727 : vector<1x1xf32>
    %729 = arith.subf %725, %728 : vector<1x1xf32>
    %cst_369 = arith.constant 0.000000e+00 : f32
    %730 = vector.broadcast %cst_369 : f32 to vector<1x1xf32>
    %731 = arith.maximumf %729, %730 : vector<1x1xf32>
    %cst_370 = arith.constant 0.00392156886 : f32
    %732 = vector.broadcast %cst_370 : f32 to vector<1x1xf32>
    %733 = arith.mulf %731, %732 : vector<1x1xf32>
    %cst_371 = arith.constant 9.99999974E-6 : f32
    %734 = vector.broadcast %cst_371 : f32 to vector<1x1xf32>
    %735 = arith.addf %733, %734 : vector<1x1xf32>
    %736 = math.rsqrt %735 : vector<1x1xf32>
    %c16_i32_372 = arith.constant 16 : i32
    %737 = arith.muli %arg0, %c16_i32_372 : i32
    %c11_i32 = arith.constant 11 : i32
    %738 = arith.addi %737, %c11_i32 : i32
    %c2_i32_373 = arith.constant 2 : i32
    %739 = arith.muli %738, %c2_i32_373 : i32
    %c0_i32_374 = arith.constant 0 : i32
    %740 = arith.addi %739, %c0_i32_374 : i32
    %741 = arith.index_cast %740 : i32 to index
    %742 = memref.load %arg2[%741] : memref<32xf32, #tpu.memory_space<smem>>
    %c0_i32_375 = arith.constant 0 : i32
    %743 = arith.addi %739, %c0_i32_375 : i32
    %744 = arith.index_cast %743 : i32 to index
    %745 = memref.load %arg3[%744] : memref<32xf32, #tpu.memory_space<smem>>
    %746 = vector.broadcast %742 : f32 to vector<1x1xf32>
    %747 = arith.mulf %746, %736 : vector<1x1xf32>
    %748 = arith.mulf %727, %747 : vector<1x1xf32>
    %749 = vector.broadcast %745 : f32 to vector<1x1xf32>
    %750 = arith.subf %749, %748 : vector<1x1xf32>
    %c0_376 = arith.constant 0 : index
    %c11_377 = arith.constant 11 : index
    %c0_378 = arith.constant 0 : index
    %c0_379 = arith.constant 0 : index
    %751 = vector.load %arg4[%c0_376, %c11_377, %c0_378, %c0_379] : memref<1x16x2x128xf32, #tpu.memory_space<vmem>>, vector<1x1x1x128xf32>
    %752 = vector.shape_cast %751 : vector<1x1x1x128xf32> to vector<1x128xf32>
    %753 = vector.broadcast %747 : vector<1x1xf32> to vector<1x128xf32>
    %754 = arith.mulf %752, %753 : vector<1x128xf32>
    %755 = vector.broadcast %750 : vector<1x1xf32> to vector<1x128xf32>
    %756 = arith.addf %754, %755 : vector<1x128xf32>
    %c0_380 = arith.constant 0 : index
    %c11_381 = arith.constant 11 : index
    %c0_382 = arith.constant 0 : index
    %c0_383 = arith.constant 0 : index
    %757 = vector.load %arg5[%c0_380, %c11_381, %c0_382, %c0_383] : memref<1x16x2x128xf32, #tpu.memory_space<vmem>>, vector<1x1x1x128xf32>
    %758 = vector.shape_cast %757 : vector<1x1x1x128xf32> to vector<1x128xf32>
    %759 = vector.shape_cast %756 : vector<1x128xf32> to vector<1x1x1x128xf32>
    tpu.vector_store %arg5[%c0_380, %c11_381, %c0_382, %c0_383], %759 {strides = array<i32>} : memref<1x16x2x128xf32, #tpu.memory_space<vmem>>, vector<1x1x1x128xf32>,
    %c1_i32_384 = arith.constant 1 : i32
    %760 = arith.addi %739, %c1_i32_384 : i32
    %761 = arith.index_cast %760 : i32 to index
    %762 = memref.load %arg2[%761] : memref<32xf32, #tpu.memory_space<smem>>
    %c1_i32_385 = arith.constant 1 : i32
    %763 = arith.addi %739, %c1_i32_385 : i32
    %764 = arith.index_cast %763 : i32 to index
    %765 = memref.load %arg3[%764] : memref<32xf32, #tpu.memory_space<smem>>
    %766 = vector.broadcast %762 : f32 to vector<1x1xf32>
    %767 = arith.mulf %766, %736 : vector<1x1xf32>
    %768 = arith.mulf %727, %767 : vector<1x1xf32>
    %769 = vector.broadcast %765 : f32 to vector<1x1xf32>
    %770 = arith.subf %769, %768 : vector<1x1xf32>
    %c0_386 = arith.constant 0 : index
    %c11_387 = arith.constant 11 : index
    %c1_388 = arith.constant 1 : index
    %c0_389 = arith.constant 0 : index
    %771 = vector.load %arg4[%c0_386, %c11_387, %c1_388, %c0_389] : memref<1x16x2x128xf32, #tpu.memory_space<vmem>>, vector<1x1x1x128xf32>
    %772 = vector.shape_cast %771 : vector<1x1x1x128xf32> to vector<1x128xf32>
    %773 = vector.broadcast %767 : vector<1x1xf32> to vector<1x128xf32>
    %774 = arith.mulf %772, %773 : vector<1x128xf32>
    %775 = vector.broadcast %770 : vector<1x1xf32> to vector<1x128xf32>
    %776 = arith.addf %774, %775 : vector<1x128xf32>
    %c0_390 = arith.constant 0 : index
    %c11_391 = arith.constant 11 : index
    %c1_392 = arith.constant 1 : index
    %c0_393 = arith.constant 0 : index
    %777 = vector.load %arg5[%c0_390, %c11_391, %c1_392, %c0_393] : memref<1x16x2x128xf32, #tpu.memory_space<vmem>>, vector<1x1x1x128xf32>
    %778 = vector.shape_cast %777 : vector<1x1x1x128xf32> to vector<1x128xf32>
    %779 = vector.shape_cast %776 : vector<1x128xf32> to vector<1x1x1x128xf32>
    tpu.vector_store %arg5[%c0_390, %c11_391, %c1_392, %c0_393], %779 {strides = array<i32>} : memref<1x16x2x128xf32, #tpu.memory_space<vmem>>, vector<1x1x1x128xf32>,
    %c0_394 = arith.constant 0 : index
    %c12 = arith.constant 12 : index
    %c0_395 = arith.constant 0 : index
    %c0_396 = arith.constant 0 : index
    %780 = vector.load %arg4[%c0_394, %c12, %c0_395, %c0_396] : memref<1x16x2x128xf32, #tpu.memory_space<vmem>>, vector<1x1x2x128xf32>
    %781 = vector.shape_cast %780 : vector<1x1x2x128xf32> to vector<2x128xf32>
    %cst_397 = arith.constant dense<0.000000e+00> : vector<128xf32>
    %782 = vector.multi_reduction <add>, %781, %cst_397 [0] : vector<2x128xf32> to vector<128xf32>
    %783 = vector.shape_cast %782 : vector<128xf32> to vector<1x128xf32>
    %784 = arith.mulf %781, %781 : vector<2x128xf32>
    %cst_398 = arith.constant dense<0.000000e+00> : vector<128xf32>
    %785 = vector.multi_reduction <add>, %784, %cst_398 [0] : vector<2x128xf32> to vector<128xf32>
    %786 = vector.shape_cast %785 : vector<128xf32> to vector<1x128xf32>
    %cst_399 = arith.constant dense<0.000000e+00> : vector<1xf32>
    %787 = vector.multi_reduction <add>, %783, %cst_399 [1] : vector<1x128xf32> to vector<1xf32>
    %788 = vector.shape_cast %787 : vector<1xf32> to vector<1x1xf32>
    %cst_400 = arith.constant dense<0.000000e+00> : vector<1xf32>
    %789 = vector.multi_reduction <add>, %786, %cst_400 [1] : vector<1x128xf32> to vector<1xf32>
    %790 = vector.shape_cast %789 : vector<1xf32> to vector<1x1xf32>
    %cst_401 = arith.constant 3.906250e-03 : f32
    %791 = vector.broadcast %cst_401 : f32 to vector<1x1xf32>
    %792 = arith.mulf %788, %791 : vector<1x1xf32>
    %793 = arith.mulf %788, %792 : vector<1x1xf32>
    %794 = arith.subf %790, %793 : vector<1x1xf32>
    %cst_402 = arith.constant 0.000000e+00 : f32
    %795 = vector.broadcast %cst_402 : f32 to vector<1x1xf32>
    %796 = arith.maximumf %794, %795 : vector<1x1xf32>
    %cst_403 = arith.constant 0.00392156886 : f32
    %797 = vector.broadcast %cst_403 : f32 to vector<1x1xf32>
    %798 = arith.mulf %796, %797 : vector<1x1xf32>
    %cst_404 = arith.constant 9.99999974E-6 : f32
    %799 = vector.broadcast %cst_404 : f32 to vector<1x1xf32>
    %800 = arith.addf %798, %799 : vector<1x1xf32>
    %801 = math.rsqrt %800 : vector<1x1xf32>
    %c16_i32_405 = arith.constant 16 : i32
    %802 = arith.muli %arg0, %c16_i32_405 : i32
    %c12_i32 = arith.constant 12 : i32
    %803 = arith.addi %802, %c12_i32 : i32
    %c2_i32_406 = arith.constant 2 : i32
    %804 = arith.muli %803, %c2_i32_406 : i32
    %c0_i32_407 = arith.constant 0 : i32
    %805 = arith.addi %804, %c0_i32_407 : i32
    %806 = arith.index_cast %805 : i32 to index
    %807 = memref.load %arg2[%806] : memref<32xf32, #tpu.memory_space<smem>>
    %c0_i32_408 = arith.constant 0 : i32
    %808 = arith.addi %804, %c0_i32_408 : i32
    %809 = arith.index_cast %808 : i32 to index
    %810 = memref.load %arg3[%809] : memref<32xf32, #tpu.memory_space<smem>>
    %811 = vector.broadcast %807 : f32 to vector<1x1xf32>
    %812 = arith.mulf %811, %801 : vector<1x1xf32>
    %813 = arith.mulf %792, %812 : vector<1x1xf32>
    %814 = vector.broadcast %810 : f32 to vector<1x1xf32>
    %815 = arith.subf %814, %813 : vector<1x1xf32>
    %c0_409 = arith.constant 0 : index
    %c12_410 = arith.constant 12 : index
    %c0_411 = arith.constant 0 : index
    %c0_412 = arith.constant 0 : index
    %816 = vector.load %arg4[%c0_409, %c12_410, %c0_411, %c0_412] : memref<1x16x2x128xf32, #tpu.memory_space<vmem>>, vector<1x1x1x128xf32>
    %817 = vector.shape_cast %816 : vector<1x1x1x128xf32> to vector<1x128xf32>
    %818 = vector.broadcast %812 : vector<1x1xf32> to vector<1x128xf32>
    %819 = arith.mulf %817, %818 : vector<1x128xf32>
    %820 = vector.broadcast %815 : vector<1x1xf32> to vector<1x128xf32>
    %821 = arith.addf %819, %820 : vector<1x128xf32>
    %c0_413 = arith.constant 0 : index
    %c12_414 = arith.constant 12 : index
    %c0_415 = arith.constant 0 : index
    %c0_416 = arith.constant 0 : index
    %822 = vector.load %arg5[%c0_413, %c12_414, %c0_415, %c0_416] : memref<1x16x2x128xf32, #tpu.memory_space<vmem>>, vector<1x1x1x128xf32>
    %823 = vector.shape_cast %822 : vector<1x1x1x128xf32> to vector<1x128xf32>
    %824 = vector.shape_cast %821 : vector<1x128xf32> to vector<1x1x1x128xf32>
    tpu.vector_store %arg5[%c0_413, %c12_414, %c0_415, %c0_416], %824 {strides = array<i32>} : memref<1x16x2x128xf32, #tpu.memory_space<vmem>>, vector<1x1x1x128xf32>,
    %c1_i32_417 = arith.constant 1 : i32
    %825 = arith.addi %804, %c1_i32_417 : i32
    %826 = arith.index_cast %825 : i32 to index
    %827 = memref.load %arg2[%826] : memref<32xf32, #tpu.memory_space<smem>>
    %c1_i32_418 = arith.constant 1 : i32
    %828 = arith.addi %804, %c1_i32_418 : i32
    %829 = arith.index_cast %828 : i32 to index
    %830 = memref.load %arg3[%829] : memref<32xf32, #tpu.memory_space<smem>>
    %831 = vector.broadcast %827 : f32 to vector<1x1xf32>
    %832 = arith.mulf %831, %801 : vector<1x1xf32>
    %833 = arith.mulf %792, %832 : vector<1x1xf32>
    %834 = vector.broadcast %830 : f32 to vector<1x1xf32>
    %835 = arith.subf %834, %833 : vector<1x1xf32>
    %c0_419 = arith.constant 0 : index
    %c12_420 = arith.constant 12 : index
    %c1_421 = arith.constant 1 : index
    %c0_422 = arith.constant 0 : index
    %836 = vector.load %arg4[%c0_419, %c12_420, %c1_421, %c0_422] : memref<1x16x2x128xf32, #tpu.memory_space<vmem>>, vector<1x1x1x128xf32>
    %837 = vector.shape_cast %836 : vector<1x1x1x128xf32> to vector<1x128xf32>
    %838 = vector.broadcast %832 : vector<1x1xf32> to vector<1x128xf32>
    %839 = arith.mulf %837, %838 : vector<1x128xf32>
    %840 = vector.broadcast %835 : vector<1x1xf32> to vector<1x128xf32>
    %841 = arith.addf %839, %840 : vector<1x128xf32>
    %c0_423 = arith.constant 0 : index
    %c12_424 = arith.constant 12 : index
    %c1_425 = arith.constant 1 : index
    %c0_426 = arith.constant 0 : index
    %842 = vector.load %arg5[%c0_423, %c12_424, %c1_425, %c0_426] : memref<1x16x2x128xf32, #tpu.memory_space<vmem>>, vector<1x1x1x128xf32>
    %843 = vector.shape_cast %842 : vector<1x1x1x128xf32> to vector<1x128xf32>
    %844 = vector.shape_cast %841 : vector<1x128xf32> to vector<1x1x1x128xf32>
    tpu.vector_store %arg5[%c0_423, %c12_424, %c1_425, %c0_426], %844 {strides = array<i32>} : memref<1x16x2x128xf32, #tpu.memory_space<vmem>>, vector<1x1x1x128xf32>,
    %c0_427 = arith.constant 0 : index
    %c13 = arith.constant 13 : index
    %c0_428 = arith.constant 0 : index
    %c0_429 = arith.constant 0 : index
    %845 = vector.load %arg4[%c0_427, %c13, %c0_428, %c0_429] : memref<1x16x2x128xf32, #tpu.memory_space<vmem>>, vector<1x1x2x128xf32>
    %846 = vector.shape_cast %845 : vector<1x1x2x128xf32> to vector<2x128xf32>
    %cst_430 = arith.constant dense<0.000000e+00> : vector<128xf32>
    %847 = vector.multi_reduction <add>, %846, %cst_430 [0] : vector<2x128xf32> to vector<128xf32>
    %848 = vector.shape_cast %847 : vector<128xf32> to vector<1x128xf32>
    %849 = arith.mulf %846, %846 : vector<2x128xf32>
    %cst_431 = arith.constant dense<0.000000e+00> : vector<128xf32>
    %850 = vector.multi_reduction <add>, %849, %cst_431 [0] : vector<2x128xf32> to vector<128xf32>
    %851 = vector.shape_cast %850 : vector<128xf32> to vector<1x128xf32>
    %cst_432 = arith.constant dense<0.000000e+00> : vector<1xf32>
    %852 = vector.multi_reduction <add>, %848, %cst_432 [1] : vector<1x128xf32> to vector<1xf32>
    %853 = vector.shape_cast %852 : vector<1xf32> to vector<1x1xf32>
    %cst_433 = arith.constant dense<0.000000e+00> : vector<1xf32>
    %854 = vector.multi_reduction <add>, %851, %cst_433 [1] : vector<1x128xf32> to vector<1xf32>
    %855 = vector.shape_cast %854 : vector<1xf32> to vector<1x1xf32>
    %cst_434 = arith.constant 3.906250e-03 : f32
    %856 = vector.broadcast %cst_434 : f32 to vector<1x1xf32>
    %857 = arith.mulf %853, %856 : vector<1x1xf32>
    %858 = arith.mulf %853, %857 : vector<1x1xf32>
    %859 = arith.subf %855, %858 : vector<1x1xf32>
    %cst_435 = arith.constant 0.000000e+00 : f32
    %860 = vector.broadcast %cst_435 : f32 to vector<1x1xf32>
    %861 = arith.maximumf %859, %860 : vector<1x1xf32>
    %cst_436 = arith.constant 0.00392156886 : f32
    %862 = vector.broadcast %cst_436 : f32 to vector<1x1xf32>
    %863 = arith.mulf %861, %862 : vector<1x1xf32>
    %cst_437 = arith.constant 9.99999974E-6 : f32
    %864 = vector.broadcast %cst_437 : f32 to vector<1x1xf32>
    %865 = arith.addf %863, %864 : vector<1x1xf32>
    %866 = math.rsqrt %865 : vector<1x1xf32>
    %c16_i32_438 = arith.constant 16 : i32
    %867 = arith.muli %arg0, %c16_i32_438 : i32
    %c13_i32 = arith.constant 13 : i32
    %868 = arith.addi %867, %c13_i32 : i32
    %c2_i32_439 = arith.constant 2 : i32
    %869 = arith.muli %868, %c2_i32_439 : i32
    %c0_i32_440 = arith.constant 0 : i32
    %870 = arith.addi %869, %c0_i32_440 : i32
    %871 = arith.index_cast %870 : i32 to index
    %872 = memref.load %arg2[%871] : memref<32xf32, #tpu.memory_space<smem>>
    %c0_i32_441 = arith.constant 0 : i32
    %873 = arith.addi %869, %c0_i32_441 : i32
    %874 = arith.index_cast %873 : i32 to index
    %875 = memref.load %arg3[%874] : memref<32xf32, #tpu.memory_space<smem>>
    %876 = vector.broadcast %872 : f32 to vector<1x1xf32>
    %877 = arith.mulf %876, %866 : vector<1x1xf32>
    %878 = arith.mulf %857, %877 : vector<1x1xf32>
    %879 = vector.broadcast %875 : f32 to vector<1x1xf32>
    %880 = arith.subf %879, %878 : vector<1x1xf32>
    %c0_442 = arith.constant 0 : index
    %c13_443 = arith.constant 13 : index
    %c0_444 = arith.constant 0 : index
    %c0_445 = arith.constant 0 : index
    %881 = vector.load %arg4[%c0_442, %c13_443, %c0_444, %c0_445] : memref<1x16x2x128xf32, #tpu.memory_space<vmem>>, vector<1x1x1x128xf32>
    %882 = vector.shape_cast %881 : vector<1x1x1x128xf32> to vector<1x128xf32>
    %883 = vector.broadcast %877 : vector<1x1xf32> to vector<1x128xf32>
    %884 = arith.mulf %882, %883 : vector<1x128xf32>
    %885 = vector.broadcast %880 : vector<1x1xf32> to vector<1x128xf32>
    %886 = arith.addf %884, %885 : vector<1x128xf32>
    %c0_446 = arith.constant 0 : index
    %c13_447 = arith.constant 13 : index
    %c0_448 = arith.constant 0 : index
    %c0_449 = arith.constant 0 : index
    %887 = vector.load %arg5[%c0_446, %c13_447, %c0_448, %c0_449] : memref<1x16x2x128xf32, #tpu.memory_space<vmem>>, vector<1x1x1x128xf32>
    %888 = vector.shape_cast %887 : vector<1x1x1x128xf32> to vector<1x128xf32>
    %889 = vector.shape_cast %886 : vector<1x128xf32> to vector<1x1x1x128xf32>
    tpu.vector_store %arg5[%c0_446, %c13_447, %c0_448, %c0_449], %889 {strides = array<i32>} : memref<1x16x2x128xf32, #tpu.memory_space<vmem>>, vector<1x1x1x128xf32>,
    %c1_i32_450 = arith.constant 1 : i32
    %890 = arith.addi %869, %c1_i32_450 : i32
    %891 = arith.index_cast %890 : i32 to index
    %892 = memref.load %arg2[%891] : memref<32xf32, #tpu.memory_space<smem>>
    %c1_i32_451 = arith.constant 1 : i32
    %893 = arith.addi %869, %c1_i32_451 : i32
    %894 = arith.index_cast %893 : i32 to index
    %895 = memref.load %arg3[%894] : memref<32xf32, #tpu.memory_space<smem>>
    %896 = vector.broadcast %892 : f32 to vector<1x1xf32>
    %897 = arith.mulf %896, %866 : vector<1x1xf32>
    %898 = arith.mulf %857, %897 : vector<1x1xf32>
    %899 = vector.broadcast %895 : f32 to vector<1x1xf32>
    %900 = arith.subf %899, %898 : vector<1x1xf32>
    %c0_452 = arith.constant 0 : index
    %c13_453 = arith.constant 13 : index
    %c1_454 = arith.constant 1 : index
    %c0_455 = arith.constant 0 : index
    %901 = vector.load %arg4[%c0_452, %c13_453, %c1_454, %c0_455] : memref<1x16x2x128xf32, #tpu.memory_space<vmem>>, vector<1x1x1x128xf32>
    %902 = vector.shape_cast %901 : vector<1x1x1x128xf32> to vector<1x128xf32>
    %903 = vector.broadcast %897 : vector<1x1xf32> to vector<1x128xf32>
    %904 = arith.mulf %902, %903 : vector<1x128xf32>
    %905 = vector.broadcast %900 : vector<1x1xf32> to vector<1x128xf32>
    %906 = arith.addf %904, %905 : vector<1x128xf32>
    %c0_456 = arith.constant 0 : index
    %c13_457 = arith.constant 13 : index
    %c1_458 = arith.constant 1 : index
    %c0_459 = arith.constant 0 : index
    %907 = vector.load %arg5[%c0_456, %c13_457, %c1_458, %c0_459] : memref<1x16x2x128xf32, #tpu.memory_space<vmem>>, vector<1x1x1x128xf32>
    %908 = vector.shape_cast %907 : vector<1x1x1x128xf32> to vector<1x128xf32>
    %909 = vector.shape_cast %906 : vector<1x128xf32> to vector<1x1x1x128xf32>
    tpu.vector_store %arg5[%c0_456, %c13_457, %c1_458, %c0_459], %909 {strides = array<i32>} : memref<1x16x2x128xf32, #tpu.memory_space<vmem>>, vector<1x1x1x128xf32>,
    %c0_460 = arith.constant 0 : index
    %c14 = arith.constant 14 : index
    %c0_461 = arith.constant 0 : index
    %c0_462 = arith.constant 0 : index
    %910 = vector.load %arg4[%c0_460, %c14, %c0_461, %c0_462] : memref<1x16x2x128xf32, #tpu.memory_space<vmem>>, vector<1x1x2x128xf32>
    %911 = vector.shape_cast %910 : vector<1x1x2x128xf32> to vector<2x128xf32>
    %cst_463 = arith.constant dense<0.000000e+00> : vector<128xf32>
    %912 = vector.multi_reduction <add>, %911, %cst_463 [0] : vector<2x128xf32> to vector<128xf32>
    %913 = vector.shape_cast %912 : vector<128xf32> to vector<1x128xf32>
    %914 = arith.mulf %911, %911 : vector<2x128xf32>
    %cst_464 = arith.constant dense<0.000000e+00> : vector<128xf32>
    %915 = vector.multi_reduction <add>, %914, %cst_464 [0] : vector<2x128xf32> to vector<128xf32>
    %916 = vector.shape_cast %915 : vector<128xf32> to vector<1x128xf32>
    %cst_465 = arith.constant dense<0.000000e+00> : vector<1xf32>
    %917 = vector.multi_reduction <add>, %913, %cst_465 [1] : vector<1x128xf32> to vector<1xf32>
    %918 = vector.shape_cast %917 : vector<1xf32> to vector<1x1xf32>
    %cst_466 = arith.constant dense<0.000000e+00> : vector<1xf32>
    %919 = vector.multi_reduction <add>, %916, %cst_466 [1] : vector<1x128xf32> to vector<1xf32>
    %920 = vector.shape_cast %919 : vector<1xf32> to vector<1x1xf32>
    %cst_467 = arith.constant 3.906250e-03 : f32
    %921 = vector.broadcast %cst_467 : f32 to vector<1x1xf32>
    %922 = arith.mulf %918, %921 : vector<1x1xf32>
    %923 = arith.mulf %918, %922 : vector<1x1xf32>
    %924 = arith.subf %920, %923 : vector<1x1xf32>
    %cst_468 = arith.constant 0.000000e+00 : f32
    %925 = vector.broadcast %cst_468 : f32 to vector<1x1xf32>
    %926 = arith.maximumf %924, %925 : vector<1x1xf32>
    %cst_469 = arith.constant 0.00392156886 : f32
    %927 = vector.broadcast %cst_469 : f32 to vector<1x1xf32>
    %928 = arith.mulf %926, %927 : vector<1x1xf32>
    %cst_470 = arith.constant 9.99999974E-6 : f32
    %929 = vector.broadcast %cst_470 : f32 to vector<1x1xf32>
    %930 = arith.addf %928, %929 : vector<1x1xf32>
    %931 = math.rsqrt %930 : vector<1x1xf32>
    %c16_i32_471 = arith.constant 16 : i32
    %932 = arith.muli %arg0, %c16_i32_471 : i32
    %c14_i32 = arith.constant 14 : i32
    %933 = arith.addi %932, %c14_i32 : i32
    %c2_i32_472 = arith.constant 2 : i32
    %934 = arith.muli %933, %c2_i32_472 : i32
    %c0_i32_473 = arith.constant 0 : i32
    %935 = arith.addi %934, %c0_i32_473 : i32
    %936 = arith.index_cast %935 : i32 to index
    %937 = memref.load %arg2[%936] : memref<32xf32, #tpu.memory_space<smem>>
    %c0_i32_474 = arith.constant 0 : i32
    %938 = arith.addi %934, %c0_i32_474 : i32
    %939 = arith.index_cast %938 : i32 to index
    %940 = memref.load %arg3[%939] : memref<32xf32, #tpu.memory_space<smem>>
    %941 = vector.broadcast %937 : f32 to vector<1x1xf32>
    %942 = arith.mulf %941, %931 : vector<1x1xf32>
    %943 = arith.mulf %922, %942 : vector<1x1xf32>
    %944 = vector.broadcast %940 : f32 to vector<1x1xf32>
    %945 = arith.subf %944, %943 : vector<1x1xf32>
    %c0_475 = arith.constant 0 : index
    %c14_476 = arith.constant 14 : index
    %c0_477 = arith.constant 0 : index
    %c0_478 = arith.constant 0 : index
    %946 = vector.load %arg4[%c0_475, %c14_476, %c0_477, %c0_478] : memref<1x16x2x128xf32, #tpu.memory_space<vmem>>, vector<1x1x1x128xf32>
    %947 = vector.shape_cast %946 : vector<1x1x1x128xf32> to vector<1x128xf32>
    %948 = vector.broadcast %942 : vector<1x1xf32> to vector<1x128xf32>
    %949 = arith.mulf %947, %948 : vector<1x128xf32>
    %950 = vector.broadcast %945 : vector<1x1xf32> to vector<1x128xf32>
    %951 = arith.addf %949, %950 : vector<1x128xf32>
    %c0_479 = arith.constant 0 : index
    %c14_480 = arith.constant 14 : index
    %c0_481 = arith.constant 0 : index
    %c0_482 = arith.constant 0 : index
    %952 = vector.load %arg5[%c0_479, %c14_480, %c0_481, %c0_482] : memref<1x16x2x128xf32, #tpu.memory_space<vmem>>, vector<1x1x1x128xf32>
    %953 = vector.shape_cast %952 : vector<1x1x1x128xf32> to vector<1x128xf32>
    %954 = vector.shape_cast %951 : vector<1x128xf32> to vector<1x1x1x128xf32>
    tpu.vector_store %arg5[%c0_479, %c14_480, %c0_481, %c0_482], %954 {strides = array<i32>} : memref<1x16x2x128xf32, #tpu.memory_space<vmem>>, vector<1x1x1x128xf32>,
    %c1_i32_483 = arith.constant 1 : i32
    %955 = arith.addi %934, %c1_i32_483 : i32
    %956 = arith.index_cast %955 : i32 to index
    %957 = memref.load %arg2[%956] : memref<32xf32, #tpu.memory_space<smem>>
    %c1_i32_484 = arith.constant 1 : i32
    %958 = arith.addi %934, %c1_i32_484 : i32
    %959 = arith.index_cast %958 : i32 to index
    %960 = memref.load %arg3[%959] : memref<32xf32, #tpu.memory_space<smem>>
    %961 = vector.broadcast %957 : f32 to vector<1x1xf32>
    %962 = arith.mulf %961, %931 : vector<1x1xf32>
    %963 = arith.mulf %922, %962 : vector<1x1xf32>
    %964 = vector.broadcast %960 : f32 to vector<1x1xf32>
    %965 = arith.subf %964, %963 : vector<1x1xf32>
    %c0_485 = arith.constant 0 : index
    %c14_486 = arith.constant 14 : index
    %c1_487 = arith.constant 1 : index
    %c0_488 = arith.constant 0 : index
    %966 = vector.load %arg4[%c0_485, %c14_486, %c1_487, %c0_488] : memref<1x16x2x128xf32, #tpu.memory_space<vmem>>, vector<1x1x1x128xf32>
    %967 = vector.shape_cast %966 : vector<1x1x1x128xf32> to vector<1x128xf32>
    %968 = vector.broadcast %962 : vector<1x1xf32> to vector<1x128xf32>
    %969 = arith.mulf %967, %968 : vector<1x128xf32>
    %970 = vector.broadcast %965 : vector<1x1xf32> to vector<1x128xf32>
    %971 = arith.addf %969, %970 : vector<1x128xf32>
    %c0_489 = arith.constant 0 : index
    %c14_490 = arith.constant 14 : index
    %c1_491 = arith.constant 1 : index
    %c0_492 = arith.constant 0 : index
    %972 = vector.load %arg5[%c0_489, %c14_490, %c1_491, %c0_492] : memref<1x16x2x128xf32, #tpu.memory_space<vmem>>, vector<1x1x1x128xf32>
    %973 = vector.shape_cast %972 : vector<1x1x1x128xf32> to vector<1x128xf32>
    %974 = vector.shape_cast %971 : vector<1x128xf32> to vector<1x1x1x128xf32>
    tpu.vector_store %arg5[%c0_489, %c14_490, %c1_491, %c0_492], %974 {strides = array<i32>} : memref<1x16x2x128xf32, #tpu.memory_space<vmem>>, vector<1x1x1x128xf32>,
    %c0_493 = arith.constant 0 : index
    %c15 = arith.constant 15 : index
    %c0_494 = arith.constant 0 : index
    %c0_495 = arith.constant 0 : index
    %975 = vector.load %arg4[%c0_493, %c15, %c0_494, %c0_495] : memref<1x16x2x128xf32, #tpu.memory_space<vmem>>, vector<1x1x2x128xf32>
    %976 = vector.shape_cast %975 : vector<1x1x2x128xf32> to vector<2x128xf32>
    %cst_496 = arith.constant dense<0.000000e+00> : vector<128xf32>
    %977 = vector.multi_reduction <add>, %976, %cst_496 [0] : vector<2x128xf32> to vector<128xf32>
    %978 = vector.shape_cast %977 : vector<128xf32> to vector<1x128xf32>
    %979 = arith.mulf %976, %976 : vector<2x128xf32>
    %cst_497 = arith.constant dense<0.000000e+00> : vector<128xf32>
    %980 = vector.multi_reduction <add>, %979, %cst_497 [0] : vector<2x128xf32> to vector<128xf32>
    %981 = vector.shape_cast %980 : vector<128xf32> to vector<1x128xf32>
    %cst_498 = arith.constant dense<0.000000e+00> : vector<1xf32>
    %982 = vector.multi_reduction <add>, %978, %cst_498 [1] : vector<1x128xf32> to vector<1xf32>
    %983 = vector.shape_cast %982 : vector<1xf32> to vector<1x1xf32>
    %cst_499 = arith.constant dense<0.000000e+00> : vector<1xf32>
    %984 = vector.multi_reduction <add>, %981, %cst_499 [1] : vector<1x128xf32> to vector<1xf32>
    %985 = vector.shape_cast %984 : vector<1xf32> to vector<1x1xf32>
    %cst_500 = arith.constant 3.906250e-03 : f32
    %986 = vector.broadcast %cst_500 : f32 to vector<1x1xf32>
    %987 = arith.mulf %983, %986 : vector<1x1xf32>
    %988 = arith.mulf %983, %987 : vector<1x1xf32>
    %989 = arith.subf %985, %988 : vector<1x1xf32>
    %cst_501 = arith.constant 0.000000e+00 : f32
    %990 = vector.broadcast %cst_501 : f32 to vector<1x1xf32>
    %991 = arith.maximumf %989, %990 : vector<1x1xf32>
    %cst_502 = arith.constant 0.00392156886 : f32
    %992 = vector.broadcast %cst_502 : f32 to vector<1x1xf32>
    %993 = arith.mulf %991, %992 : vector<1x1xf32>
    %cst_503 = arith.constant 9.99999974E-6 : f32
    %994 = vector.broadcast %cst_503 : f32 to vector<1x1xf32>
    %995 = arith.addf %993, %994 : vector<1x1xf32>
    %996 = math.rsqrt %995 : vector<1x1xf32>
    %c16_i32_504 = arith.constant 16 : i32
    %997 = arith.muli %arg0, %c16_i32_504 : i32
    %c15_i32 = arith.constant 15 : i32
    %998 = arith.addi %997, %c15_i32 : i32
    %c2_i32_505 = arith.constant 2 : i32
    %999 = arith.muli %998, %c2_i32_505 : i32
    %c0_i32_506 = arith.constant 0 : i32
    %1000 = arith.addi %999, %c0_i32_506 : i32
    %1001 = arith.index_cast %1000 : i32 to index
    %1002 = memref.load %arg2[%1001] : memref<32xf32, #tpu.memory_space<smem>>
    %c0_i32_507 = arith.constant 0 : i32
    %1003 = arith.addi %999, %c0_i32_507 : i32
    %1004 = arith.index_cast %1003 : i32 to index
    %1005 = memref.load %arg3[%1004] : memref<32xf32, #tpu.memory_space<smem>>
    %1006 = vector.broadcast %1002 : f32 to vector<1x1xf32>
    %1007 = arith.mulf %1006, %996 : vector<1x1xf32>
    %1008 = arith.mulf %987, %1007 : vector<1x1xf32>
    %1009 = vector.broadcast %1005 : f32 to vector<1x1xf32>
    %1010 = arith.subf %1009, %1008 : vector<1x1xf32>
    %c0_508 = arith.constant 0 : index
    %c15_509 = arith.constant 15 : index
    %c0_510 = arith.constant 0 : index
    %c0_511 = arith.constant 0 : index
    %1011 = vector.load %arg4[%c0_508, %c15_509, %c0_510, %c0_511] : memref<1x16x2x128xf32, #tpu.memory_space<vmem>>, vector<1x1x1x128xf32>
    %1012 = vector.shape_cast %1011 : vector<1x1x1x128xf32> to vector<1x128xf32>
    %1013 = vector.broadcast %1007 : vector<1x1xf32> to vector<1x128xf32>
    %1014 = arith.mulf %1012, %1013 : vector<1x128xf32>
    %1015 = vector.broadcast %1010 : vector<1x1xf32> to vector<1x128xf32>
    %1016 = arith.addf %1014, %1015 : vector<1x128xf32>
    %c0_512 = arith.constant 0 : index
    %c15_513 = arith.constant 15 : index
    %c0_514 = arith.constant 0 : index
    %c0_515 = arith.constant 0 : index
    %1017 = vector.load %arg5[%c0_512, %c15_513, %c0_514, %c0_515] : memref<1x16x2x128xf32, #tpu.memory_space<vmem>>, vector<1x1x1x128xf32>
    %1018 = vector.shape_cast %1017 : vector<1x1x1x128xf32> to vector<1x128xf32>
    %1019 = vector.shape_cast %1016 : vector<1x128xf32> to vector<1x1x1x128xf32>
    tpu.vector_store %arg5[%c0_512, %c15_513, %c0_514, %c0_515], %1019 {strides = array<i32>} : memref<1x16x2x128xf32, #tpu.memory_space<vmem>>, vector<1x1x1x128xf32>,
    %c1_i32_516 = arith.constant 1 : i32
    %1020 = arith.addi %999, %c1_i32_516 : i32
    %1021 = arith.index_cast %1020 : i32 to index
    %1022 = memref.load %arg2[%1021] : memref<32xf32, #tpu.memory_space<smem>>
    %c1_i32_517 = arith.constant 1 : i32
    %1023 = arith.addi %999, %c1_i32_517 : i32
    %1024 = arith.index_cast %1023 : i32 to index
    %1025 = memref.load %arg3[%1024] : memref<32xf32, #tpu.memory_space<smem>>
    %1026 = vector.broadcast %1022 : f32 to vector<1x1xf32>
    %1027 = arith.mulf %1026, %996 : vector<1x1xf32>
    %1028 = arith.mulf %987, %1027 : vector<1x1xf32>
    %1029 = vector.broadcast %1025 : f32 to vector<1x1xf32>
    %1030 = arith.subf %1029, %1028 : vector<1x1xf32>
    %c0_518 = arith.constant 0 : index
    %c15_519 = arith.constant 15 : index
    %c1_520 = arith.constant 1 : index
    %c0_521 = arith.constant 0 : index
    %1031 = vector.load %arg4[%c0_518, %c15_519, %c1_520, %c0_521] : memref<1x16x2x128xf32, #tpu.memory_space<vmem>>, vector<1x1x1x128xf32>
    %1032 = vector.shape_cast %1031 : vector<1x1x1x128xf32> to vector<1x128xf32>
    %1033 = vector.broadcast %1027 : vector<1x1xf32> to vector<1x128xf32>
    %1034 = arith.mulf %1032, %1033 : vector<1x128xf32>
    %1035 = vector.broadcast %1030 : vector<1x1xf32> to vector<1x128xf32>
    %1036 = arith.addf %1034, %1035 : vector<1x128xf32>
    %c0_522 = arith.constant 0 : index
    %c15_523 = arith.constant 15 : index
    %c1_524 = arith.constant 1 : index
    %c0_525 = arith.constant 0 : index
    %1037 = vector.load %arg5[%c0_522, %c15_523, %c1_524, %c0_525] : memref<1x16x2x128xf32, #tpu.memory_space<vmem>>, vector<1x1x1x128xf32>
    %1038 = vector.shape_cast %1037 : vector<1x1x1x128xf32> to vector<1x128xf32>
    %1039 = vector.shape_cast %1036 : vector<1x128xf32> to vector<1x1x1x128xf32>
    tpu.vector_store %arg5[%c0_522, %c15_523, %c1_524, %c0_525], %1039 {strides = array<i32>} : memref<1x16x2x128xf32, #tpu.memory_space<vmem>>, vector<1x1x1x128xf32>,
    return
  }
  func.func @transform_0(%arg0: i32, %arg1: i32) -> i32 {
    %c0_i32 = arith.constant 0 : i32
    %c0_i32_0 = arith.constant 0 : i32
    return %c0_i32 : i32
  }
  func.func @transform_1(%arg0: i32, %arg1: i32) -> i32 {
    %c0_i32 = arith.constant 0 : i32
    %c0_i32_0 = arith.constant 0 : i32
    return %c0_i32 : i32
  }
  func.func @transform_2(%arg0: i32, %arg1: i32) -> (i32, i32, i32, i32) {
    %c0_i32 = arith.constant 0 : i32
    %c0_i32_0 = arith.constant 0 : i32
    %c0_i32_1 = arith.constant 0 : i32
    return %arg1, %arg0, %c0_i32, %c0_i32_0 : i32, i32, i32, i32
  }
  func.func @transform_3(%arg0: i32, %arg1: i32) -> (i32, i32, i32, i32) {
    %c0_i32 = arith.constant 0 : i32
    %c0_i32_0 = arith.constant 0 : i32
    %c0_i32_1 = arith.constant 0 : i32
    return %arg1, %arg0, %c0_i32, %c0_i32_0 : i32, i32, i32, i32
  }
}

</mosaic_0001>

<llo_original>
// kernel: tpu_custom_call.1
$region0: #{tpu_custom_call.1}
  #allocation0 [shape = 'u32[]', space=smem, size = 0x4, offset = 0x4, fixed_abs, tag = 'smem constant byte address 0x4 - core index']
  #allocation1 [shape = 'u32[144,128]{1,0:T(1,128)}', space=vmem, size = 0x12000, scoped, tag = 'internal scratch']
  %s0 = inlined_call_operand.hbm [shape: f32[32], index: 0, kind: input, shape index: {}]
  %s1 = inlined_call_operand.vmem [shape: f32[32], index: 1, kind: input, shape index: {}]
  %s2 = inlined_call_operand.hbm [shape: f32[2,16,2,128], index: 2, kind: input, shape index: {}]
  %s3 = inlined_call_operand.hbm [shape: f32[2,16,2,128], index: 3, kind: output, shape index: {}]
  %s4 = sld [smem:[#allocation0]]
  $region57: #{tpu_custom_call.1} parent=0
    _
  %s6 = ssub.s32 1, %s4
  %s7 = scalar_select 0, %s6, %s4
  $region1: #{tpu_custom_call.1} parent=0
    #allocation2 [shape = 'u8[512]{0}', space=smem, size = 0x200, scoped, tag = 'input window, operand 0, single buffered']
    #allocation3 [shape = 's32[2]{0}', space=sflag, size = 0x8, scoped, tag = 'scoped memory for tpu_custom_call.1']
    #allocation4 [shape = 's32[2]{0}', space=sflag, size = 0x8, scoped, tag = 'scoped memory for tpu_custom_call.1']
    #allocation5 [shape = 's32[2]{0}', space=sflag, size = 0x8, scoped, tag = 'scoped memory for tpu_custom_call.1']
    #allocation6 [shape = 's32[2]{0}', space=sflag, size = 0x8, scoped, tag = 'scoped memory for tpu_custom_call.1']
    #allocation7 [shape = 'u8[512]{0}', space=smem, size = 0x200, scoped, tag = 'input window, operand 1, single buffered']
    #allocation8 [shape = 'u8[32768]{0}', space=vmem, size = 0x8000, scoped, tag = 'input window, operand 2']
    #allocation9 [shape = 'u8[32768]{0}', space=vmem, size = 0x8000, scoped, tag = 'output window, operand 0']
    %8 = vsyncpa [#allocation5], 0
    %9 = vsyncpa [#allocation6], 0
    %10 = vsyncpa [#allocation3], 0
    %s11 = scalar_lea.sflag [#allocation3], 1
    %12 = vsyncpa %s11, 0
    %13 = vsyncpa [#allocation4], 0
    %s14 = scalar_lea.sflag [#allocation4], 1
    %15 = vsyncpa %s14, 0
    loop: start=0, step=1, limit=4
    $region2: #{tpu_custom_call.1} parent=1 // loop_pre_header
      _
    $region3: #{tpu_custom_call.1} parent=1 // loop_header
      %s17 = sphi 0, %s21
      %p18 = scmp.ge.s32.totalorder %s17, 4
      %s24 = sphi 0, %s36
      %s25 = sphi 0, %s32
      %s26 = sphi 0, %s24
      %s27 = sphi 0, %s25
      %s28 = sphi 0, %s26
      %s29 = sphi 0, %s27
      %s37 = sphi 0, %s37
      %s39 = sphi 0, %s37
      %s40 = sphi 0, %s39
      %s54 = sphi 0, %s40
      %s58 = sphi 0, %s58
      %s60 = sphi 0, %s58
      %s61 = sphi 0, %s60
      %s75 = sphi 0, %s61
      %s83 = sphi 0, %s85
      %s86 = sphi 0, %s83
      %s87 = sphi 0, %s86
      %s103 = sphi 0, %s87
      %s111 = sphi 0, %s113
      %s114 = sphi 0, %s111
      %s115 = sphi 0, %s114
      %s131 = sphi 0, %s115
    $region4: #{tpu_custom_call.1} parent=1 // loop_header_branch
      %20 = sbr.rel (%p18) target = $region8
    $region5: #{tpu_custom_call.1} parent=1 // loop_body
      %s22 = ssub.s32 %s17, 1
      %s23 = ssub.s32 %s17, 2
      %s30 = sadd.s32 1, %s25
      %p31 = scmp.ge.s32.totalorder %s30, 2
      %s32 = scalar_select %p31, 0, %s30
      %s33 = sadd.s32 1, %s24
      %s34 = scalar_select %p31, %s33, %s24
      %p35 = scmp.ge.s32.totalorder %s34, 1
      %s36 = scalar_select %p35, 0, %s34
      %s38 = sadd.s32 %s37, 1
      %p41 = scmp.eq.s32.totalorder %s17, 1
      %p42 = scmp.ne.s32.totalorder %s37, %s39
      %p43 = scmp.eq.s32.totalorder %s17, 0
      %p44 = por %p42, %p43
      %p45 = scmp.ne.s32.totalorder %s37, %s39
      %p46 = scmp.eq.s32.totalorder %s22, 1
      %p47 = por %p45, %p46
      %p48 = scmp.ne.s32.totalorder %s39, %s40
      %p49 = scmp.eq.s32.totalorder %s22, 0
      %p50 = por %p48, %p49
      %p51 = scmp.ne.s32.totalorder %s39, %s40
      %p52 = scmp.eq.s32.totalorder %s23, 1
      %p53 = por %p51, %p52
      %p55 = scmp.ne.s32.totalorder %s40, %s54
      %p56 = scmp.eq.s32.totalorder %s23, 0
      %p57 = por %p55, %p56
      %s59 = sadd.s32 %s58, 1
      %p62 = scmp.eq.s32.totalorder %s17, 1
      %p63 = scmp.ne.s32.totalorder %s58, %s60
      %p64 = scmp.eq.s32.totalorder %s17, 0
      %p65 = por %p63, %p64
      %p66 = scmp.ne.s32.totalorder %s58, %s60
      %p67 = scmp.eq.s32.totalorder %s22, 1
      %p68 = por %p66, %p67
      %p69 = scmp.ne.s32.totalorder %s60, %s61
      %p70 = scmp.eq.s32.totalorder %s22, 0
      %p71 = por %p69, %p70
      %p72 = scmp.ne.s32.totalorder %s60, %s61
      %p73 = scmp.eq.s32.totalorder %s23, 1
      %p74 = por %p72, %p73
      %p76 = scmp.ne.s32.totalorder %s61, %s75
      %p77 = scmp.eq.s32.totalorder %s23, 0
      %p78 = por %p76, %p77
      %s79 = ssub.s32 %s25, %s32
      %s80 = ssub.s32 %s24, %s36
      %s81 = sor.u32 %s79, %s80
      %p82 = scmp.eq.s32.totalorder %s81, 0
      %s84 = sadd.s32 %s83, 1
      %s85 = scalar_select %p82, %s83, %s84
      %p88 = pneg %p82
      %p89 = scmp.eq.s32.totalorder %s17, 1
      %p90 = por %p88, %p89
      %p91 = scmp.ne.s32.totalorder %s83, %s86
      %p92 = scmp.eq.s32.totalorder %s17, 0
      %p93 = por %p91, %p92
      %p94 = scmp.ne.s32.totalorder %s83, %s86
      %p95 = scmp.eq.s32.totalorder %s22, 1
      %p96 = por %p94, %p95
      %p97 = scmp.ne.s32.totalorder %s86, %s87
      %p98 = scmp.eq.s32.totalorder %s22, 0
      %p99 = por %p97, %p98
      %p100 = scmp.ne.s32.totalorder %s86, %s87
      %p101 = scmp.eq.s32.totalorder %s23, 1
      %p102 = por %p100, %p101
      %p104 = scmp.ne.s32.totalorder %s87, %s103
      %p105 = scmp.eq.s32.totalorder %s23, 0
      %p106 = por %p104, %p105
      %s107 = ssub.s32 %s25, %s32
      %s108 = ssub.s32 %s24, %s36
      %s109 = sor.u32 %s107, %s108
      %p110 = scmp.eq.s32.totalorder %s109, 0
      %s112 = sadd.s32 %s111, 1
      %s113 = scalar_select %p110, %s111, %s112
      %p116 = pneg %p110
      %p117 = scmp.eq.s32.totalorder %s17, 1
      %p118 = por %p116, %p117
      %p119 = scmp.ne.s32.totalorder %s111, %s114
      %p120 = scmp.eq.s32.totalorder %s17, 0
      %p121 = por %p119, %p120
      %p122 = scmp.ne.s32.totalorder %s111, %s114
      %p123 = scmp.eq.s32.totalorder %s22, 1
      %p124 = por %p122, %p123
      %p125 = scmp.ne.s32.totalorder %s114, %s115
      %p126 = scmp.eq.s32.totalorder %s22, 0
      %p127 = por %p125, %p126
      %p128 = scmp.ne.s32.totalorder %s114, %s115
      %p129 = scmp.eq.s32.totalorder %s23, 1
      %p130 = por %p128, %p129
      %p132 = scmp.ne.s32.totalorder %s115, %s131
      %p133 = scmp.eq.s32.totalorder %s23, 0
      %p134 = por %p132, %p133
      %p135 = scmp.le.s32.totalorder 1, %s17
      %p136 = scmp.lt.s32.totalorder %s17, 3
      %p137 = pnand %p135, %p136
      %p138 = pneg %p137
      // Predicated region
      $region9: #{tpu_custom_call.1} parent=5 // pred_check
        _
      $region10: #{tpu_custom_call.1} parent=5 // pred_check_branch
        %140 = sbr.rel (%p137) target = $region12
      $region11: #{tpu_custom_call.1} parent=5 // pred_region
        %s141 = ssub.s32 %s17, 1
        // Predicated region
        $region13: #{tpu_custom_call.1} parent=11 // pred_check
          %p142 = pneg %p50
        $region14: #{tpu_custom_call.1} parent=11 // pred_check_branch
          %144 = sbr.rel (%p142) target = $region16
        $region15: #{tpu_custom_call.1} parent=11 // pred_region
          %s146 = ssub.s32 16, 16
          %147 = vsyncadd [#allocation5], %s146
          %150 = dma.hbm_to_smem %s0, 16, [#allocation2], [#allocation5]
        $region16: #{tpu_custom_call.1} parent=11 // pred_fallthru
          _
        // Predicated region
        $region17: #{tpu_custom_call.1} parent=11 // pred_check
          %p151 = pneg %p71
        $region18: #{tpu_custom_call.1} parent=11 // pred_check_branch
          %153 = sbr.rel (%p151) target = $region20
        $region19: #{tpu_custom_call.1} parent=11 // pred_region
          %s155 = ssub.s32 16, 16
          %156 = vsyncadd [#allocation6], %s155
          %s158 = sshll.u32 %s1, 4
          %s159 = int_to_ptr.vmem [resolvable:$true] %s158
          %161 = dma.vmem_to_smem %s159, 16, [#allocation7], [#allocation6]
        $region20: #{tpu_custom_call.1} parent=11 // pred_fallthru
          _
      $region12: #{tpu_custom_call.1} parent=5 // pred_fallthru
        _
      %p162 = scmp.lt.s32.totalorder %s17, 2
      // Predicated region
      $region21: #{tpu_custom_call.1} parent=5 // pred_check
        %p163 = pneg %p162
      $region22: #{tpu_custom_call.1} parent=5 // pred_check_branch
        %165 = sbr.rel (%p163) target = $region24
      $region23: #{tpu_custom_call.1} parent=5 // pred_region
        // Predicated region
        $region25: #{tpu_custom_call.1} parent=23 // pred_check
          %p166 = pneg %p93
        $region26: #{tpu_custom_call.1} parent=23 // pred_check_branch
          %168 = sbr.rel (%p166) target = $region28
        $region27: #{tpu_custom_call.1} parent=23 // pred_region
          %s169 = sand.u32 %s83, 1
          %s170 = scalar_lea.sflag [#allocation3], %s169
          %s171 = sand.u32 %s83, 1
          %s172 = smul.addr %s171, 32
          %s173 = scalar_lea.vmem [#allocation8], %s172
          %s174 = smul.u32 16, %s24
          %s176 = ssub.s32 512, 512
          %177 = vsyncadd %s170, %s176
          %s178 = smul.addr %s25, 16
          %s179 = sadd.s32 %s174, %s178
          %s180 = smul.addr %s179, 32
          %s181 = scalar_lea.hbm %s2, %s180
          %s182 = sshll.u32 %s173, 4
          %s183 = int_to_ptr.vmem [resolvable:$true] %s182
          %188 = dma.hbm_to_vmem [thread:$0]  %s181, 512, %s183, %s170, 32, 32, 2
        $region28: #{tpu_custom_call.1} parent=23 // pred_fallthru
          _
      $region24: #{tpu_custom_call.1} parent=5 // pred_fallthru
        _
      %p189 = scmp.le.s32.totalorder 1, %s17
      %p190 = scmp.lt.s32.totalorder %s17, 3
      %p191 = pnand %p189, %p190
      %p192 = pneg %p191
      // Predicated region
      $region29: #{tpu_custom_call.1} parent=5 // pred_check
        _
      $region30: #{tpu_custom_call.1} parent=5 // pred_check_branch
        %194 = sbr.rel (%p191) target = $region32
      $region31: #{tpu_custom_call.1} parent=5 // pred_region
        %s195 = ssub.s32 %s17, 1
        // Predicated region
        $region33: #{tpu_custom_call.1} parent=31 // pred_check
          %p196 = pneg %p50
        $region34: #{tpu_custom_call.1} parent=31 // pred_check_branch
          %198 = sbr.rel (%p196) target = $region36
        $region35: #{tpu_custom_call.1} parent=31 // pred_region
          %199 = dma.done [#allocation5], 16
        $region36: #{tpu_custom_call.1} parent=31 // pred_fallthru
          _
        // Predicated region
        $region37: #{tpu_custom_call.1} parent=31 // pred_check
          %p200 = pneg %p71
        $region38: #{tpu_custom_call.1} parent=31 // pred_check_branch
          %202 = sbr.rel (%p200) target = $region40
        $region39: #{tpu_custom_call.1} parent=31 // pred_region
          %203 = dma.done [#allocation6], 16
        $region40: #{tpu_custom_call.1} parent=31 // pred_fallthru
          _
        %s204 = sand.u32 %s86, 1
        %s205 = scalar_lea.sflag [#allocation3], %s204
        %s206 = sand.u32 %s86, 1
        %s207 = smul.addr %s206, 32
        %s208 = scalar_lea.vmem [#allocation8], %s207
        // Predicated region
        $region41: #{tpu_custom_call.1} parent=31 // pred_check
          %p209 = pneg %p99
        $region42: #{tpu_custom_call.1} parent=31 // pred_check_branch
          %211 = sbr.rel (%p209) target = $region44
        $region43: #{tpu_custom_call.1} parent=31 // pred_region
          %212 = dma.done %s205, 512
        $region44: #{tpu_custom_call.1} parent=31 // pred_fallthru
          _
        %213 = sfence
        %p214 = pneg %p50
        %p215 = pneg %p47
        %p216 = pneg %p71
        %p217 = pneg %p68
        %s218 = sand.u32 %s86, 1
        %s219 = scalar_lea.sflag [#allocation3], %s218
        %s220 = sand.u32 %s86, 1
        %s221 = smul.addr %s220, 32
        %s222 = scalar_lea.vmem [#allocation8], %s221
        %p223 = pneg %p99
        %p224 = pneg %p96
        %p225 = pneg %p127
        %p226 = pneg %p124
        %s227 = sand.u32 %s114, 1
        %s228 = scalar_lea.sflag [#allocation4], %s227
        %s229 = sand.u32 %s114, 1
        %s230 = smul.addr %s229, 32
        %s231 = scalar_lea.vmem [#allocation9], %s230
        %s232 = smul.u32 16, %s26
        %s233 = smul.u32 16, %s26
        %v234 = vld [vmem:[%s208] sm:$0x3]
        %vm235 = vcmask 1041408
        %v236 = vsel %vm235, %v234, 0.0
        %v237 = vrot.slane %v236, 4
        %v238 = vadd.f32 %v236, %v237
        %v239 = vrot.slane %v238, 2
        %v240 = vadd.f32 %v238, %v239
        %v241 = vrot.slane %v240, 1
        %v242 = vadd.f32 %v240, %v241
        %v243 = vmul.f32 %v234, %v234
        %v244 = vsel %vm235, %v243, 0.0
        %v245 = vrot.slane %v244, 4
        %v246 = vadd.f32 %v244, %v245
        %v247 = vrot.slane %v246, 2
        %v248 = vadd.f32 %v246, %v247
        %v249 = vrot.slane %v248, 1
        %v250 = vadd.f32 %v248, %v249
        %251 = vadd.xlane.f32.xlu0 %v242
        %v252 = vpop.xlane.xlu0 %251
        %253 = vadd.xlane.f32.xlu0 %v250
        %v254 = vpop.xlane.xlu0 %253
        %v255 = vmul.f32 %v252, 0.00390625
        %v256 = vmul.f32 %v252, %v255
        %v257 = vsub.f32 %v254, %v256
        %v258 = vmax.f32 %v257, 0.0
        %v259 = vmul.f32 %v258, 0.003921569
        %v260 = vadd.f32 %v259, 1e-05
        %v261 = vrsqrt.pop %v260
        %s262 = smul.u32 %s26, 32
        %s263 = sld [smem:[#allocation2 + %s262]]
        %s264 = sld [smem:[#allocation7 + %s262]]
        %v265 = vstv %s263
        %v266 = vmul.f32 %v265, %v261
        %v267 = vmul.f32 %v255, %v266
        %v268 = vstv %s264
        %v269 = vsub.f32 %v268, %v267
        %v270 = vld [vmem:[%s208] sm:$0x1]
        %v271 = vmul.f32 %v270, %v266
        %v272 = vadd.f32 %v271, %v269
        %273 = vst [vmem:[%s231] sm:$0x1] %v272
        %s274 = sadd.s32 %s262, 1
        %s275 = sld [smem:[#allocation2 + %s274]]
        %s276 = sld [smem:[#allocation7 + %s274]]
        %v277 = vstv %s275
        %v278 = vmul.f32 %v277, %v261
        %v279 = vmul.f32 %v255, %v278
        %v280 = vstv %s276
        %v281 = vsub.f32 %v280, %v279
        %v282 = vld [vmem:[%s208 + $0x1] sm:$0x1]
        %v283 = vmul.f32 %v282, %v278
        %v284 = vadd.f32 %v283, %v281
        %285 = vst [vmem:[%s231 + $0x1] sm:$0x1] %v284
        %s286 = scalar_lea.vmem %s208, 2 [#allocation8]
        %v287 = vld [vmem:[%s286] sm:$0x3]
        %v288 = vsel %vm235, %v287, 0.0
        %v289 = vrot.slane %v288, 4
        %v290 = vadd.f32 %v288, %v289
        %v291 = vrot.slane %v290, 2
        %v292 = vadd.f32 %v290, %v291
        %v293 = vrot.slane %v292, 1
        %v294 = vadd.f32 %v292, %v293
        %v295 = vmul.f32 %v287, %v287
        %v296 = vsel %vm235, %v295, 0.0
        %v297 = vrot.slane %v296, 4
        %v298 = vadd.f32 %v296, %v297
        %v299 = vrot.slane %v298, 2
        %v300 = vadd.f32 %v298, %v299
        %v301 = vrot.slane %v300, 1
        %v302 = vadd.f32 %v300, %v301
        %303 = vadd.xlane.f32.xlu0 %v294
        %v304 = vpop.xlane.xlu0 %303
        %305 = vadd.xlane.f32.xlu0 %v302
        %v306 = vpop.xlane.xlu0 %305
        %v307 = vmul.f32 %v304, 0.00390625
        %v308 = vmul.f32 %v304, %v307
        %v309 = vsub.f32 %v306, %v308
        %v310 = vmax.f32 %v309, 0.0
        %v311 = vmul.f32 %v310, 0.003921569
        %v312 = vadd.f32 %v311, 1e-05
        %v313 = vrsqrt.pop %v312
        %s314 = smul.u32 %s26, 16
        %s315 = sadd.s32 %s314, 1
        %s316 = smul.u32 %s315, 2
        %s317 = sld [smem:[#allocation2 + %s316]]
        %s318 = sld [smem:[#allocation7 + %s316]]
        %v319 = vstv %s317
        %v320 = vmul.f32 %v319, %v313
        %v321 = vmul.f32 %v307, %v320
        %v322 = vstv %s318
        %v323 = vsub.f32 %v322, %v321
        %v324 = vld [vmem:[%s286] sm:$0x1]
        %v325 = vmul.f32 %v324, %v320
        %v326 = vadd.f32 %v325, %v323
        %s327 = scalar_lea.vmem %s231, 2 [#allocation9]
        %328 = vst [vmem:[%s327] sm:$0x1] %v326
        %s329 = sadd.s32 %s316, 1
        %s330 = sld [smem:[#allocation2 + %s329]]
        %s331 = sld [smem:[#allocation7 + %s329]]
        %v332 = vstv %s330
        %v333 = vmul.f32 %v332, %v313
        %v334 = vmul.f32 %v307, %v333
        %v335 = vstv %s331
        %v336 = vsub.f32 %v335, %v334
        %v337 = vld [vmem:[%s286 + $0x1] sm:$0x1]
        %v338 = vmul.f32 %v337, %v333
        %v339 = vadd.f32 %v338, %v336
        %340 = vst [vmem:[%s327 + $0x1] sm:$0x1] %v339
        %s341 = scalar_lea.vmem %s208, 4 [#allocation8]
        %v342 = vld [vmem:[%s341] sm:$0x3]
        %v343 = vsel %vm235, %v342, 0.0
        %v344 = vrot.slane %v343, 4
        %v345 = vadd.f32 %v343, %v344
        %v346 = vrot.slane %v345, 2
        %v347 = vadd.f32 %v345, %v346
        %v348 = vrot.slane %v347, 1
        %v349 = vadd.f32 %v347, %v348
        %v350 = vmul.f32 %v342, %v342
        %v351 = vsel %vm235, %v350, 0.0
        %v352 = vrot.slane %v351, 4
        %v353 = vadd.f32 %v351, %v352
        %v354 = vrot.slane %v353, 2
        %v355 = vadd.f32 %v353, %v354
        %v356 = vrot.slane %v355, 1
        %v357 = vadd.f32 %v355, %v356
        %358 = vadd.xlane.f32.xlu0 %v349
        %v359 = vpop.xlane.xlu0 %358
        %360 = vadd.xlane.f32.xlu0 %v357
        %v361 = vpop.xlane.xlu0 %360
        %v362 = vmul.f32 %v359, 0.00390625
        %v363 = vmul.f32 %v359, %v362
        %v364 = vsub.f32 %v361, %v363
        %v365 = vmax.f32 %v364, 0.0
        %v366 = vmul.f32 %v365, 0.003921569
        %v367 = vadd.f32 %v366, 1e-05
        %v368 = vrsqrt.pop %v367
        %s369 = sadd.s32 %s314, 2
        %s370 = smul.u32 %s369, 2
        %s371 = sld [smem:[#allocation2 + %s370]]
        %s372 = sld [smem:[#allocation7 + %s370]]
        %v373 = vstv %s371
        %v374 = vmul.f32 %v373, %v368
        %v375 = vmul.f32 %v362, %v374
        %v376 = vstv %s372
        %v377 = vsub.f32 %v376, %v375
        %v378 = vld [vmem:[%s341] sm:$0x1]
        %v379 = vmul.f32 %v378, %v374
        %v380 = vadd.f32 %v379, %v377
        %s381 = scalar_lea.vmem %s231, 4 [#allocation9]
        %382 = vst [vmem:[%s381] sm:$0x1] %v380
        %s383 = sadd.s32 %s370, 1
        %s384 = sld [smem:[#allocation2 + %s383]]
        %s385 = sld [smem:[#allocation7 + %s383]]
        %v386 = vstv %s384
        %v387 = vmul.f32 %v386, %v368
        %v388 = vmul.f32 %v362, %v387
        %v389 = vstv %s385
        %v390 = vsub.f32 %v389, %v388
        %v391 = vld [vmem:[%s341 + $0x1] sm:$0x1]
        %v392 = vmul.f32 %v391, %v387
        %v393 = vadd.f32 %v392, %v390
        %394 = vst [vmem:[%s381 + $0x1] sm:$0x1] %v393
        %s395 = scalar_lea.vmem %s208, 6 [#allocation8]
        %v396 = vld [vmem:[%s395] sm:$0x3]
        %v397 = vsel %vm235, %v396, 0.0
        %v398 = vrot.slane %v397, 4
        %v399 = vadd.f32 %v397, %v398
        %v400 = vrot.slane %v399, 2
        %v401 = vadd.f32 %v399, %v400
        %v402 = vrot.slane %v401, 1
        %v403 = vadd.f32 %v401, %v402
        %v404 = vmul.f32 %v396, %v396
        %v405 = vsel %vm235, %v404, 0.0
        %v406 = vrot.slane %v405, 4
        %v407 = vadd.f32 %v405, %v406
        %v408 = vrot.slane %v407, 2
        %v409 = vadd.f32 %v407, %v408
        %v410 = vrot.slane %v409, 1
        %v411 = vadd.f32 %v409, %v410
        %412 = vadd.xlane.f32.xlu0 %v403
        %v413 = vpop.xlane.xlu0 %412
        %414 = vadd.xlane.f32.xlu0 %v411
        %v415 = vpop.xlane.xlu0 %414
        %v416 = vmul.f32 %v413, 0.00390625
        %v417 = vmul.f32 %v413, %v416
        %v418 = vsub.f32 %v415, %v417
        %v419 = vmax.f32 %v418, 0.0
        %v420 = vmul.f32 %v419, 0.003921569
        %v421 = vadd.f32 %v420, 1e-05
        %v422 = vrsqrt.pop %v421
        %s423 = sadd.s32 %s314, 3
        %s424 = smul.u32 %s423, 2
        %s425 = sld [smem:[#allocation2 + %s424]]
        %s426 = sld [smem:[#allocation7 + %s424]]
        %v427 = vstv %s425
        %v428 = vmul.f32 %v427, %v422
        %v429 = vmul.f32 %v416, %v428
        %v430 = vstv %s426
        %v431 = vsub.f32 %v430, %v429
        %v432 = vld [vmem:[%s395] sm:$0x1]
        %v433 = vmul.f32 %v432, %v428
        %v434 = vadd.f32 %v433, %v431
        %s435 = scalar_lea.vmem %s231, 6 [#allocation9]
        %436 = vst [vmem:[%s435] sm:$0x1] %v434
        %s437 = sadd.s32 %s424, 1
        %s438 = sld [smem:[#allocation2 + %s437]]
        %s439 = sld [smem:[#allocation7 + %s437]]
        %v440 = vstv %s438
        %v441 = vmul.f32 %v440, %v422
        %v442 = vmul.f32 %v416, %v441
        %v443 = vstv %s439
        %v444 = vsub.f32 %v443, %v442
        %v445 = vld [vmem:[%s395 + $0x1] sm:$0x1]
        %v446 = vmul.f32 %v445, %v441
        %v447 = vadd.f32 %v446, %v444
        %448 = vst [vmem:[%s435 + $0x1] sm:$0x1] %v447
        %s449 = scalar_lea.vmem %s208, 8 [#allocation8]
        %v450 = vld [vmem:[%s449] sm:$0x3]
        %v451 = vsel %vm235, %v450, 0.0
        %v452 = vrot.slane %v451, 4
        %v453 = vadd.f32 %v451, %v452
        %v454 = vrot.slane %v453, 2
        %v455 = vadd.f32 %v453, %v454
        %v456 = vrot.slane %v455, 1
        %v457 = vadd.f32 %v455, %v456
        %v458 = vmul.f32 %v450, %v450
        %v459 = vsel %vm235, %v458, 0.0
        %v460 = vrot.slane %v459, 4
        %v461 = vadd.f32 %v459, %v460
        %v462 = vrot.slane %v461, 2
        %v463 = vadd.f32 %v461, %v462
        %v464 = vrot.slane %v463, 1
        %v465 = vadd.f32 %v463, %v464
        %466 = vadd.xlane.f32.xlu0 %v457
        %v467 = vpop.xlane.xlu0 %466
        %468 = vadd.xlane.f32.xlu0 %v465
        %v469 = vpop.xlane.xlu0 %468
        %v470 = vmul.f32 %v467, 0.00390625
        %v471 = vmul.f32 %v467, %v470
        %v472 = vsub.f32 %v469, %v471
        %v473 = vmax.f32 %v472, 0.0
        %v474 = vmul.f32 %v473, 0.003921569
        %v475 = vadd.f32 %v474, 1e-05
        %v476 = vrsqrt.pop %v475
        %s477 = sadd.s32 %s314, 4
        %s478 = smul.u32 %s477, 2
        %s479 = sld [smem:[#allocation2 + %s478]]
        %s480 = sld [smem:[#allocation7 + %s478]]
        %v481 = vstv %s479
        %v482 = vmul.f32 %v481, %v476
        %v483 = vmul.f32 %v470, %v482
        %v484 = vstv %s480
        %v485 = vsub.f32 %v484, %v483
        %v486 = vld [vmem:[%s449] sm:$0x1]
        %v487 = vmul.f32 %v486, %v482
        %v488 = vadd.f32 %v487, %v485
        %s489 = scalar_lea.vmem %s231, 8 [#allocation9]
        %490 = vst [vmem:[%s489] sm:$0x1] %v488
        %s491 = sadd.s32 %s478, 1
        %s492 = sld [smem:[#allocation2 + %s491]]
        %s493 = sld [smem:[#allocation7 + %s491]]
        %v494 = vstv %s492
        %v495 = vmul.f32 %v494, %v476
        %v496 = vmul.f32 %v470, %v495
        %v497 = vstv %s493
        %v498 = vsub.f32 %v497, %v496
        %v499 = vld [vmem:[%s449 + $0x1] sm:$0x1]
        %v500 = vmul.f32 %v499, %v495
        %v501 = vadd.f32 %v500, %v498
        %502 = vst [vmem:[%s489 + $0x1] sm:$0x1] %v501
        %s503 = scalar_lea.vmem %s208, 10 [#allocation8]
        %v504 = vld [vmem:[%s503] sm:$0x3]
        %v505 = vsel %vm235, %v504, 0.0
        %v506 = vrot.slane %v505, 4
        %v507 = vadd.f32 %v505, %v506
        %v508 = vrot.slane %v507, 2
        %v509 = vadd.f32 %v507, %v508
        %v510 = vrot.slane %v509, 1
        %v511 = vadd.f32 %v509, %v510
        %v512 = vmul.f32 %v504, %v504
        %v513 = vsel %vm235, %v512, 0.0
        %v514 = vrot.slane %v513, 4
        %v515 = vadd.f32 %v513, %v514
        %v516 = vrot.slane %v515, 2
        %v517 = vadd.f32 %v515, %v516
        %v518 = vrot.slane %v517, 1
        %v519 = vadd.f32 %v517, %v518
        %520 = vadd.xlane.f32.xlu0 %v511
        %v521 = vpop.xlane.xlu0 %520
        %522 = vadd.xlane.f32.xlu0 %v519
        %v523 = vpop.xlane.xlu0 %522
        %v524 = vmul.f32 %v521, 0.00390625
        %v525 = vmul.f32 %v521, %v524
        %v526 = vsub.f32 %v523, %v525
        %v527 = vmax.f32 %v526, 0.0
        %v528 = vmul.f32 %v527, 0.003921569
        %v529 = vadd.f32 %v528, 1e-05
        %v530 = vrsqrt.pop %v529
        %s531 = sadd.s32 %s314, 5
        %s532 = smul.u32 %s531, 2
        %s533 = sld [smem:[#allocation2 + %s532]]
        %s534 = sld [smem:[#allocation7 + %s532]]
        %v535 = vstv %s533
        %v536 = vmul.f32 %v535, %v530
        %v537 = vmul.f32 %v524, %v536
        %v538 = vstv %s534
        %v539 = vsub.f32 %v538, %v537
        %v540 = vld [vmem:[%s503] sm:$0x1]
        %v541 = vmul.f32 %v540, %v536
        %v542 = vadd.f32 %v541, %v539
        %s543 = scalar_lea.vmem %s231, 10 [#allocation9]
        %544 = vst [vmem:[%s543] sm:$0x1] %v542
        %s545 = sadd.s32 %s532, 1
        %s546 = sld [smem:[#allocation2 + %s545]]
        %s547 = sld [smem:[#allocation7 + %s545]]
        %v548 = vstv %s546
        %v549 = vmul.f32 %v548, %v530
        %v550 = vmul.f32 %v524, %v549
        %v551 = vstv %s547
        %v552 = vsub.f32 %v551, %v550
        %v553 = vld [vmem:[%s503 + $0x1] sm:$0x1]
        %v554 = vmul.f32 %v553, %v549
        %v555 = vadd.f32 %v554, %v552
        %556 = vst [vmem:[%s543 + $0x1] sm:$0x1] %v555
        %s557 = scalar_lea.vmem %s208, 12 [#allocation8]
        %v558 = vld [vmem:[%s557] sm:$0x3]
        %v559 = vsel %vm235, %v558, 0.0
        %v560 = vrot.slane %v559, 4
        %v561 = vadd.f32 %v559, %v560
        %v562 = vrot.slane %v561, 2
        %v563 = vadd.f32 %v561, %v562
        %v564 = vrot.slane %v563, 1
        %v565 = vadd.f32 %v563, %v564
        %v566 = vmul.f32 %v558, %v558
        %v567 = vsel %vm235, %v566, 0.0
        %v568 = vrot.slane %v567, 4
        %v569 = vadd.f32 %v567, %v568
        %v570 = vrot.slane %v569, 2
        %v571 = vadd.f32 %v569, %v570
        %v572 = vrot.slane %v571, 1
        %v573 = vadd.f32 %v571, %v572
        %574 = vadd.xlane.f32.xlu0 %v565
        %v575 = vpop.xlane.xlu0 %574
        %576 = vadd.xlane.f32.xlu0 %v573
        %v577 = vpop.xlane.xlu0 %576
        %v578 = vmul.f32 %v575, 0.00390625
        %v579 = vmul.f32 %v575, %v578
        %v580 = vsub.f32 %v577, %v579
        %v581 = vmax.f32 %v580, 0.0
        %v582 = vmul.f32 %v581, 0.003921569
        %v583 = vadd.f32 %v582, 1e-05
        %v584 = vrsqrt.pop %v583
        %s585 = sadd.s32 %s314, 6
        %s586 = smul.u32 %s585, 2
        %s587 = sld [smem:[#allocation2 + %s586]]
        %s588 = sld [smem:[#allocation7 + %s586]]
        %v589 = vstv %s587
        %v590 = vmul.f32 %v589, %v584
        %v591 = vmul.f32 %v578, %v590
        %v592 = vstv %s588
        %v593 = vsub.f32 %v592, %v591
        %v594 = vld [vmem:[%s557] sm:$0x1]
        %v595 = vmul.f32 %v594, %v590
        %v596 = vadd.f32 %v595, %v593
        %s597 = scalar_lea.vmem %s231, 12 [#allocation9]
        %598 = vst [vmem:[%s597] sm:$0x1] %v596
        %s599 = sadd.s32 %s586, 1
        %s600 = sld [smem:[#allocation2 + %s599]]
        %s601 = sld [smem:[#allocation7 + %s599]]
        %v602 = vstv %s600
        %v603 = vmul.f32 %v602, %v584
        %v604 = vmul.f32 %v578, %v603
        %v605 = vstv %s601
        %v606 = vsub.f32 %v605, %v604
        %v607 = vld [vmem:[%s557 + $0x1] sm:$0x1]
        %v608 = vmul.f32 %v607, %v603
        %v609 = vadd.f32 %v608, %v606
        %610 = vst [vmem:[%s597 + $0x1] sm:$0x1] %v609
        %s611 = scalar_lea.vmem %s208, 14 [#allocation8]
        %v612 = vld [vmem:[%s611] sm:$0x3]
        %v613 = vsel %vm235, %v612, 0.0
        %v614 = vrot.slane %v613, 4
        %v615 = vadd.f32 %v613, %v614
        %v616 = vrot.slane %v615, 2
        %v617 = vadd.f32 %v615, %v616
        %v618 = vrot.slane %v617, 1
        %v619 = vadd.f32 %v617, %v618
        %v620 = vmul.f32 %v612, %v612
        %v621 = vsel %vm235, %v620, 0.0
        %v622 = vrot.slane %v621, 4
        %v623 = vadd.f32 %v621, %v622
        %v624 = vrot.slane %v623, 2
        %v625 = vadd.f32 %v623, %v624
        %v626 = vrot.slane %v625, 1
        %v627 = vadd.f32 %v625, %v626
        %628 = vadd.xlane.f32.xlu0 %v619
        %v629 = vpop.xlane.xlu0 %628
        %630 = vadd.xlane.f32.xlu0 %v627
        %v631 = vpop.xlane.xlu0 %630
        %v632 = vmul.f32 %v629, 0.00390625
        %v633 = vmul.f32 %v629, %v632
        %v634 = vsub.f32 %v631, %v633
        %v635 = vmax.f32 %v634, 0.0
        %v636 = vmul.f32 %v635, 0.003921569
        %v637 = vadd.f32 %v636, 1e-05
        %v638 = vrsqrt.pop %v637
        %s639 = sadd.s32 %s314, 7
        %s640 = smul.u32 %s639, 2
        %s641 = sld [smem:[#allocation2 + %s640]]
        %s642 = sld [smem:[#allocation7 + %s640]]
        %v643 = vstv %s641
        %v644 = vmul.f32 %v643, %v638
        %v645 = vmul.f32 %v632, %v644
        %v646 = vstv %s642
        %v647 = vsub.f32 %v646, %v645
        %v648 = vld [vmem:[%s611] sm:$0x1]
        %v649 = vmul.f32 %v648, %v644
        %v650 = vadd.f32 %v649, %v647
        %s651 = scalar_lea.vmem %s231, 14 [#allocation9]
        %652 = vst [vmem:[%s651] sm:$0x1] %v650
        %s653 = sadd.s32 %s640, 1
        %s654 = sld [smem:[#allocation2 + %s653]]
        %s655 = sld [smem:[#allocation7 + %s653]]
        %v656 = vstv %s654
        %v657 = vmul.f32 %v656, %v638
        %v658 = vmul.f32 %v632, %v657
        %v659 = vstv %s655
        %v660 = vsub.f32 %v659, %v658
        %v661 = vld [vmem:[%s611 + $0x1] sm:$0x1]
        %v662 = vmul.f32 %v661, %v657
        %v663 = vadd.f32 %v662, %v660
        %664 = vst [vmem:[%s651 + $0x1] sm:$0x1] %v663
        %s665 = scalar_lea.vmem %s208, 16 [#allocation8]
        %v666 = vld [vmem:[%s665] sm:$0x3]
        %v667 = vsel %vm235, %v666, 0.0
        %v668 = vrot.slane %v667, 4
        %v669 = vadd.f32 %v667, %v668
        %v670 = vrot.slane %v669, 2
        %v671 = vadd.f32 %v669, %v670
        %v672 = vrot.slane %v671, 1
        %v673 = vadd.f32 %v671, %v672
        %v674 = vmul.f32 %v666, %v666
        %v675 = vsel %vm235, %v674, 0.0
        %v676 = vrot.slane %v675, 4
        %v677 = vadd.f32 %v675, %v676
        %v678 = vrot.slane %v677, 2
        %v679 = vadd.f32 %v677, %v678
        %v680 = vrot.slane %v679, 1
        %v681 = vadd.f32 %v679, %v680
        %682 = vadd.xlane.f32.xlu0 %v673
        %v683 = vpop.xlane.xlu0 %682
        %684 = vadd.xlane.f32.xlu0 %v681
        %v685 = vpop.xlane.xlu0 %684
        %v686 = vmul.f32 %v683, 0.00390625
        %v687 = vmul.f32 %v683, %v686
        %v688 = vsub.f32 %v685, %v687
        %v689 = vmax.f32 %v688, 0.0
        %v690 = vmul.f32 %v689, 0.003921569
        %v691 = vadd.f32 %v690, 1e-05
        %v692 = vrsqrt.pop %v691
        %s693 = sadd.s32 %s314, 8
        %s694 = smul.u32 %s693, 2
        %s695 = sld [smem:[#allocation2 + %s694]]
        %s696 = sld [smem:[#allocation7 + %s694]]
        %v697 = vstv %s695
        %v698 = vmul.f32 %v697, %v692
        %v699 = vmul.f32 %v686, %v698
        %v700 = vstv %s696
        %v701 = vsub.f32 %v700, %v699
        %v702 = vld [vmem:[%s665] sm:$0x1]
        %v703 = vmul.f32 %v702, %v698
        %v704 = vadd.f32 %v703, %v701
        %s705 = scalar_lea.vmem %s231, 16 [#allocation9]
        %706 = vst [vmem:[%s705] sm:$0x1] %v704
        %s707 = sadd.s32 %s694, 1
        %s708 = sld [smem:[#allocation2 + %s707]]
        %s709 = sld [smem:[#allocation7 + %s707]]
        %v710 = vstv %s708
        %v711 = vmul.f32 %v710, %v692
        %v712 = vmul.f32 %v686, %v711
        %v713 = vstv %s709
        %v714 = vsub.f32 %v713, %v712
        %v715 = vld [vmem:[%s665 + $0x1] sm:$0x1]
        %v716 = vmul.f32 %v715, %v711
        %v717 = vadd.f32 %v716, %v714
        %718 = vst [vmem:[%s705 + $0x1] sm:$0x1] %v717
        %s719 = scalar_lea.vmem %s208, 18 [#allocation8]
        %v720 = vld [vmem:[%s719] sm:$0x3]
        %v721 = vsel %vm235, %v720, 0.0
        %v722 = vrot.slane %v721, 4
        %v723 = vadd.f32 %v721, %v722
        %v724 = vrot.slane %v723, 2
        %v725 = vadd.f32 %v723, %v724
        %v726 = vrot.slane %v725, 1
        %v727 = vadd.f32 %v725, %v726
        %v728 = vmul.f32 %v720, %v720
        %v729 = vsel %vm235, %v728, 0.0
        %v730 = vrot.slane %v729, 4
        %v731 = vadd.f32 %v729, %v730
        %v732 = vrot.slane %v731, 2
        %v733 = vadd.f32 %v731, %v732
        %v734 = vrot.slane %v733, 1
        %v735 = vadd.f32 %v733, %v734
        %736 = vadd.xlane.f32.xlu0 %v727
        %v737 = vpop.xlane.xlu0 %736
        %738 = vadd.xlane.f32.xlu0 %v735
        %v739 = vpop.xlane.xlu0 %738
        %v740 = vmul.f32 %v737, 0.00390625
        %v741 = vmul.f32 %v737, %v740
        %v742 = vsub.f32 %v739, %v741
        %v743 = vmax.f32 %v742, 0.0
        %v744 = vmul.f32 %v743, 0.003921569
        %v745 = vadd.f32 %v744, 1e-05
        %v746 = vrsqrt.pop %v745
        %s747 = sadd.s32 %s314, 9
        %s748 = smul.u32 %s747, 2
        %s749 = sld [smem:[#allocation2 + %s748]]
        %s750 = sld [smem:[#allocation7 + %s748]]
        %v751 = vstv %s749
        %v752 = vmul.f32 %v751, %v746
        %v753 = vmul.f32 %v740, %v752
        %v754 = vstv %s750
        %v755 = vsub.f32 %v754, %v753
        %v756 = vld [vmem:[%s719] sm:$0x1]
        %v757 = vmul.f32 %v756, %v752
        %v758 = vadd.f32 %v757, %v755
        %s759 = scalar_lea.vmem %s231, 18 [#allocation9]
        %760 = vst [vmem:[%s759] sm:$0x1] %v758
        %s761 = sadd.s32 %s748, 1
        %s762 = sld [smem:[#allocation2 + %s761]]
        %s763 = sld [smem:[#allocation7 + %s761]]
        %v764 = vstv %s762
        %v765 = vmul.f32 %v764, %v746
        %v766 = vmul.f32 %v740, %v765
        %v767 = vstv %s763
        %v768 = vsub.f32 %v767, %v766
        %v769 = vld [vmem:[%s719 + $0x1] sm:$0x1]
        %v770 = vmul.f32 %v769, %v765
        %v771 = vadd.f32 %v770, %v768
        %772 = vst [vmem:[%s759 + $0x1] sm:$0x1] %v771
        %s773 = scalar_lea.vmem %s208, 20 [#allocation8]
        %v774 = vld [vmem:[%s773] sm:$0x3]
        %v775 = vsel %vm235, %v774, 0.0
        %v776 = vrot.slane %v775, 4
        %v777 = vadd.f32 %v775, %v776
        %v778 = vrot.slane %v777, 2
        %v779 = vadd.f32 %v777, %v778
        %v780 = vrot.slane %v779, 1
        %v781 = vadd.f32 %v779, %v780
        %v782 = vmul.f32 %v774, %v774
        %v783 = vsel %vm235, %v782, 0.0
        %v784 = vrot.slane %v783, 4
        %v785 = vadd.f32 %v783, %v784
        %v786 = vrot.slane %v785, 2
        %v787 = vadd.f32 %v785, %v786
        %v788 = vrot.slane %v787, 1
        %v789 = vadd.f32 %v787, %v788
        %790 = vadd.xlane.f32.xlu0 %v781
        %v791 = vpop.xlane.xlu0 %790
        %792 = vadd.xlane.f32.xlu0 %v789
        %v793 = vpop.xlane.xlu0 %792
        %v794 = vmul.f32 %v791, 0.00390625
        %v795 = vmul.f32 %v791, %v794
        %v796 = vsub.f32 %v793, %v795
        %v797 = vmax.f32 %v796, 0.0
        %v798 = vmul.f32 %v797, 0.003921569
        %v799 = vadd.f32 %v798, 1e-05
        %v800 = vrsqrt.pop %v799
        %s801 = sadd.s32 %s314, 10
        %s802 = smul.u32 %s801, 2
        %s803 = sld [smem:[#allocation2 + %s802]]
        %s804 = sld [smem:[#allocation7 + %s802]]
        %v805 = vstv %s803
        %v806 = vmul.f32 %v805, %v800
        %v807 = vmul.f32 %v794, %v806
        %v808 = vstv %s804
        %v809 = vsub.f32 %v808, %v807
        %v810 = vld [vmem:[%s773] sm:$0x1]
        %v811 = vmul.f32 %v810, %v806
        %v812 = vadd.f32 %v811, %v809
        %s813 = scalar_lea.vmem %s231, 20 [#allocation9]
        %814 = vst [vmem:[%s813] sm:$0x1] %v812
        %s815 = sadd.s32 %s802, 1
        %s816 = sld [smem:[#allocation2 + %s815]]
        %s817 = sld [smem:[#allocation7 + %s815]]
        %v818 = vstv %s816
        %v819 = vmul.f32 %v818, %v800
        %v820 = vmul.f32 %v794, %v819
        %v821 = vstv %s817
        %v822 = vsub.f32 %v821, %v820
        %v823 = vld [vmem:[%s773 + $0x1] sm:$0x1]
        %v824 = vmul.f32 %v823, %v819
        %v825 = vadd.f32 %v824, %v822
        %826 = vst [vmem:[%s813 + $0x1] sm:$0x1] %v825
        %s827 = scalar_lea.vmem %s208, 22 [#allocation8]
        %v828 = vld [vmem:[%s827] sm:$0x3]
        %v829 = vsel %vm235, %v828, 0.0
        %v830 = vrot.slane %v829, 4
        %v831 = vadd.f32 %v829, %v830
        %v832 = vrot.slane %v831, 2
        %v833 = vadd.f32 %v831, %v832
        %v834 = vrot.slane %v833, 1
        %v835 = vadd.f32 %v833, %v834
        %v836 = vmul.f32 %v828, %v828
        %v837 = vsel %vm235, %v836, 0.0
        %v838 = vrot.slane %v837, 4
        %v839 = vadd.f32 %v837, %v838
        %v840 = vrot.slane %v839, 2
        %v841 = vadd.f32 %v839, %v840
        %v842 = vrot.slane %v841, 1
        %v843 = vadd.f32 %v841, %v842
        %844 = vadd.xlane.f32.xlu0 %v835
        %v845 = vpop.xlane.xlu0 %844
        %846 = vadd.xlane.f32.xlu0 %v843
        %v847 = vpop.xlane.xlu0 %846
        %v848 = vmul.f32 %v845, 0.00390625
        %v849 = vmul.f32 %v845, %v848
        %v850 = vsub.f32 %v847, %v849
        %v851 = vmax.f32 %v850, 0.0
        %v852 = vmul.f32 %v851, 0.003921569
        %v853 = vadd.f32 %v852, 1e-05
        %v854 = vrsqrt.pop %v853
        %s855 = sadd.s32 %s314, 11
        %s856 = smul.u32 %s855, 2
        %s857 = sld [smem:[#allocation2 + %s856]]
        %s858 = sld [smem:[#allocation7 + %s856]]
        %v859 = vstv %s857
        %v860 = vmul.f32 %v859, %v854
        %v861 = vmul.f32 %v848, %v860
        %v862 = vstv %s858
        %v863 = vsub.f32 %v862, %v861
        %v864 = vld [vmem:[%s827] sm:$0x1]
        %v865 = vmul.f32 %v864, %v860
        %v866 = vadd.f32 %v865, %v863
        %s867 = scalar_lea.vmem %s231, 22 [#allocation9]
        %868 = vst [vmem:[%s867] sm:$0x1] %v866
        %s869 = sadd.s32 %s856, 1
        %s870 = sld [smem:[#allocation2 + %s869]]
        %s871 = sld [smem:[#allocation7 + %s869]]
        %v872 = vstv %s870
        %v873 = vmul.f32 %v872, %v854
        %v874 = vmul.f32 %v848, %v873
        %v875 = vstv %s871
        %v876 = vsub.f32 %v875, %v874
        %v877 = vld [vmem:[%s827 + $0x1] sm:$0x1]
        %v878 = vmul.f32 %v877, %v873
        %v879 = vadd.f32 %v878, %v876
        %880 = vst [vmem:[%s867 + $0x1] sm:$0x1] %v879
        %s881 = scalar_lea.vmem %s208, 24 [#allocation8]
        %v882 = vld [vmem:[%s881] sm:$0x3]
        %v883 = vsel %vm235, %v882, 0.0
        %v884 = vrot.slane %v883, 4
        %v885 = vadd.f32 %v883, %v884
        %v886 = vrot.slane %v885, 2
        %v887 = vadd.f32 %v885, %v886
        %v888 = vrot.slane %v887, 1
        %v889 = vadd.f32 %v887, %v888
        %v890 = vmul.f32 %v882, %v882
        %v891 = vsel %vm235, %v890, 0.0
        %v892 = vrot.slane %v891, 4
        %v893 = vadd.f32 %v891, %v892
        %v894 = vrot.slane %v893, 2
        %v895 = vadd.f32 %v893, %v894
        %v896 = vrot.slane %v895, 1
        %v897 = vadd.f32 %v895, %v896
        %898 = vadd.xlane.f32.xlu0 %v889
        %v899 = vpop.xlane.xlu0 %898
        %900 = vadd.xlane.f32.xlu0 %v897
        %v901 = vpop.xlane.xlu0 %900
        %v902 = vmul.f32 %v899, 0.00390625
        %v903 = vmul.f32 %v899, %v902
        %v904 = vsub.f32 %v901, %v903
        %v905 = vmax.f32 %v904, 0.0
        %v906 = vmul.f32 %v905, 0.003921569
        %v907 = vadd.f32 %v906, 1e-05
        %v908 = vrsqrt.pop %v907
        %s909 = sadd.s32 %s314, 12
        %s910 = smul.u32 %s909, 2
        %s911 = sld [smem:[#allocation2 + %s910]]
        %s912 = sld [smem:[#allocation7 + %s910]]
        %v913 = vstv %s911
        %v914 = vmul.f32 %v913, %v908
        %v915 = vmul.f32 %v902, %v914
        %v916 = vstv %s912
        %v917 = vsub.f32 %v916, %v915
        %v918 = vld [vmem:[%s881] sm:$0x1]
        %v919 = vmul.f32 %v918, %v914
        %v920 = vadd.f32 %v919, %v917
        %s921 = scalar_lea.vmem %s231, 24 [#allocation9]
        %922 = vst [vmem:[%s921] sm:$0x1] %v920
        %s923 = sadd.s32 %s910, 1
        %s924 = sld [smem:[#allocation2 + %s923]]
        %s925 = sld [smem:[#allocation7 + %s923]]
        %v926 = vstv %s924
        %v927 = vmul.f32 %v926, %v908
        %v928 = vmul.f32 %v902, %v927
        %v929 = vstv %s925
        %v930 = vsub.f32 %v929, %v928
        %v931 = vld [vmem:[%s881 + $0x1] sm:$0x1]
        %v932 = vmul.f32 %v931, %v927
        %v933 = vadd.f32 %v932, %v930
        %934 = vst [vmem:[%s921 + $0x1] sm:$0x1] %v933
        %s935 = scalar_lea.vmem %s208, 26 [#allocation8]
        %v936 = vld [vmem:[%s935] sm:$0x3]
        %v937 = vsel %vm235, %v936, 0.0
        %v938 = vrot.slane %v937, 4
        %v939 = vadd.f32 %v937, %v938
        %v940 = vrot.slane %v939, 2
        %v941 = vadd.f32 %v939, %v940
        %v942 = vrot.slane %v941, 1
        %v943 = vadd.f32 %v941, %v942
        %v944 = vmul.f32 %v936, %v936
        %v945 = vsel %vm235, %v944, 0.0
        %v946 = vrot.slane %v945, 4
        %v947 = vadd.f32 %v945, %v946
        %v948 = vrot.slane %v947, 2
        %v949 = vadd.f32 %v947, %v948
        %v950 = vrot.slane %v949, 1
        %v951 = vadd.f32 %v949, %v950
        %952 = vadd.xlane.f32.xlu0 %v943
        %v953 = vpop.xlane.xlu0 %952
        %954 = vadd.xlane.f32.xlu0 %v951
        %v955 = vpop.xlane.xlu0 %954
        %v956 = vmul.f32 %v953, 0.00390625
        %v957 = vmul.f32 %v953, %v956
        %v958 = vsub.f32 %v955, %v957
        %v959 = vmax.f32 %v958, 0.0
        %v960 = vmul.f32 %v959, 0.003921569
        %v961 = vadd.f32 %v960, 1e-05
        %v962 = vrsqrt.pop %v961
        %s963 = sadd.s32 %s314, 13
        %s964 = smul.u32 %s963, 2
        %s965 = sld [smem:[#allocation2 + %s964]]
        %s966 = sld [smem:[#allocation7 + %s964]]
        %v967 = vstv %s965
        %v968 = vmul.f32 %v967, %v962
        %v969 = vmul.f32 %v956, %v968
        %v970 = vstv %s966
        %v971 = vsub.f32 %v970, %v969
        %v972 = vld [vmem:[%s935] sm:$0x1]
        %v973 = vmul.f32 %v972, %v968
        %v974 = vadd.f32 %v973, %v971
        %s975 = scalar_lea.vmem %s231, 26 [#allocation9]
        %976 = vst [vmem:[%s975] sm:$0x1] %v974
        %s977 = sadd.s32 %s964, 1
        %s978 = sld [smem:[#allocation2 + %s977]]
        %s979 = sld [smem:[#allocation7 + %s977]]
        %v980 = vstv %s978
        %v981 = vmul.f32 %v980, %v962
        %v982 = vmul.f32 %v956, %v981
        %v983 = vstv %s979
        %v984 = vsub.f32 %v983, %v982
        %v985 = vld [vmem:[%s935 + $0x1] sm:$0x1]
        %v986 = vmul.f32 %v985, %v981
        %v987 = vadd.f32 %v986, %v984
        %988 = vst [vmem:[%s975 + $0x1] sm:$0x1] %v987
        %s989 = scalar_lea.vmem %s208, 28 [#allocation8]
        %v990 = vld [vmem:[%s989] sm:$0x3]
        %v991 = vsel %vm235, %v990, 0.0
        %v992 = vrot.slane %v991, 4
        %v993 = vadd.f32 %v991, %v992
        %v994 = vrot.slane %v993, 2
        %v995 = vadd.f32 %v993, %v994
        %v996 = vrot.slane %v995, 1
        %v997 = vadd.f32 %v995, %v996
        %v998 = vmul.f32 %v990, %v990
        %v999 = vsel %vm235, %v998, 0.0
        %v1000 = vrot.slane %v999, 4
        %v1001 = vadd.f32 %v999, %v1000
        %v1002 = vrot.slane %v1001, 2
        %v1003 = vadd.f32 %v1001, %v1002
        %v1004 = vrot.slane %v1003, 1
        %v1005 = vadd.f32 %v1003, %v1004
        %1006 = vadd.xlane.f32.xlu0 %v997
        %v1007 = vpop.xlane.xlu0 %1006
        %1008 = vadd.xlane.f32.xlu0 %v1005
        %v1009 = vpop.xlane.xlu0 %1008
        %v1010 = vmul.f32 %v1007, 0.00390625
        %v1011 = vmul.f32 %v1007, %v1010
        %v1012 = vsub.f32 %v1009, %v1011
        %v1013 = vmax.f32 %v1012, 0.0
        %v1014 = vmul.f32 %v1013, 0.003921569
        %v1015 = vadd.f32 %v1014, 1e-05
        %v1016 = vrsqrt.pop %v1015
        %s1017 = sadd.s32 %s314, 14
        %s1018 = smul.u32 %s1017, 2
        %s1019 = sld [smem:[#allocation2 + %s1018]]
        %s1020 = sld [smem:[#allocation7 + %s1018]]
        %v1021 = vstv %s1019
        %v1022 = vmul.f32 %v1021, %v1016
        %v1023 = vmul.f32 %v1010, %v1022
        %v1024 = vstv %s1020
        %v1025 = vsub.f32 %v1024, %v1023
        %v1026 = vld [vmem:[%s989] sm:$0x1]
        %v1027 = vmul.f32 %v1026, %v1022
        %v1028 = vadd.f32 %v1027, %v1025
        %s1029 = scalar_lea.vmem %s231, 28 [#allocation9]
        %1030 = vst [vmem:[%s1029] sm:$0x1] %v1028
        %s1031 = sadd.s32 %s1018, 1
        %s1032 = sld [smem:[#allocation2 + %s1031]]
        %s1033 = sld [smem:[#allocation7 + %s1031]]
        %v1034 = vstv %s1032
        %v1035 = vmul.f32 %v1034, %v1016
        %v1036 = vmul.f32 %v1010, %v1035
        %v1037 = vstv %s1033
        %v1038 = vsub.f32 %v1037, %v1036
        %v1039 = vld [vmem:[%s989 + $0x1] sm:$0x1]
        %v1040 = vmul.f32 %v1039, %v1035
        %v1041 = vadd.f32 %v1040, %v1038
        %1042 = vst [vmem:[%s1029 + $0x1] sm:$0x1] %v1041
        %s1043 = scalar_lea.vmem %s208, 30 [#allocation8]
        %v1044 = vld [vmem:[%s1043] sm:$0x3]
        %v1045 = vsel %vm235, %v1044, 0.0
        %v1046 = vrot.slane %v1045, 4
        %v1047 = vadd.f32 %v1045, %v1046
        %v1048 = vrot.slane %v1047, 2
        %v1049 = vadd.f32 %v1047, %v1048
        %v1050 = vrot.slane %v1049, 1
        %v1051 = vadd.f32 %v1049, %v1050
        %v1052 = vmul.f32 %v1044, %v1044
        %v1053 = vsel %vm235, %v1052, 0.0
        %v1054 = vrot.slane %v1053, 4
        %v1055 = vadd.f32 %v1053, %v1054
        %v1056 = vrot.slane %v1055, 2
        %v1057 = vadd.f32 %v1055, %v1056
        %v1058 = vrot.slane %v1057, 1
        %v1059 = vadd.f32 %v1057, %v1058
        %1060 = vadd.xlane.f32.xlu0 %v1051
        %v1061 = vpop.xlane.xlu0 %1060
        %1062 = vadd.xlane.f32.xlu0 %v1059
        %v1063 = vpop.xlane.xlu0 %1062
        %v1064 = vmul.f32 %v1061, 0.00390625
        %v1065 = vmul.f32 %v1061, %v1064
        %v1066 = vsub.f32 %v1063, %v1065
        %v1067 = vmax.f32 %v1066, 0.0
        %v1068 = vmul.f32 %v1067, 0.003921569
        %v1069 = vadd.f32 %v1068, 1e-05
        %v1070 = vrsqrt.pop %v1069
        %s1071 = sadd.s32 %s314, 15
        %s1072 = smul.u32 %s1071, 2
        %s1073 = sld [smem:[#allocation2 + %s1072]]
        %s1074 = sld [smem:[#allocation7 + %s1072]]
        %v1075 = vstv %s1073
        %v1076 = vmul.f32 %v1075, %v1070
        %v1077 = vmul.f32 %v1064, %v1076
        %v1078 = vstv %s1074
        %v1079 = vsub.f32 %v1078, %v1077
        %v1080 = vld [vmem:[%s1043] sm:$0x1]
        %v1081 = vmul.f32 %v1080, %v1076
        %v1082 = vadd.f32 %v1081, %v1079
        %s1083 = scalar_lea.vmem %s231, 30 [#allocation9]
        %1084 = vst [vmem:[%s1083] sm:$0x1] %v1082
        %s1085 = sadd.s32 %s1072, 1
        %s1086 = sld [smem:[#allocation2 + %s1085]]
        %s1087 = sld [smem:[#allocation7 + %s1085]]
        %v1088 = vstv %s1086
        %v1089 = vmul.f32 %v1088, %v1070
        %v1090 = vmul.f32 %v1064, %v1089
        %v1091 = vstv %s1087
        %v1092 = vsub.f32 %v1091, %v1090
        %v1093 = vld [vmem:[%s1043 + $0x1] sm:$0x1]
        %v1094 = vmul.f32 %v1093, %v1089
        %v1095 = vadd.f32 %v1094, %v1092
        %1096 = vst [vmem:[%s1083 + $0x1] sm:$0x1] %v1095
        %s1097 = sand.u32 %s114, 1
        %s1098 = scalar_lea.sflag [#allocation4], %s1097
        %s1099 = sand.u32 %s114, 1
        %s1100 = smul.addr %s1099, 32
        %s1101 = scalar_lea.vmem [#allocation9], %s1100
        // Predicated region
        $region45: #{tpu_custom_call.1} parent=31 // pred_check
          %p1102 = pneg %p124
        $region46: #{tpu_custom_call.1} parent=31 // pred_check_branch
          %1104 = sbr.rel (%p1102) target = $region48
        $region47: #{tpu_custom_call.1} parent=31 // pred_region
          %s1105 = smul.u32 16, %s26
          %s1107 = ssub.s32 512, 512
          %1108 = vsyncadd %s1098, %s1107
          %s1109 = smul.addr %s27, 16
          %s1110 = sadd.s32 %s1105, %s1109
          %s1111 = smul.addr %s1110, 32
          %s1112 = scalar_lea.hbm %s3, %s1111
          %s1113 = sshll.u32 %s1101, 4
          %s1114 = int_to_ptr.vmem [resolvable:$true] %s1113
          %1119 = dma.vmem_to_hbm [thread:$0]  %s1114, 512, %s1112, %s1098, 32, 32, 2
        $region48: #{tpu_custom_call.1} parent=31 // pred_fallthru
          _
      $region32: #{tpu_custom_call.1} parent=5 // pred_fallthru
        _
      %p1120 = scmp.le.s32.totalorder 2, %s17
      // Predicated region
      $region49: #{tpu_custom_call.1} parent=5 // pred_check
        %p1121 = pneg %p1120
      $region50: #{tpu_custom_call.1} parent=5 // pred_check_branch
        %1123 = sbr.rel (%p1121) target = $region52
      $region51: #{tpu_custom_call.1} parent=5 // pred_region
        %s1124 = ssub.s32 %s17, 2
        // Predicated region
        $region53: #{tpu_custom_call.1} parent=51 // pred_check
          %p1125 = pneg %p130
        $region54: #{tpu_custom_call.1} parent=51 // pred_check_branch
          %1127 = sbr.rel (%p1125) target = $region56
        $region55: #{tpu_custom_call.1} parent=51 // pred_region
          %s1128 = sand.u32 %s115, 1
          %s1129 = scalar_lea.sflag [#allocation4], %s1128
          %s1130 = sand.u32 %s115, 1
          %s1131 = smul.addr %s1130, 32
          %s1132 = scalar_lea.vmem [#allocation9], %s1131
          %1133 = dma.done %s1129, 512
        $region56: #{tpu_custom_call.1} parent=51 // pred_fallthru
          _
      $region52: #{tpu_custom_call.1} parent=5 // pred_fallthru
        _
    $region6: #{tpu_custom_call.1} parent=1 // loop_footer
      %s21 = sadd.s32 1, %s17
    $region7: #{tpu_custom_call.1} parent=1 // loop_footer_branch
      %16 = sbr.rel target = $region3
    $region8: #{tpu_custom_call.1} parent=1 // loop_exit
      _
    %1134 = vsyncpa [#allocation3], 1
    %s1135 = scalar_lea.sflag [#allocation3], 1
    %1136 = vsyncpa %s1135, 1
    %1137 = vsyncpa [#allocation4], 1
    %s1138 = scalar_lea.sflag [#allocation4], 1
    %1139 = vsyncpa %s1138, 1
    %1140 = vsyncpa [#allocation5], 1
    %s1141 = scalar_lea.sflag [#allocation5], 1
    %1142 = vsyncpa %s1141, 1
    %1143 = vsyncpa [#allocation6], 1
    %s1144 = scalar_lea.sflag [#allocation6], 1
    %1145 = vsyncpa %s1144, 1

</llo_original>
